<compile_context>
chip_gen: v7x
topology: tpu7x:2x2x1
jax: 0.10.0
libtpu: 0.0.40
codegen_flags: <defaults>
</compile_context>

<pallas_src>
import jax
import jax.numpy as jnp
from jax.experimental import pallas as pl
from jax.experimental.pallas import tpu as pltpu

NEG_SLOPE = 0.2
BN_EPS = 1e-5
# bf16 for the gather matmul operands (one-hot values 0/1 are exact in bf16;
# the projected features lose only bf16 rounding).  Set to jnp.float32 for
# bit-closer numerics.
GATHER_DTYPE = jnp.bfloat16


def _leaky_relu(x):
    return jnp.where(x > 0, x, NEG_SLOPE * x)


def _pick_tile_n(n):
    # TILE_N must be a multiple of 128 (lane-dense idx/out tiles) or equal N.
    for t in (512, 256, 128):
        if n % t == 0:
            return t
    return n


# ---------------------------------------------------------------------------
# Edge-conv kernel:
#   ftW = feat @ W (cached per batch element) ->
#   neighbor gather of ftW via bf16 one-hot matmul (neighbor-major rows) ->
#   max over k (leading-axis VPU reduce) -> subtract center -> BN affine ->
#   LeakyReLU.  Grid = (batch, N-tile).
# ---------------------------------------------------------------------------
def edgeconv_kernel(idx_ref, feat_ref, w_ref, scale_ref, shift_ref, out_ref,
                    ftw_ref):
    # idx_ref   : (k, TILE_N) int32   neighbor indices, neighbor-major
    # feat_ref  : (N, Cin)    f32     full per-point feature table (gather src)
    # w_ref     : (Cin, Cout) f32     1x1 conv weight (transposed vs. torch)
    # scale/shift_ref : (1, Cout) f32 folded BatchNorm affine (scale > 0)
    # out_ref   : (TILE_N, Cout) f32
    # ftw_ref   : (N, Cout) GATHER_DTYPE scratch, persists across N-tiles
    k, tile_n = idx_ref.shape
    n_pts, cout = ftw_ref.shape

    # (1) Project the full point table once per batch element: ftW = ft @ W.
    @pl.when(pl.program_id(1) == 0)
    def _():
        ftw_ref[...] = jnp.dot(
            feat_ref[...], w_ref[...],
            preferred_element_type=jnp.float32).astype(ftw_ref.dtype)

    # (2) Gather projected neighbor features with a one-hot matmul.
    #     Rows are neighbor-major: row (j, n) == neighbor j of point n, so the
    #     later k-reduction is over the leading axis.
    idxv = idx_ref[...]                                          # (k, TILE_N)
    lane = jax.lax.broadcasted_iota(jnp.int32, (k, tile_n, n_pts), 2)
    onehot = (lane == idxv[:, :, None]).astype(ftw_ref.dtype)    # (k,T,N)
    neigh = jnp.dot(onehot.reshape(k * tile_n, n_pts), ftw_ref[...],
                    preferred_element_type=jnp.float32)          # (k*T, Cout)
    neigh = neigh.reshape(k, tile_n, cout)

    # (3) Max over neighbors first: leading-axis reduce -> k-1 plain VPU maxes.
    m = jnp.max(neigh, axis=0)                                   # (T, Cout)

    # (4) Subtract the center contribution after the max:
    #     max_k(n_j@W - c@W) == max_k(n_j@W) - c@W.
    start = pl.multiple_of(pl.program_id(1) * tile_n, tile_n)
    center = ftw_ref[pl.ds(start, tile_n), :].astype(jnp.float32)

    # (5) Folded BN + LeakyReLU after the k-reduction (valid since scale > 0
    #     and LeakyReLU is monotone).
    out_ref[...] = _leaky_relu((m - center) * scale_ref[...] + shift_ref[...])


def edge_conv_layer(feat, idx_t, w, scale, shift):
    # feat: (B, N, Cin) f32, idx_t: (B, k, N) int32 (neighbor-major)
    B, N, cin = feat.shape
    k = idx_t.shape[1]
    cout = w.shape[1]
    tile_n = _pick_tile_n(N)
    nt = N // tile_n

    flops = 2 * B * (N * cin * cout + k * N * N * cout)
    bytes_accessed = 4 * (B * k * N + B * N * cin + B * N * cout
                          + cin * cout + 2 * cout)

    return pl.pallas_call(
        edgeconv_kernel,
        out_shape=jax.ShapeDtypeStruct((B, N, cout), jnp.float32),
        grid=(B, nt),
        in_specs=[
            pl.BlockSpec((None, k, tile_n), lambda b, n: (b, 0, n)),
            pl.BlockSpec((None, N, cin), lambda b, n: (b, 0, 0)),
            pl.BlockSpec((cin, cout), lambda b, n: (0, 0)),
            pl.BlockSpec((1, cout), lambda b, n: (0, 0)),
            pl.BlockSpec((1, cout), lambda b, n: (0, 0)),
        ],
        out_specs=pl.BlockSpec((None, tile_n, cout), lambda b, n: (b, n, 0)),
        scratch_shapes=[pltpu.VMEM((N, cout), GATHER_DTYPE)],
        compiler_params=pltpu.CompilerParams(
            dimension_semantics=("parallel", "arbitrary")),
        cost_estimate=pl.CostEstimate(
            flops=flops, transcendentals=0, bytes_accessed=bytes_accessed),
    )(idx_t, feat, w, scale, shift)


# ---------------------------------------------------------------------------
# Head kernel: conv5 -> conv6 -> conv7 point-wise MLP.  The 512-channel concat
# is fused (four partial matmuls); conv7 output is lane-dense (out_dim, TILE_N).
# ---------------------------------------------------------------------------
def head_kernel(x1_ref, x2_ref, x3_ref, x4_ref,
                w5a_ref, w5b_ref, w5c_ref, w5d_ref, s5_ref, b5_ref,
                w6_ref, s6_ref, b6_ref, w7t_ref, out_ref):
    # conv5: concat(x1..x4) @ w5 == x1@w5a + x2@w5b + x3@w5c + x4@w5d
    h = jnp.dot(x1_ref[...], w5a_ref[...], preferred_element_type=jnp.float32)
    h = h + jnp.dot(x2_ref[...], w5b_ref[...],
                    preferred_element_type=jnp.float32)
    h = h + jnp.dot(x3_ref[...], w5c_ref[...],
                    preferred_element_type=jnp.float32)
    h = h + jnp.dot(x4_ref[...], w5d_ref[...],
                    preferred_element_type=jnp.float32)
    h = _leaky_relu(h * s5_ref[...] + b5_ref[...])

    # conv6
    h = jnp.dot(h, w6_ref[...], preferred_element_type=jnp.float32)
    h = _leaky_relu(h * s6_ref[...] + b6_ref[...])

    # conv7 (no BN): emit lane-dense (out_dim, TILE_N), N in the lane dim.
    o = jnp.einsum('od,nd->on', w7t_ref[...], h,
                   preferred_element_type=jnp.float32)
    out_ref[...] = _leaky_relu(o)


def head_layer(x1, x2, x3, x4, w5a, w5b, w5c, w5d, s5, b5, w6, s6, b6, w7t):
    B, N, _ = x1.shape
    out_dim = w7t.shape[0]
    tile_n = _pick_tile_n(N)
    nt = N // tile_n
    c_cat = x1.shape[-1] + x2.shape[-1] + x3.shape[-1] + x4.shape[-1]
    c5, c6 = w5a.shape[1], w6.shape[1]

    flops = 2 * B * N * (c_cat * c5 + c5 * c6 + c6 * out_dim)
    bytes_accessed = 4 * (B * N * c_cat + B * N * out_dim
                          + c_cat * c5 + c5 * c6 + c6 * out_dim
                          + 2 * (c5 + c6))

    def branch_spec(c):
        return pl.BlockSpec((None, tile_n, c), lambda b, n: (b, n, 0))

    def full2d(r, c):
        return pl.BlockSpec((r, c), lambda b, n: (0, 0))

    return pl.pallas_call(
        head_kernel,
        out_shape=jax.ShapeDtypeStruct((B, out_dim, N), jnp.float32),
        grid=(B, nt),
        in_specs=[
            branch_spec(x1.shape[-1]), branch_spec(x2.shape[-1]),
            branch_spec(x3.shape[-1]), branch_spec(x4.shape[-1]),
            full2d(*w5a.shape), full2d(*w5b.shape),
            full2d(*w5c.shape), full2d(*w5d.shape),
            full2d(*s5.shape), full2d(*b5.shape),
            full2d(*w6.shape), full2d(*s6.shape), full2d(*b6.shape),
            full2d(*w7t.shape),
        ],
        out_specs=pl.BlockSpec((None, out_dim, tile_n), lambda b, n: (b, 0, n)),
        compiler_params=pltpu.CompilerParams(
            dimension_semantics=("parallel", "parallel")),
        cost_estimate=pl.CostEstimate(
            flops=flops, transcendentals=0, bytes_accessed=bytes_accessed),
    )(x1, x2, x3, x4, w5a, w5b, w5c, w5d, s5, b5, w6, s6, b6, w7t)


# ---------------------------------------------------------------------------
# Glue: knn (matches knn_iterative semantics), parameter init, full forward.
# ---------------------------------------------------------------------------
def knn_jax(x, k):
    # x: (B, C, N) -- same channel-first convention as the torch module.
    # Note: like the torch reference, each point's nearest neighbor is itself.
    def per_item(y):                                   # y: (C, N)
        r = 2.0 * (y.T @ y)                            # (N, N)
        diag = jnp.diagonal(r)
        dist = diag[None, :] + diag[:, None] - 2.0 * r
        return jax.lax.top_k(-dist, k)[1]              # k smallest distances
    return jax.vmap(per_item)(x).astype(jnp.int32)     # (B, N, k)


def init_params(key, in_dim=3, out_dim=1):
    shapes = [(in_dim, 64), (64, 64), (64, 128), (128, 256),
              (512, 256), (256, 128), (128, out_dim)]
    params = {}
    keys = jax.random.split(key, 4 * len(shapes))
    for i, (ci, co) in enumerate(shapes):
        kw, kg, kb, km = keys[4 * i:4 * i + 4]
        w = jax.random.normal(kw, (ci, co), jnp.float32) / jnp.sqrt(float(ci))
        if i == 6:
            params["w7t"] = w.T        # (out_dim, 128): lane-dense final store
        else:
            params[f"w{i + 1}"] = w
        if i < 6:  # layers 1..6 have BatchNorm; conv7 has none
            gamma = jax.random.uniform(kg, (1, co), jnp.float32, 0.8, 1.2)
            beta = 0.1 * jax.random.normal(kb, (1, co), jnp.float32)
            rmean = 0.1 * jax.random.normal(km, (1, co), jnp.float32)
            rvar = jnp.ones((1, co), jnp.float32)
            # scale is strictly positive -- required for the max/BN reorder.
            scale = gamma / jnp.sqrt(rvar + BN_EPS)
            shift = beta - rmean * scale
            params[f"s{i + 1}"] = scale
            params[f"b{i + 1}"] = shift
    return params


def slgcnn_forward(x, params, k=8):
    # x: (B, in_dim, N) as in the torch module; returns (B, N, out_dim)
    idx = knn_jax(x, k)                                  # (B, N, k)
    idx_t = jnp.transpose(idx, (0, 2, 1))                # (B, k, N) nbr-major
    feat = jnp.transpose(x, (0, 2, 1))                   # (B, N, in_dim)

    x1 = edge_conv_layer(feat, idx_t, params["w1"], params["s1"], params["b1"])
    x2 = edge_conv_layer(x1, idx_t, params["w2"], params["s2"], params["b2"])
    x3 = edge_conv_layer(x2, idx_t, params["w3"], params["s3"], params["b3"])
    x4 = edge_conv_layer(x3, idx_t, params["w4"], params["s4"], params["b4"])

    # conv5's 512-channel input concat is fused into the head kernel by
    # splitting w5 into per-branch slabs (no (B,N,512) HBM round-trip).
    w5 = params["w5"]
    c1, c2, c3 = x1.shape[-1], x2.shape[-1], x3.shape[-1]
    w5a = w5[:c1]
    w5b = w5[c1:c1 + c2]
    w5c = w5[c1 + c2:c1 + c2 + c3]
    w5d = w5[c1 + c2 + c3:]

    out_t = head_layer(x1, x2, x3, x4, w5a, w5b, w5c, w5d,
                       params["s5"], params["b5"],
                       params["w6"], params["s6"], params["b6"],
                       params["w7t"])                    # (B, out_dim, N)
    return jnp.transpose(out_t, (0, 2, 1))               # (B, N, out_dim)


if __name__ == "__main__":
    key = jax.random.PRNGKey(0)
    k_param, k_x = jax.random.split(key)

    B, IN_DIM, N, K, OUT_DIM = 2, 3, 32, 8, 1
    params = init_params(k_param, in_dim=IN_DIM, out_dim=OUT_DIM)
    x = jax.random.normal(k_x, (B, IN_DIM, N), jnp.float32)

    fwd = jax.jit(lambda xx: slgcnn_forward(xx, params, k=K))
    out = jax.block_until_ready(fwd(x))
    assert out.shape == (B, N, OUT_DIM), out.shape
    assert bool(jnp.all(jnp.isfinite(out)))
    print("KERNEL_OK")
</pallas_src>

<mosaic_0001>
module attributes {stable_mosaic.version = 11 : i64} {
  func.func @edgeconv_kernel(%arg0: i32, %arg1: i32, %arg2: memref<1x8x32xi32, #tpu.memory_space<vmem>>, %arg3: memref<1x32x3xf32, #tpu.memory_space<vmem>>, %arg4: memref<3x64xf32, #tpu.memory_space<vmem>>, %arg5: memref<1x64xf32, #tpu.memory_space<vmem>>, %arg6: memref<1x64xf32, #tpu.memory_space<vmem>>, %arg7: memref<1x32x64xf32, #tpu.memory_space<vmem>>, %arg8: memref<32x64xbf16, #tpu.memory_space<vmem>>) attributes {dimension_semantics = [#tpu.dimension_semantics<parallel>, #tpu.dimension_semantics<arbitrary>], iteration_bounds = array<i64: 2, 1>, scalar_prefetch = 0 : i64, scratch_operands = 1 : i64, tpu.core_type = #tpu.core_type<tc>, window_params = [{transform_indices = @transform_0, window_bounds = array<i64: 1, 8, 32>}, {transform_indices = @transform_1, window_bounds = array<i64: 1, 32, 3>}, {pipeline_mode = #tpu.pipeline_mode<synchronous>, transform_indices = @transform_2, window_bounds = array<i64: 3, 64>}, {pipeline_mode = #tpu.pipeline_mode<synchronous>, transform_indices = @transform_3, window_bounds = array<i64: 1, 64>}, {pipeline_mode = #tpu.pipeline_mode<synchronous>, transform_indices = @transform_4, window_bounds = array<i64: 1, 64>}, {transform_indices = @transform_5, window_bounds = array<i64: 1, 32, 64>}]} {
    %c0_i32 = arith.constant 0 : i32
    %0 = arith.cmpi eq, %arg1, %c0_i32 : i32
    %1 = arith.extui %0 : i1 to i32
    %c0_i32_0 = arith.constant 0 : i32
    %2 = arith.cmpi ne, %1, %c0_i32_0 : i32
    scf.if %2 {
      %c0_16 = arith.constant 0 : index
      %c0_17 = arith.constant 0 : index
      %c0_18 = arith.constant 0 : index
      %37 = vector.load %arg3[%c0_16, %c0_17, %c0_18] : memref<1x32x3xf32, #tpu.memory_space<vmem>>, vector<1x32x3xf32>
      %38 = vector.shape_cast %37 : vector<1x32x3xf32> to vector<32x3xf32>
      %c0_19 = arith.constant 0 : index
      %c0_20 = arith.constant 0 : index
      %39 = vector.load %arg4[%c0_19, %c0_20] : memref<3x64xf32, #tpu.memory_space<vmem>>, vector<3x64xf32>
      %cst_21 = arith.constant dense<0.000000e+00> : vector<32x64xf32>
      %40 = tpu.matmul %38, %39, %cst_21 {dimension_numbers = #tpu.dot_dimension_numbers<[1], [0], [0], [1], [0, 0, 1, 1], [], []>} : vector<32x3xf32>, vector<3x64xf32>, vector<32x64xf32> -> vector<32x64xf32>
      %41 = arith.truncf %40 : vector<32x64xf32> to vector<32x64xbf16>
      %c0_22 = arith.constant 0 : index
      %c0_23 = arith.constant 0 : index
      %42 = vector.load %arg8[%c0_22, %c0_23] : memref<32x64xbf16, #tpu.memory_space<vmem>>, vector<32x64xbf16>
      tpu.vector_store %arg8[%c0_22, %c0_23], %41 {strides = array<i32>} : memref<32x64xbf16, #tpu.memory_space<vmem>>, vector<32x64xbf16>,
    } else {
    }
    %c0 = arith.constant 0 : index
    %c0_1 = arith.constant 0 : index
    %c0_2 = arith.constant 0 : index
    %3 = vector.load %arg2[%c0, %c0_1, %c0_2] : memref<1x8x32xi32, #tpu.memory_space<vmem>>, vector<1x8x32xi32>
    %4 = vector.shape_cast %3 : vector<1x8x32xi32> to vector<8x32xi32>
    %5 = tpu.iota {dimensions = array<i32: 2>} : vector<8x32x32xi32>
    %6 = vector.shape_cast %4 : vector<8x32xi32> to vector<8x32x1xi32>
    %7 = vector.broadcast %6 : vector<8x32x1xi32> to vector<8x32x32xi32>
    %8 = arith.cmpi eq, %5, %7 : vector<8x32x32xi32>
    %9 = arith.extui %8 : vector<8x32x32xi1> to vector<8x32x32xi32>
    %10 = arith.sitofp %9 : vector<8x32x32xi32> to vector<8x32x32xf32>
    %11 = arith.truncf %10 : vector<8x32x32xf32> to vector<8x32x32xbf16>
    %12 = vector.shape_cast %11 : vector<8x32x32xbf16> to vector<256x32xbf16>
    %c0_3 = arith.constant 0 : index
    %c0_4 = arith.constant 0 : index
    %13 = vector.load %arg8[%c0_3, %c0_4] : memref<32x64xbf16, #tpu.memory_space<vmem>>, vector<32x64xbf16>
    %cst = arith.constant dense<0.000000e+00> : vector<256x64xf32>
    %14 = tpu.matmul %12, %13, %cst {dimension_numbers = #tpu.dot_dimension_numbers<[1], [0], [0], [1], [0, 0, 1, 1], [], []>} : vector<256x32xbf16>, vector<32x64xbf16>, vector<256x64xf32> -> vector<256x64xf32>
    %15 = vector.shape_cast %14 : vector<256x64xf32> to vector<8x32x64xf32>
    %cst_5 = arith.constant dense<0xFF800000> : vector<32x64xf32>
    %16 = vector.multi_reduction <maximumf>, %15, %cst_5 [0] : vector<8x32x64xf32> to vector<32x64xf32>
    %c32_i32 = arith.constant 32 : i32
    %17 = arith.muli %arg1, %c32_i32 : i32
    %18 = tpu.assume_multiple %17, 32 : i32
    %19 = arith.index_cast %18 : i32 to index
    %c0_6 = arith.constant 0 : index
    %20 = vector.load %arg8[%19, %c0_6] : memref<32x64xbf16, #tpu.memory_space<vmem>>, vector<32x64xbf16>
    %21 = arith.extf %20 : vector<32x64xbf16> to vector<32x64xf32>
    %22 = arith.subf %16, %21 : vector<32x64xf32>
    %c0_7 = arith.constant 0 : index
    %c0_8 = arith.constant 0 : index
    %23 = vector.load %arg5[%c0_7, %c0_8] : memref<1x64xf32, #tpu.memory_space<vmem>>, vector<1x64xf32>
    %24 = vector.broadcast %23 : vector<1x64xf32> to vector<32x64xf32>
    %25 = arith.mulf %22, %24 : vector<32x64xf32>
    %c0_9 = arith.constant 0 : index
    %c0_10 = arith.constant 0 : index
    %26 = vector.load %arg6[%c0_9, %c0_10] : memref<1x64xf32, #tpu.memory_space<vmem>>, vector<1x64xf32>
    %27 = vector.broadcast %26 : vector<1x64xf32> to vector<32x64xf32>
    %28 = arith.addf %25, %27 : vector<32x64xf32>
    %cst_11 = arith.constant 0.000000e+00 : f32
    %29 = vector.broadcast %cst_11 : f32 to vector<32x64xf32>
    %30 = arith.cmpf ogt, %28, %29 : vector<32x64xf32>
    %cst_12 = arith.constant 2.000000e-01 : f32
    %31 = vector.broadcast %cst_12 : f32 to vector<32x64xf32>
    %32 = arith.mulf %31, %28 : vector<32x64xf32>
    %33 = arith.select %30, %28, %32 : vector<32x64xi1>, vector<32x64xf32>
    %c0_13 = arith.constant 0 : index
    %c0_14 = arith.constant 0 : index
    %c0_15 = arith.constant 0 : index
    %34 = vector.load %arg7[%c0_13, %c0_14, %c0_15] : memref<1x32x64xf32, #tpu.memory_space<vmem>>, vector<1x32x64xf32>
    %35 = vector.shape_cast %34 : vector<1x32x64xf32> to vector<32x64xf32>
    %36 = vector.shape_cast %33 : vector<32x64xf32> to vector<1x32x64xf32>
    tpu.vector_store %arg7[%c0_13, %c0_14, %c0_15], %36 {strides = array<i32>} : memref<1x32x64xf32, #tpu.memory_space<vmem>>, vector<1x32x64xf32>,
    return
  }
  func.func @transform_0(%arg0: i32, %arg1: i32) -> (i32, i32, i32) {
    %c0_i32 = arith.constant 0 : i32
    %c0_i32_0 = arith.constant 0 : i32
    return %arg0, %c0_i32, %arg1 : i32, i32, i32
  }
  func.func @transform_1(%arg0: i32, %arg1: i32) -> (i32, i32, i32) {
    %c0_i32 = arith.constant 0 : i32
    %c0_i32_0 = arith.constant 0 : i32
    %c0_i32_1 = arith.constant 0 : i32
    return %arg0, %c0_i32, %c0_i32_0 : i32, i32, i32
  }
  func.func @transform_2(%arg0: i32, %arg1: i32) -> (i32, i32) {
    %c0_i32 = arith.constant 0 : i32
    %c0_i32_0 = arith.constant 0 : i32
    %c0_i32_1 = arith.constant 0 : i32
    return %c0_i32, %c0_i32_0 : i32, i32
  }
  func.func @transform_3(%arg0: i32, %arg1: i32) -> (i32, i32) {
    %c0_i32 = arith.constant 0 : i32
    %c0_i32_0 = arith.constant 0 : i32
    %c0_i32_1 = arith.constant 0 : i32
    return %c0_i32, %c0_i32_0 : i32, i32
  }
  func.func @transform_4(%arg0: i32, %arg1: i32) -> (i32, i32) {
    %c0_i32 = arith.constant 0 : i32
    %c0_i32_0 = arith.constant 0 : i32
    %c0_i32_1 = arith.constant 0 : i32
    return %c0_i32, %c0_i32_0 : i32, i32
  }
  func.func @transform_5(%arg0: i32, %arg1: i32) -> (i32, i32, i32) {
    %c0_i32 = arith.constant 0 : i32
    %c0_i32_0 = arith.constant 0 : i32
    return %arg0, %arg1, %c0_i32 : i32, i32, i32
  }
}

module attributes {stable_mosaic.version = 11 : i64} {
  func.func @edgeconv_kernel(%arg0: i32, %arg1: i32, %arg2: memref<1x8x32xi32, #tpu.memory_space<vmem>>, %arg3: memref<1x32x64xf32, #tpu.memory_space<vmem>>, %arg4: memref<64x64xf32, #tpu.memory_space<vmem>>, %arg5: memref<1x64xf32, #tpu.memory_space<vmem>>, %arg6: memref<1x64xf32, #tpu.memory_space<vmem>>, %arg7: memref<1x32x64xf32, #tpu.memory_space<vmem>>, %arg8: memref<32x64xbf16, #tpu.memory_space<vmem>>) attributes {dimension_semantics = [#tpu.dimension_semantics<parallel>, #tpu.dimension_semantics<arbitrary>], iteration_bounds = array<i64: 2, 1>, scalar_prefetch = 0 : i64, scratch_operands = 1 : i64, tpu.core_type = #tpu.core_type<tc>, window_params = [{transform_indices = @transform_0, window_bounds = array<i64: 1, 8, 32>}, {transform_indices = @transform_1, window_bounds = array<i64: 1, 32, 64>}, {pipeline_mode = #tpu.pipeline_mode<synchronous>, transform_indices = @transform_2, window_bounds = array<i64: 64, 64>}, {pipeline_mode = #tpu.pipeline_mode<synchronous>, transform_indices = @transform_3, window_bounds = array<i64: 1, 64>}, {pipeline_mode = #tpu.pipeline_mode<synchronous>, transform_indices = @transform_4, window_bounds = array<i64: 1, 64>}, {transform_indices = @transform_5, window_bounds = array<i64: 1, 32, 64>}]} {
    %c0_i32 = arith.constant 0 : i32
    %0 = arith.cmpi eq, %arg1, %c0_i32 : i32
    %1 = arith.extui %0 : i1 to i32
    %c0_i32_0 = arith.constant 0 : i32
    %2 = arith.cmpi ne, %1, %c0_i32_0 : i32
    scf.if %2 {
      %c0_16 = arith.constant 0 : index
      %c0_17 = arith.constant 0 : index
      %c0_18 = arith.constant 0 : index
      %37 = vector.load %arg3[%c0_16, %c0_17, %c0_18] : memref<1x32x64xf32, #tpu.memory_space<vmem>>, vector<1x32x64xf32>
      %38 = vector.shape_cast %37 : vector<1x32x64xf32> to vector<32x64xf32>
      %c0_19 = arith.constant 0 : index
      %c0_20 = arith.constant 0 : index
      %39 = vector.load %arg4[%c0_19, %c0_20] : memref<64x64xf32, #tpu.memory_space<vmem>>, vector<64x64xf32>
      %cst_21 = arith.constant dense<0.000000e+00> : vector<32x64xf32>
      %40 = tpu.matmul %38, %39, %cst_21 {dimension_numbers = #tpu.dot_dimension_numbers<[1], [0], [0], [1], [0, 0, 1, 1], [], []>} : vector<32x64xf32>, vector<64x64xf32>, vector<32x64xf32> -> vector<32x64xf32>
      %41 = arith.truncf %40 : vector<32x64xf32> to vector<32x64xbf16>
      %c0_22 = arith.constant 0 : index
      %c0_23 = arith.constant 0 : index
      %42 = vector.load %arg8[%c0_22, %c0_23] : memref<32x64xbf16, #tpu.memory_space<vmem>>, vector<32x64xbf16>
      tpu.vector_store %arg8[%c0_22, %c0_23], %41 {strides = array<i32>} : memref<32x64xbf16, #tpu.memory_space<vmem>>, vector<32x64xbf16>,
    } else {
    }
    %c0 = arith.constant 0 : index
    %c0_1 = arith.constant 0 : index
    %c0_2 = arith.constant 0 : index
    %3 = vector.load %arg2[%c0, %c0_1, %c0_2] : memref<1x8x32xi32, #tpu.memory_space<vmem>>, vector<1x8x32xi32>
    %4 = vector.shape_cast %3 : vector<1x8x32xi32> to vector<8x32xi32>
    %5 = tpu.iota {dimensions = array<i32: 2>} : vector<8x32x32xi32>
    %6 = vector.shape_cast %4 : vector<8x32xi32> to vector<8x32x1xi32>
    %7 = vector.broadcast %6 : vector<8x32x1xi32> to vector<8x32x32xi32>
    %8 = arith.cmpi eq, %5, %7 : vector<8x32x32xi32>
    %9 = arith.extui %8 : vector<8x32x32xi1> to vector<8x32x32xi32>
    %10 = arith.sitofp %9 : vector<8x32x32xi32> to vector<8x32x32xf32>
    %11 = arith.truncf %10 : vector<8x32x32xf32> to vector<8x32x32xbf16>
    %12 = vector.shape_cast %11 : vector<8x32x32xbf16> to vector<256x32xbf16>
    %c0_3 = arith.constant 0 : index
    %c0_4 = arith.constant 0 : index
    %13 = vector.load %arg8[%c0_3, %c0_4] : memref<32x64xbf16, #tpu.memory_space<vmem>>, vector<32x64xbf16>
    %cst = arith.constant dense<0.000000e+00> : vector<256x64xf32>
    %14 = tpu.matmul %12, %13, %cst {dimension_numbers = #tpu.dot_dimension_numbers<[1], [0], [0], [1], [0, 0, 1, 1], [], []>} : vector<256x32xbf16>, vector<32x64xbf16>, vector<256x64xf32> -> vector<256x64xf32>
    %15 = vector.shape_cast %14 : vector<256x64xf32> to vector<8x32x64xf32>
    %cst_5 = arith.constant dense<0xFF800000> : vector<32x64xf32>
    %16 = vector.multi_reduction <maximumf>, %15, %cst_5 [0] : vector<8x32x64xf32> to vector<32x64xf32>
    %c32_i32 = arith.constant 32 : i32
    %17 = arith.muli %arg1, %c32_i32 : i32
    %18 = tpu.assume_multiple %17, 32 : i32
    %19 = arith.index_cast %18 : i32 to index
    %c0_6 = arith.constant 0 : index
    %20 = vector.load %arg8[%19, %c0_6] : memref<32x64xbf16, #tpu.memory_space<vmem>>, vector<32x64xbf16>
    %21 = arith.extf %20 : vector<32x64xbf16> to vector<32x64xf32>
    %22 = arith.subf %16, %21 : vector<32x64xf32>
    %c0_7 = arith.constant 0 : index
    %c0_8 = arith.constant 0 : index
    %23 = vector.load %arg5[%c0_7, %c0_8] : memref<1x64xf32, #tpu.memory_space<vmem>>, vector<1x64xf32>
    %24 = vector.broadcast %23 : vector<1x64xf32> to vector<32x64xf32>
    %25 = arith.mulf %22, %24 : vector<32x64xf32>
    %c0_9 = arith.constant 0 : index
    %c0_10 = arith.constant 0 : index
    %26 = vector.load %arg6[%c0_9, %c0_10] : memref<1x64xf32, #tpu.memory_space<vmem>>, vector<1x64xf32>
    %27 = vector.broadcast %26 : vector<1x64xf32> to vector<32x64xf32>
    %28 = arith.addf %25, %27 : vector<32x64xf32>
    %cst_11 = arith.constant 0.000000e+00 : f32
    %29 = vector.broadcast %cst_11 : f32 to vector<32x64xf32>
    %30 = arith.cmpf ogt, %28, %29 : vector<32x64xf32>
    %cst_12 = arith.constant 2.000000e-01 : f32
    %31 = vector.broadcast %cst_12 : f32 to vector<32x64xf32>
    %32 = arith.mulf %31, %28 : vector<32x64xf32>
    %33 = arith.select %30, %28, %32 : vector<32x64xi1>, vector<32x64xf32>
    %c0_13 = arith.constant 0 : index
    %c0_14 = arith.constant 0 : index
    %c0_15 = arith.constant 0 : index
    %34 = vector.load %arg7[%c0_13, %c0_14, %c0_15] : memref<1x32x64xf32, #tpu.memory_space<vmem>>, vector<1x32x64xf32>
    %35 = vector.shape_cast %34 : vector<1x32x64xf32> to vector<32x64xf32>
    %36 = vector.shape_cast %33 : vector<32x64xf32> to vector<1x32x64xf32>
    tpu.vector_store %arg7[%c0_13, %c0_14, %c0_15], %36 {strides = array<i32>} : memref<1x32x64xf32, #tpu.memory_space<vmem>>, vector<1x32x64xf32>,
    return
  }
  func.func @transform_0(%arg0: i32, %arg1: i32) -> (i32, i32, i32) {
    %c0_i32 = arith.constant 0 : i32
    %c0_i32_0 = arith.constant 0 : i32
    return %arg0, %c0_i32, %arg1 : i32, i32, i32
  }
  func.func @transform_1(%arg0: i32, %arg1: i32) -> (i32, i32, i32) {
    %c0_i32 = arith.constant 0 : i32
    %c0_i32_0 = arith.constant 0 : i32
    %c0_i32_1 = arith.constant 0 : i32
    return %arg0, %c0_i32, %c0_i32_0 : i32, i32, i32
  }
  func.func @transform_2(%arg0: i32, %arg1: i32) -> (i32, i32) {
    %c0_i32 = arith.constant 0 : i32
    %c0_i32_0 = arith.constant 0 : i32
    %c0_i32_1 = arith.constant 0 : i32
    return %c0_i32, %c0_i32_0 : i32, i32
  }
  func.func @transform_3(%arg0: i32, %arg1: i32) -> (i32, i32) {
    %c0_i32 = arith.constant 0 : i32
    %c0_i32_0 = arith.constant 0 : i32
    %c0_i32_1 = arith.constant 0 : i32
    return %c0_i32, %c0_i32_0 : i32, i32
  }
  func.func @transform_4(%arg0: i32, %arg1: i32) -> (i32, i32) {
    %c0_i32 = arith.constant 0 : i32
    %c0_i32_0 = arith.constant 0 : i32
    %c0_i32_1 = arith.constant 0 : i32
    return %c0_i32, %c0_i32_0 : i32, i32
  }
  func.func @transform_5(%arg0: i32, %arg1: i32) -> (i32, i32, i32) {
    %c0_i32 = arith.constant 0 : i32
    %c0_i32_0 = arith.constant 0 : i32
    return %arg0, %arg1, %c0_i32 : i32, i32, i32
  }
}

module attributes {stable_mosaic.version = 11 : i64} {
  func.func @edgeconv_kernel(%arg0: i32, %arg1: i32, %arg2: memref<1x8x32xi32, #tpu.memory_space<vmem>>, %arg3: memref<1x32x64xf32, #tpu.memory_space<vmem>>, %arg4: memref<64x128xf32, #tpu.memory_space<vmem>>, %arg5: memref<1x128xf32, #tpu.memory_space<vmem>>, %arg6: memref<1x128xf32, #tpu.memory_space<vmem>>, %arg7: memref<1x32x128xf32, #tpu.memory_space<vmem>>, %arg8: memref<32x128xbf16, #tpu.memory_space<vmem>>) attributes {dimension_semantics = [#tpu.dimension_semantics<parallel>, #tpu.dimension_semantics<arbitrary>], iteration_bounds = array<i64: 2, 1>, scalar_prefetch = 0 : i64, scratch_operands = 1 : i64, tpu.core_type = #tpu.core_type<tc>, window_params = [{transform_indices = @transform_0, window_bounds = array<i64: 1, 8, 32>}, {transform_indices = @transform_1, window_bounds = array<i64: 1, 32, 64>}, {pipeline_mode = #tpu.pipeline_mode<synchronous>, transform_indices = @transform_2, window_bounds = array<i64: 64, 128>}, {pipeline_mode = #tpu.pipeline_mode<synchronous>, transform_indices = @transform_3, window_bounds = array<i64: 1, 128>}, {pipeline_mode = #tpu.pipeline_mode<synchronous>, transform_indices = @transform_4, window_bounds = array<i64: 1, 128>}, {transform_indices = @transform_5, window_bounds = array<i64: 1, 32, 128>}]} {
    %c0_i32 = arith.constant 0 : i32
    %0 = arith.cmpi eq, %arg1, %c0_i32 : i32
    %1 = arith.extui %0 : i1 to i32
    %c0_i32_0 = arith.constant 0 : i32
    %2 = arith.cmpi ne, %1, %c0_i32_0 : i32
    scf.if %2 {
      %c0_16 = arith.constant 0 : index
      %c0_17 = arith.constant 0 : index
      %c0_18 = arith.constant 0 : index
      %37 = vector.load %arg3[%c0_16, %c0_17, %c0_18] : memref<1x32x64xf32, #tpu.memory_space<vmem>>, vector<1x32x64xf32>
      %38 = vector.shape_cast %37 : vector<1x32x64xf32> to vector<32x64xf32>
      %c0_19 = arith.constant 0 : index
      %c0_20 = arith.constant 0 : index
      %39 = vector.load %arg4[%c0_19, %c0_20] : memref<64x128xf32, #tpu.memory_space<vmem>>, vector<64x128xf32>
      %cst_21 = arith.constant dense<0.000000e+00> : vector<32x128xf32>
      %40 = tpu.matmul %38, %39, %cst_21 {dimension_numbers = #tpu.dot_dimension_numbers<[1], [0], [0], [1], [0, 0, 1, 1], [], []>} : vector<32x64xf32>, vector<64x128xf32>, vector<32x128xf32> -> vector<32x128xf32>
      %41 = arith.truncf %40 : vector<32x128xf32> to vector<32x128xbf16>
      %c0_22 = arith.constant 0 : index
      %c0_23 = arith.constant 0 : index
      %42 = vector.load %arg8[%c0_22, %c0_23] : memref<32x128xbf16, #tpu.memory_space<vmem>>, vector<32x128xbf16>
      tpu.vector_store %arg8[%c0_22, %c0_23], %41 {strides = array<i32>} : memref<32x128xbf16, #tpu.memory_space<vmem>>, vector<32x128xbf16>,
    } else {
    }
    %c0 = arith.constant 0 : index
    %c0_1 = arith.constant 0 : index
    %c0_2 = arith.constant 0 : index
    %3 = vector.load %arg2[%c0, %c0_1, %c0_2] : memref<1x8x32xi32, #tpu.memory_space<vmem>>, vector<1x8x32xi32>
    %4 = vector.shape_cast %3 : vector<1x8x32xi32> to vector<8x32xi32>
    %5 = tpu.iota {dimensions = array<i32: 2>} : vector<8x32x32xi32>
    %6 = vector.shape_cast %4 : vector<8x32xi32> to vector<8x32x1xi32>
    %7 = vector.broadcast %6 : vector<8x32x1xi32> to vector<8x32x32xi32>
    %8 = arith.cmpi eq, %5, %7 : vector<8x32x32xi32>
    %9 = arith.extui %8 : vector<8x32x32xi1> to vector<8x32x32xi32>
    %10 = arith.sitofp %9 : vector<8x32x32xi32> to vector<8x32x32xf32>
    %11 = arith.truncf %10 : vector<8x32x32xf32> to vector<8x32x32xbf16>
    %12 = vector.shape_cast %11 : vector<8x32x32xbf16> to vector<256x32xbf16>
    %c0_3 = arith.constant 0 : index
    %c0_4 = arith.constant 0 : index
    %13 = vector.load %arg8[%c0_3, %c0_4] : memref<32x128xbf16, #tpu.memory_space<vmem>>, vector<32x128xbf16>
    %cst = arith.constant dense<0.000000e+00> : vector<256x128xf32>
    %14 = tpu.matmul %12, %13, %cst {dimension_numbers = #tpu.dot_dimension_numbers<[1], [0], [0], [1], [0, 0, 1, 1], [], []>} : vector<256x32xbf16>, vector<32x128xbf16>, vector<256x128xf32> -> vector<256x128xf32>
    %15 = vector.shape_cast %14 : vector<256x128xf32> to vector<8x32x128xf32>
    %cst_5 = arith.constant dense<0xFF800000> : vector<32x128xf32>
    %16 = vector.multi_reduction <maximumf>, %15, %cst_5 [0] : vector<8x32x128xf32> to vector<32x128xf32>
    %c32_i32 = arith.constant 32 : i32
    %17 = arith.muli %arg1, %c32_i32 : i32
    %18 = tpu.assume_multiple %17, 32 : i32
    %19 = arith.index_cast %18 : i32 to index
    %c0_6 = arith.constant 0 : index
    %20 = vector.load %arg8[%19, %c0_6] : memref<32x128xbf16, #tpu.memory_space<vmem>>, vector<32x128xbf16>
    %21 = arith.extf %20 : vector<32x128xbf16> to vector<32x128xf32>
    %22 = arith.subf %16, %21 : vector<32x128xf32>
    %c0_7 = arith.constant 0 : index
    %c0_8 = arith.constant 0 : index
    %23 = vector.load %arg5[%c0_7, %c0_8] : memref<1x128xf32, #tpu.memory_space<vmem>>, vector<1x128xf32>
    %24 = vector.broadcast %23 : vector<1x128xf32> to vector<32x128xf32>
    %25 = arith.mulf %22, %24 : vector<32x128xf32>
    %c0_9 = arith.constant 0 : index
    %c0_10 = arith.constant 0 : index
    %26 = vector.load %arg6[%c0_9, %c0_10] : memref<1x128xf32, #tpu.memory_space<vmem>>, vector<1x128xf32>
    %27 = vector.broadcast %26 : vector<1x128xf32> to vector<32x128xf32>
    %28 = arith.addf %25, %27 : vector<32x128xf32>
    %cst_11 = arith.constant 0.000000e+00 : f32
    %29 = vector.broadcast %cst_11 : f32 to vector<32x128xf32>
    %30 = arith.cmpf ogt, %28, %29 : vector<32x128xf32>
    %cst_12 = arith.constant 2.000000e-01 : f32
    %31 = vector.broadcast %cst_12 : f32 to vector<32x128xf32>
    %32 = arith.mulf %31, %28 : vector<32x128xf32>
    %33 = arith.select %30, %28, %32 : vector<32x128xi1>, vector<32x128xf32>
    %c0_13 = arith.constant 0 : index
    %c0_14 = arith.constant 0 : index
    %c0_15 = arith.constant 0 : index
    %34 = vector.load %arg7[%c0_13, %c0_14, %c0_15] : memref<1x32x128xf32, #tpu.memory_space<vmem>>, vector<1x32x128xf32>
    %35 = vector.shape_cast %34 : vector<1x32x128xf32> to vector<32x128xf32>
    %36 = vector.shape_cast %33 : vector<32x128xf32> to vector<1x32x128xf32>
    tpu.vector_store %arg7[%c0_13, %c0_14, %c0_15], %36 {strides = array<i32>} : memref<1x32x128xf32, #tpu.memory_space<vmem>>, vector<1x32x128xf32>,
    return
  }
  func.func @transform_0(%arg0: i32, %arg1: i32) -> (i32, i32, i32) {
    %c0_i32 = arith.constant 0 : i32
    %c0_i32_0 = arith.constant 0 : i32
    return %arg0, %c0_i32, %arg1 : i32, i32, i32
  }
  func.func @transform_1(%arg0: i32, %arg1: i32) -> (i32, i32, i32) {
    %c0_i32 = arith.constant 0 : i32
    %c0_i32_0 = arith.constant 0 : i32
    %c0_i32_1 = arith.constant 0 : i32
    return %arg0, %c0_i32, %c0_i32_0 : i32, i32, i32
  }
  func.func @transform_2(%arg0: i32, %arg1: i32) -> (i32, i32) {
    %c0_i32 = arith.constant 0 : i32
    %c0_i32_0 = arith.constant 0 : i32
    %c0_i32_1 = arith.constant 0 : i32
    return %c0_i32, %c0_i32_0 : i32, i32
  }
  func.func @transform_3(%arg0: i32, %arg1: i32) -> (i32, i32) {
    %c0_i32 = arith.constant 0 : i32
    %c0_i32_0 = arith.constant 0 : i32
    %c0_i32_1 = arith.constant 0 : i32
    return %c0_i32, %c0_i32_0 : i32, i32
  }
  func.func @transform_4(%arg0: i32, %arg1: i32) -> (i32, i32) {
    %c0_i32 = arith.constant 0 : i32
    %c0_i32_0 = arith.constant 0 : i32
    %c0_i32_1 = arith.constant 0 : i32
    return %c0_i32, %c0_i32_0 : i32, i32
  }
  func.func @transform_5(%arg0: i32, %arg1: i32) -> (i32, i32, i32) {
    %c0_i32 = arith.constant 0 : i32
    %c0_i32_0 = arith.constant 0 : i32
    return %arg0, %arg1, %c0_i32 : i32, i32, i32
  }
}

module attributes {stable_mosaic.version = 11 : i64} {
  func.func @edgeconv_kernel(%arg0: i32, %arg1: i32, %arg2: memref<1x8x32xi32, #tpu.memory_space<vmem>>, %arg3: memref<1x32x128xf32, #tpu.memory_space<vmem>>, %arg4: memref<128x256xf32, #tpu.memory_space<vmem>>, %arg5: memref<1x256xf32, #tpu.memory_space<vmem>>, %arg6: memref<1x256xf32, #tpu.memory_space<vmem>>, %arg7: memref<1x32x256xf32, #tpu.memory_space<vmem>>, %arg8: memref<32x256xbf16, #tpu.memory_space<vmem>>) attributes {dimension_semantics = [#tpu.dimension_semantics<parallel>, #tpu.dimension_semantics<arbitrary>], iteration_bounds = array<i64: 2, 1>, scalar_prefetch = 0 : i64, scratch_operands = 1 : i64, tpu.core_type = #tpu.core_type<tc>, window_params = [{transform_indices = @transform_0, window_bounds = array<i64: 1, 8, 32>}, {transform_indices = @transform_1, window_bounds = array<i64: 1, 32, 128>}, {pipeline_mode = #tpu.pipeline_mode<synchronous>, transform_indices = @transform_2, window_bounds = array<i64: 128, 256>}, {pipeline_mode = #tpu.pipeline_mode<synchronous>, transform_indices = @transform_3, window_bounds = array<i64: 1, 256>}, {pipeline_mode = #tpu.pipeline_mode<synchronous>, transform_indices = @transform_4, window_bounds = array<i64: 1, 256>}, {transform_indices = @transform_5, window_bounds = array<i64: 1, 32, 256>}]} {
    %c0_i32 = arith.constant 0 : i32
    %0 = arith.cmpi eq, %arg1, %c0_i32 : i32
    %1 = arith.extui %0 : i1 to i32
    %c0_i32_0 = arith.constant 0 : i32
    %2 = arith.cmpi ne, %1, %c0_i32_0 : i32
    scf.if %2 {
      %c0_16 = arith.constant 0 : index
      %c0_17 = arith.constant 0 : index
      %c0_18 = arith.constant 0 : index
      %37 = vector.load %arg3[%c0_16, %c0_17, %c0_18] : memref<1x32x128xf32, #tpu.memory_space<vmem>>, vector<1x32x128xf32>
      %38 = vector.shape_cast %37 : vector<1x32x128xf32> to vector<32x128xf32>
      %c0_19 = arith.constant 0 : index
      %c0_20 = arith.constant 0 : index
      %39 = vector.load %arg4[%c0_19, %c0_20] : memref<128x256xf32, #tpu.memory_space<vmem>>, vector<128x256xf32>
      %cst_21 = arith.constant dense<0.000000e+00> : vector<32x256xf32>
      %40 = tpu.matmul %38, %39, %cst_21 {dimension_numbers = #tpu.dot_dimension_numbers<[1], [0], [0], [1], [0, 0, 1, 1], [], []>} : vector<32x128xf32>, vector<128x256xf32>, vector<32x256xf32> -> vector<32x256xf32>
      %41 = arith.truncf %40 : vector<32x256xf32> to vector<32x256xbf16>
      %c0_22 = arith.constant 0 : index
      %c0_23 = arith.constant 0 : index
      %42 = vector.load %arg8[%c0_22, %c0_23] : memref<32x256xbf16, #tpu.memory_space<vmem>>, vector<32x256xbf16>
      tpu.vector_store %arg8[%c0_22, %c0_23], %41 {strides = array<i32>} : memref<32x256xbf16, #tpu.memory_space<vmem>>, vector<32x256xbf16>,
    } else {
    }
    %c0 = arith.constant 0 : index
    %c0_1 = arith.constant 0 : index
    %c0_2 = arith.constant 0 : index
    %3 = vector.load %arg2[%c0, %c0_1, %c0_2] : memref<1x8x32xi32, #tpu.memory_space<vmem>>, vector<1x8x32xi32>
    %4 = vector.shape_cast %3 : vector<1x8x32xi32> to vector<8x32xi32>
    %5 = tpu.iota {dimensions = array<i32: 2>} : vector<8x32x32xi32>
    %6 = vector.shape_cast %4 : vector<8x32xi32> to vector<8x32x1xi32>
    %7 = vector.broadcast %6 : vector<8x32x1xi32> to vector<8x32x32xi32>
    %8 = arith.cmpi eq, %5, %7 : vector<8x32x32xi32>
    %9 = arith.extui %8 : vector<8x32x32xi1> to vector<8x32x32xi32>
    %10 = arith.sitofp %9 : vector<8x32x32xi32> to vector<8x32x32xf32>
    %11 = arith.truncf %10 : vector<8x32x32xf32> to vector<8x32x32xbf16>
    %12 = vector.shape_cast %11 : vector<8x32x32xbf16> to vector<256x32xbf16>
    %c0_3 = arith.constant 0 : index
    %c0_4 = arith.constant 0 : index
    %13 = vector.load %arg8[%c0_3, %c0_4] : memref<32x256xbf16, #tpu.memory_space<vmem>>, vector<32x256xbf16>
    %cst = arith.constant dense<0.000000e+00> : vector<256x256xf32>
    %14 = tpu.matmul %12, %13, %cst {dimension_numbers = #tpu.dot_dimension_numbers<[1], [0], [0], [1], [0, 0, 1, 1], [], []>} : vector<256x32xbf16>, vector<32x256xbf16>, vector<256x256xf32> -> vector<256x256xf32>
    %15 = vector.shape_cast %14 : vector<256x256xf32> to vector<8x32x256xf32>
    %cst_5 = arith.constant dense<0xFF800000> : vector<32x256xf32>
    %16 = vector.multi_reduction <maximumf>, %15, %cst_5 [0] : vector<8x32x256xf32> to vector<32x256xf32>
    %c32_i32 = arith.constant 32 : i32
    %17 = arith.muli %arg1, %c32_i32 : i32
    %18 = tpu.assume_multiple %17, 32 : i32
    %19 = arith.index_cast %18 : i32 to index
    %c0_6 = arith.constant 0 : index
    %20 = vector.load %arg8[%19, %c0_6] : memref<32x256xbf16, #tpu.memory_space<vmem>>, vector<32x256xbf16>
    %21 = arith.extf %20 : vector<32x256xbf16> to vector<32x256xf32>
    %22 = arith.subf %16, %21 : vector<32x256xf32>
    %c0_7 = arith.constant 0 : index
    %c0_8 = arith.constant 0 : index
    %23 = vector.load %arg5[%c0_7, %c0_8] : memref<1x256xf32, #tpu.memory_space<vmem>>, vector<1x256xf32>
    %24 = vector.broadcast %23 : vector<1x256xf32> to vector<32x256xf32>
    %25 = arith.mulf %22, %24 : vector<32x256xf32>
    %c0_9 = arith.constant 0 : index
    %c0_10 = arith.constant 0 : index
    %26 = vector.load %arg6[%c0_9, %c0_10] : memref<1x256xf32, #tpu.memory_space<vmem>>, vector<1x256xf32>
    %27 = vector.broadcast %26 : vector<1x256xf32> to vector<32x256xf32>
    %28 = arith.addf %25, %27 : vector<32x256xf32>
    %cst_11 = arith.constant 0.000000e+00 : f32
    %29 = vector.broadcast %cst_11 : f32 to vector<32x256xf32>
    %30 = arith.cmpf ogt, %28, %29 : vector<32x256xf32>
    %cst_12 = arith.constant 2.000000e-01 : f32
    %31 = vector.broadcast %cst_12 : f32 to vector<32x256xf32>
    %32 = arith.mulf %31, %28 : vector<32x256xf32>
    %33 = arith.select %30, %28, %32 : vector<32x256xi1>, vector<32x256xf32>
    %c0_13 = arith.constant 0 : index
    %c0_14 = arith.constant 0 : index
    %c0_15 = arith.constant 0 : index
    %34 = vector.load %arg7[%c0_13, %c0_14, %c0_15] : memref<1x32x256xf32, #tpu.memory_space<vmem>>, vector<1x32x256xf32>
    %35 = vector.shape_cast %34 : vector<1x32x256xf32> to vector<32x256xf32>
    %36 = vector.shape_cast %33 : vector<32x256xf32> to vector<1x32x256xf32>
    tpu.vector_store %arg7[%c0_13, %c0_14, %c0_15], %36 {strides = array<i32>} : memref<1x32x256xf32, #tpu.memory_space<vmem>>, vector<1x32x256xf32>,
    return
  }
  func.func @transform_0(%arg0: i32, %arg1: i32) -> (i32, i32, i32) {
    %c0_i32 = arith.constant 0 : i32
    %c0_i32_0 = arith.constant 0 : i32
    return %arg0, %c0_i32, %arg1 : i32, i32, i32
  }
  func.func @transform_1(%arg0: i32, %arg1: i32) -> (i32, i32, i32) {
    %c0_i32 = arith.constant 0 : i32
    %c0_i32_0 = arith.constant 0 : i32
    %c0_i32_1 = arith.constant 0 : i32
    return %arg0, %c0_i32, %c0_i32_0 : i32, i32, i32
  }
  func.func @transform_2(%arg0: i32, %arg1: i32) -> (i32, i32) {
    %c0_i32 = arith.constant 0 : i32
    %c0_i32_0 = arith.constant 0 : i32
    %c0_i32_1 = arith.constant 0 : i32
    return %c0_i32, %c0_i32_0 : i32, i32
  }
  func.func @transform_3(%arg0: i32, %arg1: i32) -> (i32, i32) {
    %c0_i32 = arith.constant 0 : i32
    %c0_i32_0 = arith.constant 0 : i32
    %c0_i32_1 = arith.constant 0 : i32
    return %c0_i32, %c0_i32_0 : i32, i32
  }
  func.func @transform_4(%arg0: i32, %arg1: i32) -> (i32, i32) {
    %c0_i32 = arith.constant 0 : i32
    %c0_i32_0 = arith.constant 0 : i32
    %c0_i32_1 = arith.constant 0 : i32
    return %c0_i32, %c0_i32_0 : i32, i32
  }
  func.func @transform_5(%arg0: i32, %arg1: i32) -> (i32, i32, i32) {
    %c0_i32 = arith.constant 0 : i32
    %c0_i32_0 = arith.constant 0 : i32
    return %arg0, %arg1, %c0_i32 : i32, i32, i32
  }
}

module attributes {stable_mosaic.version = 11 : i64} {
  func.func @head_kernel(%arg0: i32, %arg1: i32, %arg2: memref<1x32x64xf32, #tpu.memory_space<vmem>>, %arg3: memref<1x32x64xf32, #tpu.memory_space<vmem>>, %arg4: memref<1x32x128xf32, #tpu.memory_space<vmem>>, %arg5: memref<1x32x256xf32, #tpu.memory_space<vmem>>, %arg6: memref<64x256xf32, #tpu.memory_space<vmem>>, %arg7: memref<64x256xf32, #tpu.memory_space<vmem>>, %arg8: memref<128x256xf32, #tpu.memory_space<vmem>>, %arg9: memref<256x256xf32, #tpu.memory_space<vmem>>, %arg10: memref<1x256xf32, #tpu.memory_space<vmem>>, %arg11: memref<1x256xf32, #tpu.memory_space<vmem>>, %arg12: memref<256x128xf32, #tpu.memory_space<vmem>>, %arg13: memref<1x128xf32, #tpu.memory_space<vmem>>, %arg14: memref<1x128xf32, #tpu.memory_space<vmem>>, %arg15: memref<1x128xf32, #tpu.memory_space<vmem>>, %arg16: memref<1x1x32xf32, #tpu.memory_space<vmem>>) attributes {dimension_semantics = [#tpu.dimension_semantics<parallel>, #tpu.dimension_semantics<parallel>], iteration_bounds = array<i64: 2, 1>, scalar_prefetch = 0 : i64, scratch_operands = 0 : i64, tpu.core_type = #tpu.core_type<tc>, window_params = [{transform_indices = @transform_0, window_bounds = array<i64: 1, 32, 64>}, {transform_indices = @transform_1, window_bounds = array<i64: 1, 32, 64>}, {transform_indices = @transform_2, window_bounds = array<i64: 1, 32, 128>}, {transform_indices = @transform_3, window_bounds = array<i64: 1, 32, 256>}, {pipeline_mode = #tpu.pipeline_mode<synchronous>, transform_indices = @transform_4, window_bounds = array<i64: 64, 256>}, {pipeline_mode = #tpu.pipeline_mode<synchronous>, transform_indices = @transform_5, window_bounds = array<i64: 64, 256>}, {pipeline_mode = #tpu.pipeline_mode<synchronous>, transform_indices = @transform_6, window_bounds = array<i64: 128, 256>}, {pipeline_mode = #tpu.pipeline_mode<synchronous>, transform_indices = @transform_7, window_bounds = array<i64: 256, 256>}, {pipeline_mode = #tpu.pipeline_mode<synchronous>, transform_indices = @transform_8, window_bounds = array<i64: 1, 256>}, {pipeline_mode = #tpu.pipeline_mode<synchronous>, transform_indices = @transform_9, window_bounds = array<i64: 1, 256>}, {pipeline_mode = #tpu.pipeline_mode<synchronous>, transform_indices = @transform_10, window_bounds = array<i64: 256, 128>}, {pipeline_mode = #tpu.pipeline_mode<synchronous>, transform_indices = @transform_11, window_bounds = array<i64: 1, 128>}, {pipeline_mode = #tpu.pipeline_mode<synchronous>, transform_indices = @transform_12, window_bounds = array<i64: 1, 128>}, {pipeline_mode = #tpu.pipeline_mode<synchronous>, transform_indices = @transform_13, window_bounds = array<i64: 1, 128>}, {transform_indices = @transform_14, window_bounds = array<i64: 1, 1, 32>}]} {
    %c0 = arith.constant 0 : index
    %c0_0 = arith.constant 0 : index
    %c0_1 = arith.constant 0 : index
    %0 = vector.load %arg2[%c0, %c0_0, %c0_1] : memref<1x32x64xf32, #tpu.memory_space<vmem>>, vector<1x32x64xf32>
    %1 = vector.shape_cast %0 : vector<1x32x64xf32> to vector<32x64xf32>
    %c0_2 = arith.constant 0 : index
    %c0_3 = arith.constant 0 : index
    %2 = vector.load %arg6[%c0_2, %c0_3] : memref<64x256xf32, #tpu.memory_space<vmem>>, vector<64x256xf32>
    %cst = arith.constant dense<0.000000e+00> : vector<32x256xf32>
    %3 = tpu.matmul %1, %2, %cst {dimension_numbers = #tpu.dot_dimension_numbers<[1], [0], [0], [1], [0, 0, 1, 1], [], []>} : vector<32x64xf32>, vector<64x256xf32>, vector<32x256xf32> -> vector<32x256xf32>
    %c0_4 = arith.constant 0 : index
    %c0_5 = arith.constant 0 : index
    %c0_6 = arith.constant 0 : index
    %4 = vector.load %arg3[%c0_4, %c0_5, %c0_6] : memref<1x32x64xf32, #tpu.memory_space<vmem>>, vector<1x32x64xf32>
    %5 = vector.shape_cast %4 : vector<1x32x64xf32> to vector<32x64xf32>
    %c0_7 = arith.constant 0 : index
    %c0_8 = arith.constant 0 : index
    %6 = vector.load %arg7[%c0_7, %c0_8] : memref<64x256xf32, #tpu.memory_space<vmem>>, vector<64x256xf32>
    %cst_9 = arith.constant dense<0.000000e+00> : vector<32x256xf32>
    %7 = tpu.matmul %5, %6, %cst_9 {dimension_numbers = #tpu.dot_dimension_numbers<[1], [0], [0], [1], [0, 0, 1, 1], [], []>} : vector<32x64xf32>, vector<64x256xf32>, vector<32x256xf32> -> vector<32x256xf32>
    %8 = arith.addf %3, %7 : vector<32x256xf32>
    %c0_10 = arith.constant 0 : index
    %c0_11 = arith.constant 0 : index
    %c0_12 = arith.constant 0 : index
    %9 = vector.load %arg4[%c0_10, %c0_11, %c0_12] : memref<1x32x128xf32, #tpu.memory_space<vmem>>, vector<1x32x128xf32>
    %10 = vector.shape_cast %9 : vector<1x32x128xf32> to vector<32x128xf32>
    %c0_13 = arith.constant 0 : index
    %c0_14 = arith.constant 0 : index
    %11 = vector.load %arg8[%c0_13, %c0_14] : memref<128x256xf32, #tpu.memory_space<vmem>>, vector<128x256xf32>
    %cst_15 = arith.constant dense<0.000000e+00> : vector<32x256xf32>
    %12 = tpu.matmul %10, %11, %cst_15 {dimension_numbers = #tpu.dot_dimension_numbers<[1], [0], [0], [1], [0, 0, 1, 1], [], []>} : vector<32x128xf32>, vector<128x256xf32>, vector<32x256xf32> -> vector<32x256xf32>
    %13 = arith.addf %8, %12 : vector<32x256xf32>
    %c0_16 = arith.constant 0 : index
    %c0_17 = arith.constant 0 : index
    %c0_18 = arith.constant 0 : index
    %14 = vector.load %arg5[%c0_16, %c0_17, %c0_18] : memref<1x32x256xf32, #tpu.memory_space<vmem>>, vector<1x32x256xf32>
    %15 = vector.shape_cast %14 : vector<1x32x256xf32> to vector<32x256xf32>
    %c0_19 = arith.constant 0 : index
    %c0_20 = arith.constant 0 : index
    %16 = vector.load %arg9[%c0_19, %c0_20] : memref<256x256xf32, #tpu.memory_space<vmem>>, vector<256x256xf32>
    %cst_21 = arith.constant dense<0.000000e+00> : vector<32x256xf32>
    %17 = tpu.matmul %15, %16, %cst_21 {dimension_numbers = #tpu.dot_dimension_numbers<[1], [0], [0], [1], [0, 0, 1, 1], [], []>} : vector<32x256xf32>, vector<256x256xf32>, vector<32x256xf32> -> vector<32x256xf32>
    %18 = arith.addf %13, %17 : vector<32x256xf32>
    %c0_22 = arith.constant 0 : index
    %c0_23 = arith.constant 0 : index
    %19 = vector.load %arg10[%c0_22, %c0_23] : memref<1x256xf32, #tpu.memory_space<vmem>>, vector<1x256xf32>
    %20 = vector.broadcast %19 : vector<1x256xf32> to vector<32x256xf32>
    %21 = arith.mulf %18, %20 : vector<32x256xf32>
    %c0_24 = arith.constant 0 : index
    %c0_25 = arith.constant 0 : index
    %22 = vector.load %arg11[%c0_24, %c0_25] : memref<1x256xf32, #tpu.memory_space<vmem>>, vector<1x256xf32>
    %23 = vector.broadcast %22 : vector<1x256xf32> to vector<32x256xf32>
    %24 = arith.addf %21, %23 : vector<32x256xf32>
    %cst_26 = arith.constant 0.000000e+00 : f32
    %25 = vector.broadcast %cst_26 : f32 to vector<32x256xf32>
    %26 = arith.cmpf ogt, %24, %25 : vector<32x256xf32>
    %cst_27 = arith.constant 2.000000e-01 : f32
    %27 = vector.broadcast %cst_27 : f32 to vector<32x256xf32>
    %28 = arith.mulf %27, %24 : vector<32x256xf32>
    %29 = arith.select %26, %24, %28 : vector<32x256xi1>, vector<32x256xf32>
    %c0_28 = arith.constant 0 : index
    %c0_29 = arith.constant 0 : index
    %30 = vector.load %arg12[%c0_28, %c0_29] : memref<256x128xf32, #tpu.memory_space<vmem>>, vector<256x128xf32>
    %cst_30 = arith.constant dense<0.000000e+00> : vector<32x128xf32>
    %31 = tpu.matmul %29, %30, %cst_30 {dimension_numbers = #tpu.dot_dimension_numbers<[1], [0], [0], [1], [0, 0, 1, 1], [], []>} : vector<32x256xf32>, vector<256x128xf32>, vector<32x128xf32> -> vector<32x128xf32>
    %c0_31 = arith.constant 0 : index
    %c0_32 = arith.constant 0 : index
    %32 = vector.load %arg13[%c0_31, %c0_32] : memref<1x128xf32, #tpu.memory_space<vmem>>, vector<1x128xf32>
    %33 = vector.broadcast %32 : vector<1x128xf32> to vector<32x128xf32>
    %34 = arith.mulf %31, %33 : vector<32x128xf32>
    %c0_33 = arith.constant 0 : index
    %c0_34 = arith.constant 0 : index
    %35 = vector.load %arg14[%c0_33, %c0_34] : memref<1x128xf32, #tpu.memory_space<vmem>>, vector<1x128xf32>
    %36 = vector.broadcast %35 : vector<1x128xf32> to vector<32x128xf32>
    %37 = arith.addf %34, %36 : vector<32x128xf32>
    %cst_35 = arith.constant 0.000000e+00 : f32
    %38 = vector.broadcast %cst_35 : f32 to vector<32x128xf32>
    %39 = arith.cmpf ogt, %37, %38 : vector<32x128xf32>
    %cst_36 = arith.constant 2.000000e-01 : f32
    %40 = vector.broadcast %cst_36 : f32 to vector<32x128xf32>
    %41 = arith.mulf %40, %37 : vector<32x128xf32>
    %42 = arith.select %39, %37, %41 : vector<32x128xi1>, vector<32x128xf32>
    %c0_37 = arith.constant 0 : index
    %c0_38 = arith.constant 0 : index
    %43 = vector.load %arg15[%c0_37, %c0_38] : memref<1x128xf32, #tpu.memory_space<vmem>>, vector<1x128xf32>
    "tpu.trace_start"() <{level = 10 : i32, message = "od,nd->on"}> : () -> ()
    %cst_39 = arith.constant dense<0.000000e+00> : vector<1x32xf32>
    %44 = tpu.matmul %43, %42, %cst_39 {dimension_numbers = #tpu.dot_dimension_numbers<[1], [1], [0], [0], [0, 0, 1, 0], [], []>} : vector<1x128xf32>, vector<32x128xf32>, vector<1x32xf32> -> vector<1x32xf32>
    %cst_40 = arith.constant 0.000000e+00 : f32
    "tpu.trace_stop"() : () -> ()
    %45 = vector.broadcast %cst_40 : f32 to vector<1x32xf32>
    %46 = arith.cmpf ogt, %44, %45 : vector<1x32xf32>
    %cst_41 = arith.constant 2.000000e-01 : f32
    %47 = vector.broadcast %cst_41 : f32 to vector<1x32xf32>
    %48 = arith.mulf %47, %44 : vector<1x32xf32>
    %49 = arith.select %46, %44, %48 : vector<1x32xi1>, vector<1x32xf32>
    %c0_42 = arith.constant 0 : index
    %c0_43 = arith.constant 0 : index
    %c0_44 = arith.constant 0 : index
    %50 = vector.load %arg16[%c0_42, %c0_43, %c0_44] : memref<1x1x32xf32, #tpu.memory_space<vmem>>, vector<1x1x32xf32>
    %51 = vector.shape_cast %50 : vector<1x1x32xf32> to vector<1x32xf32>
    %52 = vector.shape_cast %49 : vector<1x32xf32> to vector<1x1x32xf32>
    tpu.vector_store %arg16[%c0_42, %c0_43, %c0_44], %52 {strides = array<i32>} : memref<1x1x32xf32, #tpu.memory_space<vmem>>, vector<1x1x32xf32>,
    return
  }
  func.func @transform_0(%arg0: i32, %arg1: i32) -> (i32, i32, i32) {
    %c0_i32 = arith.constant 0 : i32
    %c0_i32_0 = arith.constant 0 : i32
    return %arg0, %arg1, %c0_i32 : i32, i32, i32
  }
  func.func @transform_1(%arg0: i32, %arg1: i32) -> (i32, i32, i32) {
    %c0_i32 = arith.constant 0 : i32
    %c0_i32_0 = arith.constant 0 : i32
    return %arg0, %arg1, %c0_i32 : i32, i32, i32
  }
  func.func @transform_2(%arg0: i32, %arg1: i32) -> (i32, i32, i32) {
    %c0_i32 = arith.constant 0 : i32
    %c0_i32_0 = arith.constant 0 : i32
    return %arg0, %arg1, %c0_i32 : i32, i32, i32
  }
  func.func @transform_3(%arg0: i32, %arg1: i32) -> (i32, i32, i32) {
    %c0_i32 = arith.constant 0 : i32
    %c0_i32_0 = arith.constant 0 : i32
    return %arg0, %arg1, %c0_i32 : i32, i32, i32
  }
  func.func @transform_4(%arg0: i32, %arg1: i32) -> (i32, i32) {
    %c0_i32 = arith.constant 0 : i32
    %c0_i32_0 = arith.constant 0 : i32
    %c0_i32_1 = arith.constant 0 : i32
    return %c0_i32, %c0_i32_0 : i32, i32
  }
  func.func @transform_5(%arg0: i32, %arg1: i32) -> (i32, i32) {
    %c0_i32 = arith.constant 0 : i32
    %c0_i32_0 = arith.constant 0 : i32
    %c0_i32_1 = arith.constant 0 : i32
    return %c0_i32, %c0_i32_0 : i32, i32
  }
  func.func @transform_6(%arg0: i32, %arg1: i32) -> (i32, i32) {
    %c0_i32 = arith.constant 0 : i32
    %c0_i32_0 = arith.constant 0 : i32
    %c0_i32_1 = arith.constant 0 : i32
    return %c0_i32, %c0_i32_0 : i32, i32
  }
  func.func @transform_7(%arg0: i32, %arg1: i32) -> (i32, i32) {
    %c0_i32 = arith.constant 0 : i32
    %c0_i32_0 = arith.constant 0 : i32
    %c0_i32_1 = arith.constant 0 : i32
    return %c0_i32, %c0_i32_0 : i32, i32
  }
  func.func @transform_8(%arg0: i32, %arg1: i32) -> (i32, i32) {
    %c0_i32 = arith.constant 0 : i32
    %c0_i32_0 = arith.constant 0 : i32
    %c0_i32_1 = arith.constant 0 : i32
    return %c0_i32, %c0_i32_0 : i32, i32
  }
  func.func @transform_9(%arg0: i32, %arg1: i32) -> (i32, i32) {
    %c0_i32 = arith.constant 0 : i32
    %c0_i32_0 = arith.constant 0 : i32
    %c0_i32_1 = arith.constant 0 : i32
    return %c0_i32, %c0_i32_0 : i32, i32
  }
  func.func @transform_10(%arg0: i32, %arg1: i32) -> (i32, i32) {
    %c0_i32 = arith.constant 0 : i32
    %c0_i32_0 = arith.constant 0 : i32
    %c0_i32_1 = arith.constant 0 : i32
    return %c0_i32, %c0_i32_0 : i32, i32
  }
  func.func @transform_11(%arg0: i32, %arg1: i32) -> (i32, i32) {
    %c0_i32 = arith.constant 0 : i32
    %c0_i32_0 = arith.constant 0 : i32
    %c0_i32_1 = arith.constant 0 : i32
    return %c0_i32, %c0_i32_0 : i32, i32
  }
  func.func @transform_12(%arg0: i32, %arg1: i32) -> (i32, i32) {
    %c0_i32 = arith.constant 0 : i32
    %c0_i32_0 = arith.constant 0 : i32
    %c0_i32_1 = arith.constant 0 : i32
    return %c0_i32, %c0_i32_0 : i32, i32
  }
  func.func @transform_13(%arg0: i32, %arg1: i32) -> (i32, i32) {
    %c0_i32 = arith.constant 0 : i32
    %c0_i32_0 = arith.constant 0 : i32
    %c0_i32_1 = arith.constant 0 : i32
    return %c0_i32, %c0_i32_0 : i32, i32
  }
  func.func @transform_14(%arg0: i32, %arg1: i32) -> (i32, i32, i32) {
    %c0_i32 = arith.constant 0 : i32
    %c0_i32_0 = arith.constant 0 : i32
    return %arg0, %c0_i32, %arg1 : i32, i32, i32
  }
}

</mosaic_0001>

<llo_original>
// kernel: _lambda_.5
$region0: #{_lambda_.5}
  #allocation0 [shape = 'u32[]', space=smem, size = 0x4, offset = 0x4, fixed_abs, tag = 'smem constant byte address 0x4 - core index']
  #allocation1 [shape = 'u32[144,128]{1,0:T(1,128)}', space=vmem, size = 0x12000, scoped, tag = 'internal scratch']
  #allocation2 [shape = 'bf16[32,64]{1,0:T(16,128)(2,1)}', space=vmem, size = 0x2000, scoped, tag = 'scratch operand']
  %s0 = inlined_call_operand.vmem [shape: s32[2,8,32], index: 0, kind: input, shape index: {}]
  %s1 = inlined_call_operand.vmem [shape: f32[2,32,3], index: 1, kind: input, shape index: {}]
  %s2 = inlined_call_operand.vmem [shape: f32[3,64], index: 2, kind: input, shape index: {}]
  %s3 = inlined_call_operand.vmem [shape: f32[1,64], index: 3, kind: input, shape index: {}]
  %s4 = inlined_call_operand.vmem [shape: f32[1,64], index: 4, kind: input, shape index: {}]
  %s5 = inlined_call_operand.vmem [shape: f32[2,32,64], index: 5, kind: output, shape index: {}]
  %s6 = sld [smem:[#allocation0]]
  $region57: #{_lambda_.5} parent=0
    _
  %s8 = ssub.s32 1, %s6
  %s9 = scalar_select 0, %s8, %s6
  loop: start=0, step=1, limit=4
  $region2: #{_lambda_.5} parent=0 // loop_pre_header
    _
  $region3: #{_lambda_.5} parent=0 // loop_header
    %s11 = sphi 0, %s15
    %p12 = scmp.ge.s32.totalorder %s11, 4
    %s18 = sphi 0, %s30
    %s19 = sphi 0, %s26
    %s20 = sphi 0, %s18
    %s21 = sphi 0, %s19
    %s22 = sphi 0, %s20
    %s23 = sphi 0, %s21
    %s35 = sphi 0, %s37
    %s38 = sphi 0, %s35
    %s39 = sphi 0, %s38
    %s55 = sphi 0, %s39
    %s61 = sphi 0, %s63
    %s64 = sphi 0, %s61
    %s65 = sphi 0, %s64
    %s81 = sphi 0, %s65
    %s85 = sphi 0, %s85
    %s87 = sphi 0, %s85
    %s88 = sphi 0, %s87
    %s102 = sphi 0, %s88
    %s106 = sphi 0, %s106
    %s108 = sphi 0, %s106
    %s109 = sphi 0, %s108
    %s123 = sphi 0, %s109
    %s127 = sphi 0, %s127
    %s129 = sphi 0, %s127
    %s130 = sphi 0, %s129
    %s144 = sphi 0, %s130
    %s152 = sphi 0, %s154
    %s155 = sphi 0, %s152
    %s156 = sphi 0, %s155
    %s172 = sphi 0, %s156
  $region4: #{_lambda_.5} parent=0 // loop_header_branch
    %14 = sbr.rel (%p12) target = $region8
  $region5: #{_lambda_.5} parent=0 // loop_body
    %s16 = ssub.s32 %s11, 1
    %s17 = ssub.s32 %s11, 2
    %s24 = sadd.s32 1, %s19
    %p25 = scmp.ge.s32.totalorder %s24, 1
    %s26 = scalar_select %p25, 0, %s24
    %s27 = sadd.s32 1, %s18
    %s28 = scalar_select %p25, %s27, %s18
    %p29 = scmp.ge.s32.totalorder %s28, 2
    %s30 = scalar_select %p29, 0, %s28
    %s31 = ssub.s32 %s18, %s30
    %s32 = ssub.s32 %s19, %s26
    %s33 = sor.u32 %s31, %s32
    %p34 = scmp.eq.s32.totalorder %s33, 0
    %s36 = sadd.s32 %s35, 1
    %s37 = scalar_select %p34, %s35, %s36
    %p40 = pneg %p34
    %p41 = scmp.eq.s32.totalorder %s11, 1
    %p42 = por %p40, %p41
    %p43 = scmp.ne.s32.totalorder %s35, %s38
    %p44 = scmp.eq.s32.totalorder %s11, 0
    %p45 = por %p43, %p44
    %p46 = scmp.ne.s32.totalorder %s35, %s38
    %p47 = scmp.eq.s32.totalorder %s16, 1
    %p48 = por %p46, %p47
    %p49 = scmp.ne.s32.totalorder %s38, %s39
    %p50 = scmp.eq.s32.totalorder %s16, 0
    %p51 = por %p49, %p50
    %p52 = scmp.ne.s32.totalorder %s38, %s39
    %p53 = scmp.eq.s32.totalorder %s17, 1
    %p54 = por %p52, %p53
    %p56 = scmp.ne.s32.totalorder %s39, %s55
    %p57 = scmp.eq.s32.totalorder %s17, 0
    %p58 = por %p56, %p57
    %s59 = ssub.s32 %s18, %s30
    %p60 = scmp.eq.s32.totalorder %s59, 0
    %s62 = sadd.s32 %s61, 1
    %s63 = scalar_select %p60, %s61, %s62
    %p66 = pneg %p60
    %p67 = scmp.eq.s32.totalorder %s11, 1
    %p68 = por %p66, %p67
    %p69 = scmp.ne.s32.totalorder %s61, %s64
    %p70 = scmp.eq.s32.totalorder %s11, 0
    %p71 = por %p69, %p70
    %p72 = scmp.ne.s32.totalorder %s61, %s64
    %p73 = scmp.eq.s32.totalorder %s16, 1
    %p74 = por %p72, %p73
    %p75 = scmp.ne.s32.totalorder %s64, %s65
    %p76 = scmp.eq.s32.totalorder %s16, 0
    %p77 = por %p75, %p76
    %p78 = scmp.ne.s32.totalorder %s64, %s65
    %p79 = scmp.eq.s32.totalorder %s17, 1
    %p80 = por %p78, %p79
    %p82 = scmp.ne.s32.totalorder %s65, %s81
    %p83 = scmp.eq.s32.totalorder %s17, 0
    %p84 = por %p82, %p83
    %s86 = sadd.s32 %s85, 1
    %p89 = scmp.eq.s32.totalorder %s11, 1
    %p90 = scmp.ne.s32.totalorder %s85, %s87
    %p91 = scmp.eq.s32.totalorder %s11, 0
    %p92 = por %p90, %p91
    %p93 = scmp.ne.s32.totalorder %s85, %s87
    %p94 = scmp.eq.s32.totalorder %s16, 1
    %p95 = por %p93, %p94
    %p96 = scmp.ne.s32.totalorder %s87, %s88
    %p97 = scmp.eq.s32.totalorder %s16, 0
    %p98 = por %p96, %p97
    %p99 = scmp.ne.s32.totalorder %s87, %s88
    %p100 = scmp.eq.s32.totalorder %s17, 1
    %p101 = por %p99, %p100
    %p103 = scmp.ne.s32.totalorder %s88, %s102
    %p104 = scmp.eq.s32.totalorder %s17, 0
    %p105 = por %p103, %p104
    %s107 = sadd.s32 %s106, 1
    %p110 = scmp.eq.s32.totalorder %s11, 1
    %p111 = scmp.ne.s32.totalorder %s106, %s108
    %p112 = scmp.eq.s32.totalorder %s11, 0
    %p113 = por %p111, %p112
    %p114 = scmp.ne.s32.totalorder %s106, %s108
    %p115 = scmp.eq.s32.totalorder %s16, 1
    %p116 = por %p114, %p115
    %p117 = scmp.ne.s32.totalorder %s108, %s109
    %p118 = scmp.eq.s32.totalorder %s16, 0
    %p119 = por %p117, %p118
    %p120 = scmp.ne.s32.totalorder %s108, %s109
    %p121 = scmp.eq.s32.totalorder %s17, 1
    %p122 = por %p120, %p121
    %p124 = scmp.ne.s32.totalorder %s109, %s123
    %p125 = scmp.eq.s32.totalorder %s17, 0
    %p126 = por %p124, %p125
    %s128 = sadd.s32 %s127, 1
    %p131 = scmp.eq.s32.totalorder %s11, 1
    %p132 = scmp.ne.s32.totalorder %s127, %s129
    %p133 = scmp.eq.s32.totalorder %s11, 0
    %p134 = por %p132, %p133
    %p135 = scmp.ne.s32.totalorder %s127, %s129
    %p136 = scmp.eq.s32.totalorder %s16, 1
    %p137 = por %p135, %p136
    %p138 = scmp.ne.s32.totalorder %s129, %s130
    %p139 = scmp.eq.s32.totalorder %s16, 0
    %p140 = por %p138, %p139
    %p141 = scmp.ne.s32.totalorder %s129, %s130
    %p142 = scmp.eq.s32.totalorder %s17, 1
    %p143 = por %p141, %p142
    %p145 = scmp.ne.s32.totalorder %s130, %s144
    %p146 = scmp.eq.s32.totalorder %s17, 0
    %p147 = por %p145, %p146
    %s148 = ssub.s32 %s18, %s30
    %s149 = ssub.s32 %s19, %s26
    %s150 = sor.u32 %s148, %s149
    %p151 = scmp.eq.s32.totalorder %s150, 0
    %s153 = sadd.s32 %s152, 1
    %s154 = scalar_select %p151, %s152, %s153
    %p157 = pneg %p151
    %p158 = scmp.eq.s32.totalorder %s11, 1
    %p159 = por %p157, %p158
    %p160 = scmp.ne.s32.totalorder %s152, %s155
    %p161 = scmp.eq.s32.totalorder %s11, 0
    %p162 = por %p160, %p161
    %p163 = scmp.ne.s32.totalorder %s152, %s155
    %p164 = scmp.eq.s32.totalorder %s16, 1
    %p165 = por %p163, %p164
    %p166 = scmp.ne.s32.totalorder %s155, %s156
    %p167 = scmp.eq.s32.totalorder %s16, 0
    %p168 = por %p166, %p167
    %p169 = scmp.ne.s32.totalorder %s155, %s156
    %p170 = scmp.eq.s32.totalorder %s17, 1
    %p171 = por %p169, %p170
    %p173 = scmp.ne.s32.totalorder %s156, %s172
    %p174 = scmp.eq.s32.totalorder %s17, 0
    %p175 = por %p173, %p174
    %p176 = scmp.le.s32.totalorder 1, %s11
    %p177 = scmp.lt.s32.totalorder %s11, 3
    %p178 = pnand %p176, %p177
    %p179 = pneg %p178
    // Predicated region
    $region9: #{_lambda_.5} parent=5 // pred_check
      _
    $region10: #{_lambda_.5} parent=5 // pred_check_branch
      %181 = sbr.rel (%p178) target = $region12
    $region11: #{_lambda_.5} parent=5 // pred_region
      %s182 = ssub.s32 %s11, 1
      // Predicated region
      $region13: #{_lambda_.5} parent=11 // pred_check
        %p183 = pneg %p98
      $region14: #{_lambda_.5} parent=11 // pred_check_branch
        %185 = sbr.rel (%p183) target = $region16
      $region15: #{_lambda_.5} parent=11 // pred_region
        _
      $region16: #{_lambda_.5} parent=11 // pred_fallthru
        _
      // Predicated region
      $region17: #{_lambda_.5} parent=11 // pred_check
        %p186 = pneg %p119
      $region18: #{_lambda_.5} parent=11 // pred_check_branch
        %188 = sbr.rel (%p186) target = $region20
      $region19: #{_lambda_.5} parent=11 // pred_region
        _
      $region20: #{_lambda_.5} parent=11 // pred_fallthru
        _
      // Predicated region
      $region21: #{_lambda_.5} parent=11 // pred_check
        %p189 = pneg %p140
      $region22: #{_lambda_.5} parent=11 // pred_check_branch
        %191 = sbr.rel (%p189) target = $region24
      $region23: #{_lambda_.5} parent=11 // pred_region
        _
      $region24: #{_lambda_.5} parent=11 // pred_fallthru
        _
    $region12: #{_lambda_.5} parent=5 // pred_fallthru
      _
    %p192 = scmp.lt.s32.totalorder %s11, 2
    // Predicated region
    $region25: #{_lambda_.5} parent=5 // pred_check
      %p193 = pneg %p192
    $region26: #{_lambda_.5} parent=5 // pred_check_branch
      %195 = sbr.rel (%p193) target = $region28
    $region27: #{_lambda_.5} parent=5 // pred_region
      // Predicated region
      $region29: #{_lambda_.5} parent=27 // pred_check
        %p196 = pneg %p45
      $region30: #{_lambda_.5} parent=27 // pred_check_branch
        %198 = sbr.rel (%p196) target = $region32
      $region31: #{_lambda_.5} parent=27 // pred_region
        %p199 = scmp.lt.s32.totalorder %s18, 1
        %s200 = scalar_select %p199, %s18, 1
        %p201 = scmp.lt.s32.totalorder %s19, 0
        %s202 = scalar_select %p201, %s19, 0
        %s203 = sadd.s32 %s202, %s200
        %s204 = smul.addr %s203, 8
        %s205 = scalar_lea.vmem %s0, %s204
      $region32: #{_lambda_.5} parent=27 // pred_fallthru
        _
      // Predicated region
      $region33: #{_lambda_.5} parent=27 // pred_check
        %p206 = pneg %p71
      $region34: #{_lambda_.5} parent=27 // pred_check_branch
        %208 = sbr.rel (%p206) target = $region36
      $region35: #{_lambda_.5} parent=27 // pred_region
        %p209 = scmp.lt.s32.totalorder %s18, 1
        %s210 = scalar_select %p209, %s18, 1
        %s211 = smul.addr %s210, 4
        %s212 = smul.addr %s211, 8
        %s213 = scalar_lea.vmem %s1, %s212
      $region36: #{_lambda_.5} parent=27 // pred_fallthru
        _
    $region28: #{_lambda_.5} parent=5 // pred_fallthru
      _
    %p214 = scmp.le.s32.totalorder 1, %s11
    %p215 = scmp.lt.s32.totalorder %s11, 3
    %p216 = pnand %p214, %p215
    %p217 = pneg %p216
    // Predicated region
    $region37: #{_lambda_.5} parent=5 // pred_check
      _
    $region38: #{_lambda_.5} parent=5 // pred_check_branch
      %219 = sbr.rel (%p216) target = $region40
    $region39: #{_lambda_.5} parent=5 // pred_region
      %s220 = ssub.s32 %s11, 1
      %p221 = scmp.lt.s32.totalorder %s20, 1
      %s222 = scalar_select %p221, %s20, 1
      %p223 = scmp.lt.s32.totalorder %s21, 0
      %s224 = scalar_select %p223, %s21, 0
      %s225 = sadd.s32 %s224, %s222
      %s226 = smul.addr %s225, 8
      %s227 = scalar_lea.vmem %s0, %s226
      %p228 = pneg %p51
      %p229 = pneg %p48
      %p230 = scmp.lt.s32.totalorder %s20, 1
      %s231 = scalar_select %p230, %s20, 1
      %s232 = smul.addr %s231, 4
      %s233 = smul.addr %s232, 8
      %s234 = scalar_lea.vmem %s1, %s233
      %p235 = pneg %p77
      %p236 = pneg %p74
      %p237 = pneg %p98
      %p238 = pneg %p95
      %p239 = pneg %p119
      %p240 = pneg %p116
      %p241 = pneg %p140
      %p242 = pneg %p137
      %p243 = pneg %p168
      %p244 = pneg %p165
      %s245 = smul.u32 4, %s21
      %p246 = scmp.lt.s32.totalorder %s20, 1
      %s247 = scalar_select %p246, %s20, 1
      %p248 = scmp.lt.s32.totalorder %s245, 3
      %s249 = scalar_select %p248, %s245, 3
      %s250 = smul.addr %s247, 4
      %s251 = sadd.s32 %s249, %s250
      %s252 = smul.addr %s251, 8
      %s253 = scalar_lea.vmem %s5, %s252
      %p254 = scmp.lt.s32.totalorder %s20, 1
      %s255 = scalar_select %p254, %s20, 1
      %p256 = scmp.lt.s32.totalorder %s21, 0
      %s257 = scalar_select %p256, %s21, 0
      %s258 = sadd.s32 %s257, %s255
      %s259 = smul.addr %s258, 8
      %s260 = scalar_lea.vmem %s0, %s259
      %p261 = scmp.lt.s32.totalorder %s20, 1
      %s262 = scalar_select %p261, %s20, 1
      %s263 = smul.addr %s262, 4
      %s264 = smul.addr %s263, 8
      %s265 = scalar_lea.vmem %s1, %s264
      %s266 = smul.u32 4, %s21
      %p267 = scmp.lt.s32.totalorder %s20, 1
      %s268 = scalar_select %p267, %s20, 1
      %p269 = scmp.lt.s32.totalorder %s266, 3
      %s270 = scalar_select %p269, %s266, 3
      %s271 = smul.addr %s268, 4
      %s272 = sadd.s32 %s270, %s271
      %s273 = smul.addr %s272, 8
      %s274 = scalar_lea.vmem %s5, %s273
      %s275 = smul.u32 4, %s21
      %p277 = scmp.eq.s32.totalorder %s21, 0
      // Predicated region
      $region41: #{_lambda_.5} parent=39 // pred_check
        %p278 = pneg %p277
      $region42: #{_lambda_.5} parent=39 // pred_check_branch
        %280 = sbr.rel (%p278) target = $region44
      $region43: #{_lambda_.5} parent=39 // pred_region
        %v281 = vld [vmem:[%s265] sm:$0xff]
        %v282 = vld [vmem:[%s265 + $0x8] sm:$0xff]
        %v283 = vld [vmem:[%s265 + $0x10] sm:$0xff]
        %v284 = vld [vmem:[%s265 + $0x18] sm:$0xff]
        %v285 = vld [vmem:[%s2] sm:$0x7]
        %vm286 = vcmask 23552
        %v288 = vsel %vm286, %v281, 0
        %v291 = vsel %vm286, %v282, 0
        %v294 = vsel %vm286, %v283, 0
        %v297 = vsel %vm286, %v284, 0
        %vm299 = vcmask 1042432
        %v301 = vsel %vm299, %v285, 0
        %303 = vmatprep.subr.mxu0 0.0
        %304 = vmatpush1.msra.mxu0 %v301
        %305 = vmatprep.subr.mxu0 0.0
        %306 = vmatpush1.msra.mxu0 0.0
        %307 = vmatprep.subr.mxu0 0.0
        %308 = vmatpush1.msra.mxu0 0.0
        %309 = vmatprep.subr.mxu0 0.0
        %310 = vmatpush1.msra.mxu0 0.0
        %311 = vmatprep.subr.mxu0 0.0
        %312 = vmatpush1.msra.mxu0 0.0
        %313 = vmatprep.subr.mxu0 0.0
        %314 = vmatpush1.msra.mxu0 0.0
        %315 = vmatprep.subr.mxu0 0.0
        %316 = vmatpush1.msra.mxu0 0.0
        %317 = vmatprep.subr.mxu0 0.0
        %318 = vmatpush1.msra.mxu0 0.0
        %319 = vmatprep.subr.mxu0 0.0
        %320 = vmatpush1.msra.mxu0 0.0
        %321 = vmatprep.subr.mxu0 0.0
        %322 = vmatpush1.msra.mxu0 0.0
        %323 = vmatprep.subr.mxu0 0.0
        %324 = vmatpush1.msra.mxu0 0.0
        %325 = vmatprep.subr.mxu0 0.0
        %326 = vmatpush1.msra.mxu0 0.0
        %327 = vmatprep.subr.mxu0 0.0
        %328 = vmatpush1.msra.mxu0 0.0
        %329 = vmatprep.subr.mxu0 0.0
        %330 = vmatpush1.msra.mxu0 0.0
        %331 = vmatprep.subr.mxu0 0.0
        %332 = vmatpush1.msra.mxu0 0.0
        %333 = vmatprep.subr.mxu0 0.0
        %334 = vmatpush1.msra.mxu0 0.0
        %335 = vmatprep.subr.mxu0 0.0
        %336 = vmatpush1.msra.mxu0 0.0
        %337 = vmatprep.subr.mxu0 0.0
        %338 = vmatpush1.msra.mxu0 0.0
        %339 = vmatprep.subr.mxu0 0.0
        %340 = vmatpush1.msra.mxu0 0.0
        %341 = vmatprep.subr.mxu0 0.0
        %342 = vmatpush1.msra.mxu0 0.0
        %343 = vmatprep.subr.mxu0 0.0
        %344 = vmatpush1.msra.mxu0 0.0
        %345 = vmatprep.subr.mxu0 0.0
        %346 = vmatpush1.msra.mxu0 0.0
        %347 = vmatprep.subr.mxu0 0.0
        %348 = vmatpush1.msra.mxu0 0.0
        %349 = vmatprep.subr.mxu0 0.0
        %350 = vmatpush1.msra.mxu0 0.0
        %351 = vmatprep.subr.mxu0 0.0
        %352 = vmatpush1.msra.mxu0 0.0
        %353 = vmatprep.subr.mxu0 0.0
        %354 = vmatpush1.msra.mxu0 0.0
        %355 = vmatprep.subr.mxu0 0.0
        %356 = vmatpush1.msra.mxu0 0.0
        %357 = vmatprep.subr.mxu0 0.0
        %358 = vmatpush1.msra.mxu0 0.0
        %359 = vmatprep.subr.mxu0 0.0
        %360 = vmatpush1.msra.mxu0 0.0
        %361 = vmatprep.subr.mxu0 0.0
        %362 = vmatpush1.msra.mxu0 0.0
        %363 = vmatprep.subr.mxu0 0.0
        %364 = vmatpush1.msra.mxu0 0.0
        %365 = vmatprep.subr.mxu0 0.0
        %366 = vmatpush1.msra.mxu0 0.0
        %367 = vmatprep.mubr.f32.mxu0 0.0
        %368 = vmatmul.mubr.f32.gmra.mrb[0].mxu0 %v288
        %v369 = vpop.f32.mrb[0].mxu0
        %v370 = vadd.f32 0.0, %v369
        %v371 = vpop.f32.mrb[0].mxu0
        %372 = vmatprep.mubr.f32.mxu0 0.0
        %373 = vmatmul.mubr.f32.gmra.mrb[0].mxu0 %v291
        %v374 = vpop.f32.mrb[0].mxu0
        %v375 = vadd.f32 0.0, %v374
        %v376 = vpop.f32.mrb[0].mxu0
        %377 = vmatprep.mubr.f32.mxu0 0.0
        %378 = vmatmul.mubr.f32.gmra.mrb[0].mxu0 %v294
        %v379 = vpop.f32.mrb[0].mxu0
        %v380 = vadd.f32 0.0, %v379
        %v381 = vpop.f32.mrb[0].mxu0
        %382 = vmatprep.mubr.f32.mxu0 0.0
        %383 = vmatmul.mubr.f32.gmra.mrb[0].mxu0 %v297
        %v384 = vpop.f32.mrb[0].mxu0
        %v385 = vadd.f32 0.0, %v384
        %v386 = vpop.f32.mrb[0].mxu0
        %387 = vdwg.mxu0
        %v388 = vpack.c.bf16 %v375, %v370
        %v389 = vpack.c.bf16 %v385, %v380
        %vm390 = vcmask 523264
        %391 = vst.msk [vmem:[#allocation2] sm:$0xff] %vm390, %v388
        %392 = vst.msk [vmem:[#allocation2 + $0x8] sm:$0xff] %vm390, %v389
      $region44: #{_lambda_.5} parent=39 // pred_fallthru
        _
      %v393 = vld [vmem:[%s260] sm:$0xff]
      %v394 = vlaneseq
      %v395 = vand.u32 %v394, 127
      %v396 = vlaneseq
      %v397 = vshrl.u32 %v396, 7
      %v398 = vsub.s32 0, %v397
      %v399 = vrot.slane %v393, %v398
      %401 = vbcast.lane.b32.xlu0 %v399, 256
      %v402 = vpop.permute.xlu0 %401
      %s404 = sor.u32 256, 8
      %405 = vbcast.lane.b32.xlu0 %v399, %s404
      %v406 = vpop.permute.xlu0 %405
      %s408 = sor.u32 256, 16
      %409 = vbcast.lane.b32.xlu0 %v399, %s408
      %v410 = vpop.permute.xlu0 %409
      %s412 = sor.u32 256, 24
      %413 = vbcast.lane.b32.xlu0 %v399, %s412
      %v414 = vpop.permute.xlu0 %413
      %v415 = vlaneseq
      %v416 = vshrl.u32 %v415, 7
      %v417 = vsub.s32 1, %v416
      %v418 = vrot.slane %v393, %v417
      %420 = vbcast.lane.b32.xlu0 %v418, 256
      %v421 = vpop.permute.xlu0 %420
      %s423 = sor.u32 256, 8
      %424 = vbcast.lane.b32.xlu0 %v418, %s423
      %v425 = vpop.permute.xlu0 %424
      %s427 = sor.u32 256, 16
      %428 = vbcast.lane.b32.xlu0 %v418, %s427
      %v429 = vpop.permute.xlu0 %428
      %s431 = sor.u32 256, 24
      %432 = vbcast.lane.b32.xlu0 %v418, %s431
      %v433 = vpop.permute.xlu0 %432
      %v434 = vlaneseq
      %v435 = vshrl.u32 %v434, 7
      %v436 = vsub.s32 2, %v435
      %v437 = vrot.slane %v393, %v436
      %439 = vbcast.lane.b32.xlu0 %v437, 256
      %v440 = vpop.permute.xlu0 %439
      %s442 = sor.u32 256, 8
      %443 = vbcast.lane.b32.xlu0 %v437, %s442
      %v444 = vpop.permute.xlu0 %443
      %s446 = sor.u32 256, 16
      %447 = vbcast.lane.b32.xlu0 %v437, %s446
      %v448 = vpop.permute.xlu0 %447
      %s450 = sor.u32 256, 24
      %451 = vbcast.lane.b32.xlu0 %v437, %s450
      %v452 = vpop.permute.xlu0 %451
      %v453 = vlaneseq
      %v454 = vshrl.u32 %v453, 7
      %v455 = vsub.s32 3, %v454
      %v456 = vrot.slane %v393, %v455
      %458 = vbcast.lane.b32.xlu0 %v456, 256
      %v459 = vpop.permute.xlu0 %458
      %s461 = sor.u32 256, 8
      %462 = vbcast.lane.b32.xlu0 %v456, %s461
      %v463 = vpop.permute.xlu0 %462
      %s465 = sor.u32 256, 16
      %466 = vbcast.lane.b32.xlu0 %v456, %s465
      %v467 = vpop.permute.xlu0 %466
      %s469 = sor.u32 256, 24
      %470 = vbcast.lane.b32.xlu0 %v456, %s469
      %v471 = vpop.permute.xlu0 %470
      %v472 = vlaneseq
      %v473 = vshrl.u32 %v472, 7
      %v474 = vsub.s32 4, %v473
      %v475 = vrot.slane %v393, %v474
      %477 = vbcast.lane.b32.xlu0 %v475, 256
      %v478 = vpop.permute.xlu0 %477
      %s480 = sor.u32 256, 8
      %481 = vbcast.lane.b32.xlu0 %v475, %s480
      %v482 = vpop.permute.xlu0 %481
      %s484 = sor.u32 256, 16
      %485 = vbcast.lane.b32.xlu0 %v475, %s484
      %v486 = vpop.permute.xlu0 %485
      %s488 = sor.u32 256, 24
      %489 = vbcast.lane.b32.xlu0 %v475, %s488
      %v490 = vpop.permute.xlu0 %489
      %v491 = vlaneseq
      %v492 = vshrl.u32 %v491, 7
      %v493 = vsub.s32 5, %v492
      %v494 = vrot.slane %v393, %v493
      %496 = vbcast.lane.b32.xlu0 %v494, 256
      %v497 = vpop.permute.xlu0 %496
      %s499 = sor.u32 256, 8
      %500 = vbcast.lane.b32.xlu0 %v494, %s499
      %v501 = vpop.permute.xlu0 %500
      %s503 = sor.u32 256, 16
      %504 = vbcast.lane.b32.xlu0 %v494, %s503
      %v505 = vpop.permute.xlu0 %504
      %s507 = sor.u32 256, 24
      %508 = vbcast.lane.b32.xlu0 %v494, %s507
      %v509 = vpop.permute.xlu0 %508
      %v510 = vlaneseq
      %v511 = vshrl.u32 %v510, 7
      %v512 = vsub.s32 6, %v511
      %v513 = vrot.slane %v393, %v512
      %515 = vbcast.lane.b32.xlu0 %v513, 256
      %v516 = vpop.permute.xlu0 %515
      %s518 = sor.u32 256, 8
      %519 = vbcast.lane.b32.xlu0 %v513, %s518
      %v520 = vpop.permute.xlu0 %519
      %s522 = sor.u32 256, 16
      %523 = vbcast.lane.b32.xlu0 %v513, %s522
      %v524 = vpop.permute.xlu0 %523
      %s526 = sor.u32 256, 24
      %527 = vbcast.lane.b32.xlu0 %v513, %s526
      %v528 = vpop.permute.xlu0 %527
      %v529 = vlaneseq
      %v530 = vshrl.u32 %v529, 7
      %v531 = vsub.s32 7, %v530
      %v532 = vrot.slane %v393, %v531
      %534 = vbcast.lane.b32.xlu0 %v532, 256
      %v535 = vpop.permute.xlu0 %534
      %s537 = sor.u32 256, 8
      %538 = vbcast.lane.b32.xlu0 %v532, %s537
      %v539 = vpop.permute.xlu0 %538
      %s541 = sor.u32 256, 16
      %542 = vbcast.lane.b32.xlu0 %v532, %s541
      %v543 = vpop.permute.xlu0 %542
      %s545 = sor.u32 256, 24
      %546 = vbcast.lane.b32.xlu0 %v532, %s545
      %v547 = vpop.permute.xlu0 %546
      %vm548 = vcmp.eq.s32.totalorder %v395, %v402
      %vm549 = vcmp.eq.s32.totalorder %v395, %v406
      %vm550 = vcmp.eq.s32.totalorder %v395, %v410
      %vm551 = vcmp.eq.s32.totalorder %v395, %v414
      %vm552 = vcmp.eq.s32.totalorder %v395, %v421
      %vm553 = vcmp.eq.s32.totalorder %v395, %v425
      %vm554 = vcmp.eq.s32.totalorder %v395, %v429
      %vm555 = vcmp.eq.s32.totalorder %v395, %v433
      %vm556 = vcmp.eq.s32.totalorder %v395, %v440
      %vm557 = vcmp.eq.s32.totalorder %v395, %v444
      %vm558 = vcmp.eq.s32.totalorder %v395, %v448
      %vm559 = vcmp.eq.s32.totalorder %v395, %v452
      %vm560 = vcmp.eq.s32.totalorder %v395, %v459
      %vm561 = vcmp.eq.s32.totalorder %v395, %v463
      %vm562 = vcmp.eq.s32.totalorder %v395, %v467
      %vm563 = vcmp.eq.s32.totalorder %v395, %v471
      %vm564 = vcmp.eq.s32.totalorder %v395, %v478
      %vm565 = vcmp.eq.s32.totalorder %v395, %v482
      %vm566 = vcmp.eq.s32.totalorder %v395, %v486
      %vm567 = vcmp.eq.s32.totalorder %v395, %v490
      %vm568 = vcmp.eq.s32.totalorder %v395, %v497
      %vm569 = vcmp.eq.s32.totalorder %v395, %v501
      %vm570 = vcmp.eq.s32.totalorder %v395, %v505
      %vm571 = vcmp.eq.s32.totalorder %v395, %v509
      %vm572 = vcmp.eq.s32.totalorder %v395, %v516
      %vm573 = vcmp.eq.s32.totalorder %v395, %v520
      %vm574 = vcmp.eq.s32.totalorder %v395, %v524
      %vm575 = vcmp.eq.s32.totalorder %v395, %v528
      %vm576 = vcmp.eq.s32.totalorder %v395, %v535
      %vm577 = vcmp.eq.s32.totalorder %v395, %v539
      %vm578 = vcmp.eq.s32.totalorder %v395, %v543
      %vm579 = vcmp.eq.s32.totalorder %v395, %v547
      %v580 = vsel %vm548, 1, 0
      %v581 = vsel %vm549, 1, 0
      %v582 = vsel %vm550, 1, 0
      %v583 = vsel %vm551, 1, 0
      %v584 = vsel %vm552, 1, 0
      %v585 = vsel %vm553, 1, 0
      %v586 = vsel %vm554, 1, 0
      %v587 = vsel %vm555, 1, 0
      %v588 = vsel %vm556, 1, 0
      %v589 = vsel %vm557, 1, 0
      %v590 = vsel %vm558, 1, 0
      %v591 = vsel %vm559, 1, 0
      %v592 = vsel %vm560, 1, 0
      %v593 = vsel %vm561, 1, 0
      %v594 = vsel %vm562, 1, 0
      %v595 = vsel %vm563, 1, 0
      %v596 = vsel %vm564, 1, 0
      %v597 = vsel %vm565, 1, 0
      %v598 = vsel %vm566, 1, 0
      %v599 = vsel %vm567, 1, 0
      %v600 = vsel %vm568, 1, 0
      %v601 = vsel %vm569, 1, 0
      %v602 = vsel %vm570, 1, 0
      %v603 = vsel %vm571, 1, 0
      %v604 = vsel %vm572, 1, 0
      %v605 = vsel %vm573, 1, 0
      %v606 = vsel %vm574, 1, 0
      %v607 = vsel %vm575, 1, 0
      %v608 = vsel %vm576, 1, 0
      %v609 = vsel %vm577, 1, 0
      %v610 = vsel %vm578, 1, 0
      %v611 = vsel %vm579, 1, 0
      %v612 = vcvt.s32.f32 %v580
      %v613 = vcvt.s32.f32 %v581
      %v614 = vcvt.s32.f32 %v582
      %v615 = vcvt.s32.f32 %v583
      %v616 = vcvt.s32.f32 %v584
      %v617 = vcvt.s32.f32 %v585
      %v618 = vcvt.s32.f32 %v586
      %v619 = vcvt.s32.f32 %v587
      %v620 = vcvt.s32.f32 %v588
      %v621 = vcvt.s32.f32 %v589
      %v622 = vcvt.s32.f32 %v590
      %v623 = vcvt.s32.f32 %v591
      %v624 = vcvt.s32.f32 %v592
      %v625 = vcvt.s32.f32 %v593
      %v626 = vcvt.s32.f32 %v594
      %v627 = vcvt.s32.f32 %v595
      %v628 = vcvt.s32.f32 %v596
      %v629 = vcvt.s32.f32 %v597
      %v630 = vcvt.s32.f32 %v598
      %v631 = vcvt.s32.f32 %v599
      %v632 = vcvt.s32.f32 %v600
      %v633 = vcvt.s32.f32 %v601
      %v634 = vcvt.s32.f32 %v602
      %v635 = vcvt.s32.f32 %v603
      %v636 = vcvt.s32.f32 %v604
      %v637 = vcvt.s32.f32 %v605
      %v638 = vcvt.s32.f32 %v606
      %v639 = vcvt.s32.f32 %v607
      %v640 = vcvt.s32.f32 %v608
      %v641 = vcvt.s32.f32 %v609
      %v642 = vcvt.s32.f32 %v610
      %v643 = vcvt.s32.f32 %v611
      %v644 = vpack.c.bf16 %v613, %v612
      %v645 = vpack.c.bf16 %v615, %v614
      %v646 = vpack.c.bf16 %v617, %v616
      %v647 = vpack.c.bf16 %v619, %v618
      %v648 = vpack.c.bf16 %v621, %v620
      %v649 = vpack.c.bf16 %v623, %v622
      %v650 = vpack.c.bf16 %v625, %v624
      %v651 = vpack.c.bf16 %v627, %v626
      %v652 = vpack.c.bf16 %v629, %v628
      %v653 = vpack.c.bf16 %v631, %v630
      %v654 = vpack.c.bf16 %v633, %v632
      %v655 = vpack.c.bf16 %v635, %v634
      %v656 = vpack.c.bf16 %v637, %v636
      %v657 = vpack.c.bf16 %v639, %v638
      %v658 = vpack.c.bf16 %v641, %v640
      %v659 = vpack.c.bf16 %v643, %v642
      %v660 = vld [vmem:[#allocation2] sm:$0xff]
      %v661 = vld [vmem:[#allocation2 + $0x8] sm:$0xff]
      %vm662 = vcmask 261120
      %v664 = vsel %vm662, %v644, 0
      %v667 = vsel %vm662, %v645, 0
      %v670 = vsel %vm662, %v646, 0
      %v673 = vsel %vm662, %v647, 0
      %v676 = vsel %vm662, %v648, 0
      %v679 = vsel %vm662, %v649, 0
      %v682 = vsel %vm662, %v650, 0
      %v685 = vsel %vm662, %v651, 0
      %v688 = vsel %vm662, %v652, 0
      %v691 = vsel %vm662, %v653, 0
      %v694 = vsel %vm662, %v654, 0
      %v697 = vsel %vm662, %v655, 0
      %v700 = vsel %vm662, %v656, 0
      %v703 = vsel %vm662, %v657, 0
      %v706 = vsel %vm662, %v658, 0
      %v709 = vsel %vm662, %v659, 0
      %711 = vmatprep.subr.bf16.mxu0 0
      %712 = vmatpush1.bf16.msra.mxu0 %v660
      %713 = vmatprep.subr.bf16.mxu0 0
      %714 = vmatpush1.bf16.msra.mxu0 %v661
      %715 = vmatprep.subr.bf16.mxu0 0
      %716 = vmatpush1.bf16.msra.mxu0 0
      %717 = vmatprep.subr.bf16.mxu0 0
      %718 = vmatpush1.bf16.msra.mxu0 0
      %719 = vmatprep.subr.bf16.mxu0 0
      %720 = vmatpush1.bf16.msra.mxu0 0
      %721 = vmatprep.subr.bf16.mxu0 0
      %722 = vmatpush1.bf16.msra.mxu0 0
      %723 = vmatprep.subr.bf16.mxu0 0
      %724 = vmatpush1.bf16.msra.mxu0 0
      %725 = vmatprep.subr.bf16.mxu0 0
      %726 = vmatpush1.bf16.msra.mxu0 0
      %727 = vmatprep.subr.bf16.mxu0 0
      %728 = vmatpush1.bf16.msra.mxu0 0
      %729 = vmatprep.subr.bf16.mxu0 0
      %730 = vmatpush1.bf16.msra.mxu0 0
      %731 = vmatprep.subr.bf16.mxu0 0
      %732 = vmatpush1.bf16.msra.mxu0 0
      %733 = vmatprep.subr.bf16.mxu0 0
      %734 = vmatpush1.bf16.msra.mxu0 0
      %735 = vmatprep.subr.bf16.mxu0 0
      %736 = vmatpush1.bf16.msra.mxu0 0
      %737 = vmatprep.subr.bf16.mxu0 0
      %738 = vmatpush1.bf16.msra.mxu0 0
      %739 = vmatprep.subr.bf16.mxu0 0
      %740 = vmatpush1.bf16.msra.mxu0 0
      %741 = vmatprep.subr.bf16.mxu0 0
      %742 = vmatpush1.bf16.msra.mxu0 0
      %743 = vmatprep.mubr.bf16.mxu0 0
      %744 = vmatmul.mubr.bf16.gmra.mrb[0].mxu0 %v664
      %v745 = vpop.f32.mrb[0].mxu0
      %v746 = vadd.f32 0.0, %v745
      %v747 = vpop.f32.mrb[0].mxu0
      %v748 = vpop.f32.mrb[0].mxu0
      %v749 = vadd.f32 0.0, %v748
      %v750 = vpop.f32.mrb[0].mxu0
      %751 = vmatprep.mubr.bf16.mxu0 0
      %752 = vmatmul.mubr.bf16.gmra.mrb[0].mxu0 %v667
      %v753 = vpop.f32.mrb[0].mxu0
      %v754 = vadd.f32 0.0, %v753
      %v755 = vpop.f32.mrb[0].mxu0
      %v756 = vpop.f32.mrb[0].mxu0
      %v757 = vadd.f32 0.0, %v756
      %v758 = vpop.f32.mrb[0].mxu0
      %759 = vmatprep.mubr.bf16.mxu0 0
      %760 = vmatmul.mubr.bf16.gmra.mrb[0].mxu0 %v670
      %v761 = vpop.f32.mrb[0].mxu0
      %v762 = vadd.f32 0.0, %v761
      %v763 = vpop.f32.mrb[0].mxu0
      %v764 = vpop.f32.mrb[0].mxu0
      %v765 = vadd.f32 0.0, %v764
      %v766 = vpop.f32.mrb[0].mxu0
      %767 = vmatprep.mubr.bf16.mxu0 0
      %768 = vmatmul.mubr.bf16.gmra.mrb[0].mxu0 %v673
      %v769 = vpop.f32.mrb[0].mxu0
      %v770 = vadd.f32 0.0, %v769
      %v771 = vpop.f32.mrb[0].mxu0
      %v772 = vpop.f32.mrb[0].mxu0
      %v773 = vadd.f32 0.0, %v772
      %v774 = vpop.f32.mrb[0].mxu0
      %775 = vmatprep.mubr.bf16.mxu0 0
      %776 = vmatmul.mubr.bf16.gmra.mrb[0].mxu0 %v676
      %v777 = vpop.f32.mrb[0].mxu0
      %v778 = vadd.f32 0.0, %v777
      %v779 = vpop.f32.mrb[0].mxu0
      %v780 = vpop.f32.mrb[0].mxu0
      %v781 = vadd.f32 0.0, %v780
      %v782 = vpop.f32.mrb[0].mxu0
      %783 = vmatprep.mubr.bf16.mxu0 0
      %784 = vmatmul.mubr.bf16.gmra.mrb[0].mxu0 %v679
      %v785 = vpop.f32.mrb[0].mxu0
      %v786 = vadd.f32 0.0, %v785
      %v787 = vpop.f32.mrb[0].mxu0
      %v788 = vpop.f32.mrb[0].mxu0
      %v789 = vadd.f32 0.0, %v788
      %v790 = vpop.f32.mrb[0].mxu0
      %791 = vmatprep.mubr.bf16.mxu0 0
      %792 = vmatmul.mubr.bf16.gmra.mrb[0].mxu0 %v682
      %v793 = vpop.f32.mrb[0].mxu0
      %v794 = vadd.f32 0.0, %v793
      %v795 = vpop.f32.mrb[0].mxu0
      %v796 = vpop.f32.mrb[0].mxu0
      %v797 = vadd.f32 0.0, %v796
      %v798 = vpop.f32.mrb[0].mxu0
      %799 = vmatprep.mubr.bf16.mxu0 0
      %800 = vmatmul.mubr.bf16.gmra.mrb[0].mxu0 %v685
      %v801 = vpop.f32.mrb[0].mxu0
      %v802 = vadd.f32 0.0, %v801
      %v803 = vpop.f32.mrb[0].mxu0
      %v804 = vpop.f32.mrb[0].mxu0
      %v805 = vadd.f32 0.0, %v804
      %v806 = vpop.f32.mrb[0].mxu0
      %807 = vmatprep.mubr.bf16.mxu0 0
      %808 = vmatmul.mubr.bf16.gmra.mrb[0].mxu0 %v688
      %v809 = vpop.f32.mrb[0].mxu0
      %v810 = vadd.f32 0.0, %v809
      %v811 = vpop.f32.mrb[0].mxu0
      %v812 = vpop.f32.mrb[0].mxu0
      %v813 = vadd.f32 0.0, %v812
      %v814 = vpop.f32.mrb[0].mxu0
      %815 = vmatprep.mubr.bf16.mxu0 0
      %816 = vmatmul.mubr.bf16.gmra.mrb[0].mxu0 %v691
      %v817 = vpop.f32.mrb[0].mxu0
      %v818 = vadd.f32 0.0, %v817
      %v819 = vpop.f32.mrb[0].mxu0
      %v820 = vpop.f32.mrb[0].mxu0
      %v821 = vadd.f32 0.0, %v820
      %v822 = vpop.f32.mrb[0].mxu0
      %823 = vmatprep.mubr.bf16.mxu0 0
      %824 = vmatmul.mubr.bf16.gmra.mrb[0].mxu0 %v694
      %v825 = vpop.f32.mrb[0].mxu0
      %v826 = vadd.f32 0.0, %v825
      %v827 = vpop.f32.mrb[0].mxu0
      %v828 = vpop.f32.mrb[0].mxu0
      %v829 = vadd.f32 0.0, %v828
      %v830 = vpop.f32.mrb[0].mxu0
      %831 = vmatprep.mubr.bf16.mxu0 0
      %832 = vmatmul.mubr.bf16.gmra.mrb[0].mxu0 %v697
      %v833 = vpop.f32.mrb[0].mxu0
      %v834 = vadd.f32 0.0, %v833
      %v835 = vpop.f32.mrb[0].mxu0
      %v836 = vpop.f32.mrb[0].mxu0
      %v837 = vadd.f32 0.0, %v836
      %v838 = vpop.f32.mrb[0].mxu0
      %839 = vmatprep.mubr.bf16.mxu0 0
      %840 = vmatmul.mubr.bf16.gmra.mrb[0].mxu0 %v700
      %v841 = vpop.f32.mrb[0].mxu0
      %v842 = vadd.f32 0.0, %v841
      %v843 = vpop.f32.mrb[0].mxu0
      %v844 = vpop.f32.mrb[0].mxu0
      %v845 = vadd.f32 0.0, %v844
      %v846 = vpop.f32.mrb[0].mxu0
      %847 = vmatprep.mubr.bf16.mxu0 0
      %848 = vmatmul.mubr.bf16.gmra.mrb[0].mxu0 %v703
      %v849 = vpop.f32.mrb[0].mxu0
      %v850 = vadd.f32 0.0, %v849
      %v851 = vpop.f32.mrb[0].mxu0
      %v852 = vpop.f32.mrb[0].mxu0
      %v853 = vadd.f32 0.0, %v852
      %v854 = vpop.f32.mrb[0].mxu0
      %855 = vmatprep.mubr.bf16.mxu0 0
      %856 = vmatmul.mubr.bf16.gmra.mrb[0].mxu0 %v706
      %v857 = vpop.f32.mrb[0].mxu0
      %v858 = vadd.f32 0.0, %v857
      %v859 = vpop.f32.mrb[0].mxu0
      %v860 = vpop.f32.mrb[0].mxu0
      %v861 = vadd.f32 0.0, %v860
      %v862 = vpop.f32.mrb[0].mxu0
      %863 = vmatprep.mubr.bf16.mxu0 0
      %864 = vmatmul.mubr.bf16.gmra.mrb[0].mxu0 %v709
      %v865 = vpop.f32.mrb[0].mxu0
      %v866 = vadd.f32 0.0, %v865
      %v867 = vpop.f32.mrb[0].mxu0
      %v868 = vpop.f32.mrb[0].mxu0
      %v869 = vadd.f32 0.0, %v868
      %v870 = vpop.f32.mrb[0].mxu0
      %871 = vdwg.mxu0
      %vm872 = vcmask 523264
      %v873 = vsel %vm872, %v746, -inf
      %v874 = vsel %vm872, %v762, -inf
      %v875 = vmax.f32 %v873, %v874
      %v876 = vsel %vm872, %v778, -inf
      %v877 = vmax.f32 %v875, %v876
      %v878 = vsel %vm872, %v794, -inf
      %v879 = vmax.f32 %v877, %v878
      %v880 = vsel %vm872, %v810, -inf
      %v881 = vmax.f32 %v879, %v880
      %v882 = vsel %vm872, %v826, -inf
      %v883 = vmax.f32 %v881, %v882
      %v884 = vsel %vm872, %v842, -inf
      %v885 = vmax.f32 %v883, %v884
      %v886 = vsel %vm872, %v858, -inf
      %v887 = vmax.f32 %v885, %v886
      %v888 = vsel %vm872, %v749, -inf
      %v889 = vsel %vm872, %v765, -inf
      %v890 = vmax.f32 %v888, %v889
      %v891 = vsel %vm872, %v781, -inf
      %v892 = vmax.f32 %v890, %v891
      %v893 = vsel %vm872, %v797, -inf
      %v894 = vmax.f32 %v892, %v893
      %v895 = vsel %vm872, %v813, -inf
      %v896 = vmax.f32 %v894, %v895
      %v897 = vsel %vm872, %v829, -inf
      %v898 = vmax.f32 %v896, %v897
      %v899 = vsel %vm872, %v845, -inf
      %v900 = vmax.f32 %v898, %v899
      %v901 = vsel %vm872, %v861, -inf
      %v902 = vmax.f32 %v900, %v901
      %v903 = vsel %vm872, %v754, -inf
      %v904 = vsel %vm872, %v770, -inf
      %v905 = vmax.f32 %v903, %v904
      %v906 = vsel %vm872, %v786, -inf
      %v907 = vmax.f32 %v905, %v906
      %v908 = vsel %vm872, %v802, -inf
      %v909 = vmax.f32 %v907, %v908
      %v910 = vsel %vm872, %v818, -inf
      %v911 = vmax.f32 %v909, %v910
      %v912 = vsel %vm872, %v834, -inf
      %v913 = vmax.f32 %v911, %v912
      %v914 = vsel %vm872, %v850, -inf
      %v915 = vmax.f32 %v913, %v914
      %v916 = vsel %vm872, %v866, -inf
      %v917 = vmax.f32 %v915, %v916
      %v918 = vsel %vm872, %v757, -inf
      %v919 = vsel %vm872, %v773, -inf
      %v920 = vmax.f32 %v918, %v919
      %v921 = vsel %vm872, %v789, -inf
      %v922 = vmax.f32 %v920, %v921
      %v923 = vsel %vm872, %v805, -inf
      %v924 = vmax.f32 %v922, %v923
      %v925 = vsel %vm872, %v821, -inf
      %v926 = vmax.f32 %v924, %v925
      %v927 = vsel %vm872, %v837, -inf
      %v928 = vmax.f32 %v926, %v927
      %v929 = vsel %vm872, %v853, -inf
      %v930 = vmax.f32 %v928, %v929
      %v931 = vsel %vm872, %v869, -inf
      %v932 = vmax.f32 %v930, %v931
      %s933 = smul.u32 %s21, 32
      %s934 = sshra.s32 %s933, 4
      %s935 = sand.u32 %s933, 15
      %s936 = smul.addr %s934, 8
      %s937 = scalar_lea.vmem [#allocation2], %s936
      %v938 = vld [vmem:[%s937] sm:$0xff]
      %v939 = vld [vmem:[%s937 + $0x8] sm:$0xff]
      %v940 = vunpack.c.l.bf16 %v938
      %v941 = vunpack.c.h.bf16 %v938
      %v942 = vunpack.c.l.bf16 %v939
      %v943 = vunpack.c.h.bf16 %v939
      %v944 = vsub.f32 %v887, %v940
      %v945 = vsub.f32 %v902, %v941
      %v946 = vsub.f32 %v917, %v942
      %v947 = vsub.f32 %v932, %v943
      %v948 = vld [vmem:[%s3] sm:$0x1]
      %v950 = vlaneseq
      %v951 = vshrl.u32 %v950, 7
      %v952 = vsub.s32 0, %v951
      %v953 = vrot.slane %v948, %v952
      %v955 = vmul.f32 %v944, %v953
      %v956 = vmul.f32 %v945, %v953
      %v957 = vmul.f32 %v946, %v953
      %v958 = vmul.f32 %v947, %v953
      %v959 = vld [vmem:[%s4] sm:$0x1]
      %v961 = vlaneseq
      %v962 = vshrl.u32 %v961, 7
      %v963 = vsub.s32 0, %v962
      %v964 = vrot.slane %v959, %v963
      %v966 = vadd.f32 %v955, %v964
      %v967 = vadd.f32 %v956, %v964
      %v968 = vadd.f32 %v957, %v964
      %v969 = vadd.f32 %v958, %v964
      %vm970 = vcmp.gt.f32.partialorder %v966, 0.0
      %vm971 = vcmp.gt.f32.partialorder %v967, 0.0
      %vm972 = vcmp.gt.f32.partialorder %v968, 0.0
      %vm973 = vcmp.gt.f32.partialorder %v969, 0.0
      %v974 = vmul.f32 %v966, 0.2
      %v975 = vmul.f32 %v967, 0.2
      %v976 = vmul.f32 %v968, 0.2
      %v977 = vmul.f32 %v969, 0.2
      %v978 = vsel %vm970, %v966, %v974
      %v979 = vsel %vm971, %v967, %v975
      %v980 = vsel %vm972, %v968, %v976
      %v981 = vsel %vm973, %v969, %v977
      %982 = vst.msk [vmem:[%s274] sm:$0xff] %vm872, %v978
      %983 = vst.msk [vmem:[%s274 + $0x8] sm:$0xff] %vm872, %v979
      %984 = vst.msk [vmem:[%s274 + $0x10] sm:$0xff] %vm872, %v980
      %985 = vst.msk [vmem:[%s274 + $0x18] sm:$0xff] %vm872, %v981
      %s986 = smul.u32 4, %s21
      %p987 = scmp.lt.s32.totalorder %s20, 1
      %s988 = scalar_select %p987, %s20, 1
      %p989 = scmp.lt.s32.totalorder %s986, 3
      %s990 = scalar_select %p989, %s986, 3
      %s991 = smul.addr %s988, 4
      %s992 = sadd.s32 %s990, %s991
      %s993 = smul.addr %s992, 8
      %s994 = scalar_lea.vmem %s5, %s993
      // Predicated region
      $region45: #{_lambda_.5} parent=39 // pred_check
        %p995 = pneg %p165
      $region46: #{_lambda_.5} parent=39 // pred_check_branch
        %997 = sbr.rel (%p995) target = $region48
      $region47: #{_lambda_.5} parent=39 // pred_region
        %s998 = smul.u32 4, %s21
      $region48: #{_lambda_.5} parent=39 // pred_fallthru
        _
    $region40: #{_lambda_.5} parent=5 // pred_fallthru
      _
    %p999 = scmp.le.s32.totalorder 2, %s11
    // Predicated region
    $region49: #{_lambda_.5} parent=5 // pred_check
      %p1000 = pneg %p999
    $region50: #{_lambda_.5} parent=5 // pred_check_branch
      %1002 = sbr.rel (%p1000) target = $region52
    $region51: #{_lambda_.5} parent=5 // pred_region
      %s1003 = ssub.s32 %s11, 2
      // Predicated region
      $region53: #{_lambda_.5} parent=51 // pred_check
        %p1004 = pneg %p171
      $region54: #{_lambda_.5} parent=51 // pred_check_branch
        %1006 = sbr.rel (%p1004) target = $region56
      $region55: #{_lambda_.5} parent=51 // pred_region
        %s1007 = smul.u32 4, %s23
        %p1008 = scmp.lt.s32.totalorder %s22, 1
        %s1009 = scalar_select %p1008, %s22, 1
        %p1010 = scmp.lt.s32.totalorder %s1007, 3
        %s1011 = scalar_select %p1010, %s1007, 3
        %s1012 = smul.addr %s1009, 4
        %s1013 = sadd.s32 %s1011, %s1012
        %s1014 = smul.addr %s1013, 8
        %s1015 = scalar_lea.vmem %s5, %s1014
      $region56: #{_lambda_.5} parent=51 // pred_fallthru
        _
    $region52: #{_lambda_.5} parent=5 // pred_fallthru
      _
  $region6: #{_lambda_.5} parent=0 // loop_footer
    %s15 = sadd.s32 1, %s11
  $region7: #{_lambda_.5} parent=0 // loop_footer_branch
    %10 = sbr.rel target = $region3
  $region8: #{_lambda_.5} parent=0 // loop_exit
    _

// kernel: _lambda_.6
$region0: #{_lambda_.6}
  #allocation0 [shape = 'u32[]', space=smem, size = 0x4, offset = 0x4, fixed_abs, tag = 'smem constant byte address 0x4 - core index']
  #allocation1 [shape = 'u32[144,128]{1,0:T(1,128)}', space=vmem, size = 0x12000, scoped, tag = 'internal scratch']
  #allocation2 [shape = 'bf16[32,64]{1,0:T(16,128)(2,1)}', space=vmem, size = 0x2000, scoped, tag = 'scratch operand']
  %s0 = inlined_call_operand.vmem [shape: s32[2,8,32], index: 0, kind: input, shape index: {}]
  %s1 = inlined_call_operand.vmem [shape: f32[2,32,64], index: 1, kind: input, shape index: {}]
  %s2 = inlined_call_operand.vmem [shape: f32[64,64], index: 2, kind: input, shape index: {}]
  %s3 = inlined_call_operand.vmem [shape: f32[1,64], index: 3, kind: input, shape index: {}]
  %s4 = inlined_call_operand.vmem [shape: f32[1,64], index: 4, kind: input, shape index: {}]
  %s5 = inlined_call_operand.vmem [shape: f32[2,32,64], index: 5, kind: output, shape index: {}]
  %s6 = sld [smem:[#allocation0]]
  $region57: #{_lambda_.6} parent=0
    _
  %s8 = ssub.s32 1, %s6
  %s9 = scalar_select 0, %s8, %s6
  loop: start=0, step=1, limit=4
  $region2: #{_lambda_.6} parent=0 // loop_pre_header
    _
  $region3: #{_lambda_.6} parent=0 // loop_header
    %s11 = sphi 0, %s15
    %p12 = scmp.ge.s32.totalorder %s11, 4
    %s18 = sphi 0, %s30
    %s19 = sphi 0, %s26
    %s20 = sphi 0, %s18
    %s21 = sphi 0, %s19
    %s22 = sphi 0, %s20
    %s23 = sphi 0, %s21
    %s35 = sphi 0, %s37
    %s38 = sphi 0, %s35
    %s39 = sphi 0, %s38
    %s55 = sphi 0, %s39
    %s61 = sphi 0, %s63
    %s64 = sphi 0, %s61
    %s65 = sphi 0, %s64
    %s81 = sphi 0, %s65
    %s85 = sphi 0, %s85
    %s87 = sphi 0, %s85
    %s88 = sphi 0, %s87
    %s102 = sphi 0, %s88
    %s106 = sphi 0, %s106
    %s108 = sphi 0, %s106
    %s109 = sphi 0, %s108
    %s123 = sphi 0, %s109
    %s127 = sphi 0, %s127
    %s129 = sphi 0, %s127
    %s130 = sphi 0, %s129
    %s144 = sphi 0, %s130
    %s152 = sphi 0, %s154
    %s155 = sphi 0, %s152
    %s156 = sphi 0, %s155
    %s172 = sphi 0, %s156
  $region4: #{_lambda_.6} parent=0 // loop_header_branch
    %14 = sbr.rel (%p12) target = $region8
  $region5: #{_lambda_.6} parent=0 // loop_body
    %s16 = ssub.s32 %s11, 1
    %s17 = ssub.s32 %s11, 2
    %s24 = sadd.s32 1, %s19
    %p25 = scmp.ge.s32.totalorder %s24, 1
    %s26 = scalar_select %p25, 0, %s24
    %s27 = sadd.s32 1, %s18
    %s28 = scalar_select %p25, %s27, %s18
    %p29 = scmp.ge.s32.totalorder %s28, 2
    %s30 = scalar_select %p29, 0, %s28
    %s31 = ssub.s32 %s18, %s30
    %s32 = ssub.s32 %s19, %s26
    %s33 = sor.u32 %s31, %s32
    %p34 = scmp.eq.s32.totalorder %s33, 0
    %s36 = sadd.s32 %s35, 1
    %s37 = scalar_select %p34, %s35, %s36
    %p40 = pneg %p34
    %p41 = scmp.eq.s32.totalorder %s11, 1
    %p42 = por %p40, %p41
    %p43 = scmp.ne.s32.totalorder %s35, %s38
    %p44 = scmp.eq.s32.totalorder %s11, 0
    %p45 = por %p43, %p44
    %p46 = scmp.ne.s32.totalorder %s35, %s38
    %p47 = scmp.eq.s32.totalorder %s16, 1
    %p48 = por %p46, %p47
    %p49 = scmp.ne.s32.totalorder %s38, %s39
    %p50 = scmp.eq.s32.totalorder %s16, 0
    %p51 = por %p49, %p50
    %p52 = scmp.ne.s32.totalorder %s38, %s39
    %p53 = scmp.eq.s32.totalorder %s17, 1
    %p54 = por %p52, %p53
    %p56 = scmp.ne.s32.totalorder %s39, %s55
    %p57 = scmp.eq.s32.totalorder %s17, 0
    %p58 = por %p56, %p57
    %s59 = ssub.s32 %s18, %s30
    %p60 = scmp.eq.s32.totalorder %s59, 0
    %s62 = sadd.s32 %s61, 1
    %s63 = scalar_select %p60, %s61, %s62
    %p66 = pneg %p60
    %p67 = scmp.eq.s32.totalorder %s11, 1
    %p68 = por %p66, %p67
    %p69 = scmp.ne.s32.totalorder %s61, %s64
    %p70 = scmp.eq.s32.totalorder %s11, 0
    %p71 = por %p69, %p70
    %p72 = scmp.ne.s32.totalorder %s61, %s64
    %p73 = scmp.eq.s32.totalorder %s16, 1
    %p74 = por %p72, %p73
    %p75 = scmp.ne.s32.totalorder %s64, %s65
    %p76 = scmp.eq.s32.totalorder %s16, 0
    %p77 = por %p75, %p76
    %p78 = scmp.ne.s32.totalorder %s64, %s65
    %p79 = scmp.eq.s32.totalorder %s17, 1
    %p80 = por %p78, %p79
    %p82 = scmp.ne.s32.totalorder %s65, %s81
    %p83 = scmp.eq.s32.totalorder %s17, 0
    %p84 = por %p82, %p83
    %s86 = sadd.s32 %s85, 1
    %p89 = scmp.eq.s32.totalorder %s11, 1
    %p90 = scmp.ne.s32.totalorder %s85, %s87
    %p91 = scmp.eq.s32.totalorder %s11, 0
    %p92 = por %p90, %p91
    %p93 = scmp.ne.s32.totalorder %s85, %s87
    %p94 = scmp.eq.s32.totalorder %s16, 1
    %p95 = por %p93, %p94
    %p96 = scmp.ne.s32.totalorder %s87, %s88
    %p97 = scmp.eq.s32.totalorder %s16, 0
    %p98 = por %p96, %p97
    %p99 = scmp.ne.s32.totalorder %s87, %s88
    %p100 = scmp.eq.s32.totalorder %s17, 1
    %p101 = por %p99, %p100
    %p103 = scmp.ne.s32.totalorder %s88, %s102
    %p104 = scmp.eq.s32.totalorder %s17, 0
    %p105 = por %p103, %p104
    %s107 = sadd.s32 %s106, 1
    %p110 = scmp.eq.s32.totalorder %s11, 1
    %p111 = scmp.ne.s32.totalorder %s106, %s108
    %p112 = scmp.eq.s32.totalorder %s11, 0
    %p113 = por %p111, %p112
    %p114 = scmp.ne.s32.totalorder %s106, %s108
    %p115 = scmp.eq.s32.totalorder %s16, 1
    %p116 = por %p114, %p115
    %p117 = scmp.ne.s32.totalorder %s108, %s109
    %p118 = scmp.eq.s32.totalorder %s16, 0
    %p119 = por %p117, %p118
    %p120 = scmp.ne.s32.totalorder %s108, %s109
    %p121 = scmp.eq.s32.totalorder %s17, 1
    %p122 = por %p120, %p121
    %p124 = scmp.ne.s32.totalorder %s109, %s123
    %p125 = scmp.eq.s32.totalorder %s17, 0
    %p126 = por %p124, %p125
    %s128 = sadd.s32 %s127, 1
    %p131 = scmp.eq.s32.totalorder %s11, 1
    %p132 = scmp.ne.s32.totalorder %s127, %s129
    %p133 = scmp.eq.s32.totalorder %s11, 0
    %p134 = por %p132, %p133
    %p135 = scmp.ne.s32.totalorder %s127, %s129
    %p136 = scmp.eq.s32.totalorder %s16, 1
    %p137 = por %p135, %p136
    %p138 = scmp.ne.s32.totalorder %s129, %s130
    %p139 = scmp.eq.s32.totalorder %s16, 0
    %p140 = por %p138, %p139
    %p141 = scmp.ne.s32.totalorder %s129, %s130
    %p142 = scmp.eq.s32.totalorder %s17, 1
    %p143 = por %p141, %p142
    %p145 = scmp.ne.s32.totalorder %s130, %s144
    %p146 = scmp.eq.s32.totalorder %s17, 0
    %p147 = por %p145, %p146
    %s148 = ssub.s32 %s18, %s30
    %s149 = ssub.s32 %s19, %s26
    %s150 = sor.u32 %s148, %s149
    %p151 = scmp.eq.s32.totalorder %s150, 0
    %s153 = sadd.s32 %s152, 1
    %s154 = scalar_select %p151, %s152, %s153
    %p157 = pneg %p151
    %p158 = scmp.eq.s32.totalorder %s11, 1
    %p159 = por %p157, %p158
    %p160 = scmp.ne.s32.totalorder %s152, %s155
    %p161 = scmp.eq.s32.totalorder %s11, 0
    %p162 = por %p160, %p161
    %p163 = scmp.ne.s32.totalorder %s152, %s155
    %p164 = scmp.eq.s32.totalorder %s16, 1
    %p165 = por %p163, %p164
    %p166 = scmp.ne.s32.totalorder %s155, %s156
    %p167 = scmp.eq.s32.totalorder %s16, 0
    %p168 = por %p166, %p167
    %p169 = scmp.ne.s32.totalorder %s155, %s156
    %p170 = scmp.eq.s32.totalorder %s17, 1
    %p171 = por %p169, %p170
    %p173 = scmp.ne.s32.totalorder %s156, %s172
    %p174 = scmp.eq.s32.totalorder %s17, 0
    %p175 = por %p173, %p174
    %p176 = scmp.le.s32.totalorder 1, %s11
    %p177 = scmp.lt.s32.totalorder %s11, 3
    %p178 = pnand %p176, %p177
    %p179 = pneg %p178
    // Predicated region
    $region9: #{_lambda_.6} parent=5 // pred_check
      _
    $region10: #{_lambda_.6} parent=5 // pred_check_branch
      %181 = sbr.rel (%p178) target = $region12
    $region11: #{_lambda_.6} parent=5 // pred_region
      %s182 = ssub.s32 %s11, 1
      // Predicated region
      $region13: #{_lambda_.6} parent=11 // pred_check
        %p183 = pneg %p98
      $region14: #{_lambda_.6} parent=11 // pred_check_branch
        %185 = sbr.rel (%p183) target = $region16
      $region15: #{_lambda_.6} parent=11 // pred_region
        _
      $region16: #{_lambda_.6} parent=11 // pred_fallthru
        _
      // Predicated region
      $region17: #{_lambda_.6} parent=11 // pred_check
        %p186 = pneg %p119
      $region18: #{_lambda_.6} parent=11 // pred_check_branch
        %188 = sbr.rel (%p186) target = $region20
      $region19: #{_lambda_.6} parent=11 // pred_region
        _
      $region20: #{_lambda_.6} parent=11 // pred_fallthru
        _
      // Predicated region
      $region21: #{_lambda_.6} parent=11 // pred_check
        %p189 = pneg %p140
      $region22: #{_lambda_.6} parent=11 // pred_check_branch
        %191 = sbr.rel (%p189) target = $region24
      $region23: #{_lambda_.6} parent=11 // pred_region
        _
      $region24: #{_lambda_.6} parent=11 // pred_fallthru
        _
    $region12: #{_lambda_.6} parent=5 // pred_fallthru
      _
    %p192 = scmp.lt.s32.totalorder %s11, 2
    // Predicated region
    $region25: #{_lambda_.6} parent=5 // pred_check
      %p193 = pneg %p192
    $region26: #{_lambda_.6} parent=5 // pred_check_branch
      %195 = sbr.rel (%p193) target = $region28
    $region27: #{_lambda_.6} parent=5 // pred_region
      // Predicated region
      $region29: #{_lambda_.6} parent=27 // pred_check
        %p196 = pneg %p45
      $region30: #{_lambda_.6} parent=27 // pred_check_branch
        %198 = sbr.rel (%p196) target = $region32
      $region31: #{_lambda_.6} parent=27 // pred_region
        %p199 = scmp.lt.s32.totalorder %s18, 1
        %s200 = scalar_select %p199, %s18, 1
        %p201 = scmp.lt.s32.totalorder %s19, 0
        %s202 = scalar_select %p201, %s19, 0
        %s203 = sadd.s32 %s202, %s200
        %s204 = smul.addr %s203, 8
        %s205 = scalar_lea.vmem %s0, %s204
      $region32: #{_lambda_.6} parent=27 // pred_fallthru
        _
      // Predicated region
      $region33: #{_lambda_.6} parent=27 // pred_check
        %p206 = pneg %p71
      $region34: #{_lambda_.6} parent=27 // pred_check_branch
        %208 = sbr.rel (%p206) target = $region36
      $region35: #{_lambda_.6} parent=27 // pred_region
        %p209 = scmp.lt.s32.totalorder %s18, 1
        %s210 = scalar_select %p209, %s18, 1
        %s211 = smul.addr %s210, 4
        %s212 = smul.addr %s211, 8
        %s213 = scalar_lea.vmem %s1, %s212
      $region36: #{_lambda_.6} parent=27 // pred_fallthru
        _
    $region28: #{_lambda_.6} parent=5 // pred_fallthru
      _
    %p214 = scmp.le.s32.totalorder 1, %s11
    %p215 = scmp.lt.s32.totalorder %s11, 3
    %p216 = pnand %p214, %p215
    %p217 = pneg %p216
    // Predicated region
    $region37: #{_lambda_.6} parent=5 // pred_check
      _
    $region38: #{_lambda_.6} parent=5 // pred_check_branch
      %219 = sbr.rel (%p216) target = $region40
    $region39: #{_lambda_.6} parent=5 // pred_region
      %s220 = ssub.s32 %s11, 1
      %p221 = scmp.lt.s32.totalorder %s20, 1
      %s222 = scalar_select %p221, %s20, 1
      %p223 = scmp.lt.s32.totalorder %s21, 0
      %s224 = scalar_select %p223, %s21, 0
      %s225 = sadd.s32 %s224, %s222
      %s226 = smul.addr %s225, 8
      %s227 = scalar_lea.vmem %s0, %s226
      %p228 = pneg %p51
      %p229 = pneg %p48
      %p230 = scmp.lt.s32.totalorder %s20, 1
      %s231 = scalar_select %p230, %s20, 1
      %s232 = smul.addr %s231, 4
      %s233 = smul.addr %s232, 8
      %s234 = scalar_lea.vmem %s1, %s233
      %p235 = pneg %p77
      %p236 = pneg %p74
      %p237 = pneg %p98
      %p238 = pneg %p95
      %p239 = pneg %p119
      %p240 = pneg %p116
      %p241 = pneg %p140
      %p242 = pneg %p137
      %p243 = pneg %p168
      %p244 = pneg %p165
      %s245 = smul.u32 4, %s21
      %p246 = scmp.lt.s32.totalorder %s20, 1
      %s247 = scalar_select %p246, %s20, 1
      %p248 = scmp.lt.s32.totalorder %s245, 3
      %s249 = scalar_select %p248, %s245, 3
      %s250 = smul.addr %s247, 4
      %s251 = sadd.s32 %s249, %s250
      %s252 = smul.addr %s251, 8
      %s253 = scalar_lea.vmem %s5, %s252
      %p254 = scmp.lt.s32.totalorder %s20, 1
      %s255 = scalar_select %p254, %s20, 1
      %p256 = scmp.lt.s32.totalorder %s21, 0
      %s257 = scalar_select %p256, %s21, 0
      %s258 = sadd.s32 %s257, %s255
      %s259 = smul.addr %s258, 8
      %s260 = scalar_lea.vmem %s0, %s259
      %p261 = scmp.lt.s32.totalorder %s20, 1
      %s262 = scalar_select %p261, %s20, 1
      %s263 = smul.addr %s262, 4
      %s264 = smul.addr %s263, 8
      %s265 = scalar_lea.vmem %s1, %s264
      %s266 = smul.u32 4, %s21
      %p267 = scmp.lt.s32.totalorder %s20, 1
      %s268 = scalar_select %p267, %s20, 1
      %p269 = scmp.lt.s32.totalorder %s266, 3
      %s270 = scalar_select %p269, %s266, 3
      %s271 = smul.addr %s268, 4
      %s272 = sadd.s32 %s270, %s271
      %s273 = smul.addr %s272, 8
      %s274 = scalar_lea.vmem %s5, %s273
      %s275 = smul.u32 4, %s21
      %p277 = scmp.eq.s32.totalorder %s21, 0
      // Predicated region
      $region41: #{_lambda_.6} parent=39 // pred_check
        %p278 = pneg %p277
      $region42: #{_lambda_.6} parent=39 // pred_check_branch
        %280 = sbr.rel (%p278) target = $region44
      $region43: #{_lambda_.6} parent=39 // pred_region
        %v281 = vld [vmem:[%s265] sm:$0xff]
        %v282 = vld [vmem:[%s265 + $0x8] sm:$0xff]
        %v283 = vld [vmem:[%s265 + $0x10] sm:$0xff]
        %v284 = vld [vmem:[%s265 + $0x18] sm:$0xff]
        %v285 = vld [vmem:[%s2] sm:$0xff]
        %v286 = vld [vmem:[%s2 + $0x8] sm:$0xff]
        %v287 = vld [vmem:[%s2 + $0x10] sm:$0xff]
        %v288 = vld [vmem:[%s2 + $0x18] sm:$0xff]
        %v289 = vld [vmem:[%s2 + $0x20] sm:$0xff]
        %v290 = vld [vmem:[%s2 + $0x28] sm:$0xff]
        %v291 = vld [vmem:[%s2 + $0x30] sm:$0xff]
        %v292 = vld [vmem:[%s2 + $0x38] sm:$0xff]
        %vm293 = vcmask 523264
        %v295 = vsel %vm293, %v281, 0
        %v298 = vsel %vm293, %v282, 0
        %v301 = vsel %vm293, %v283, 0
        %v304 = vsel %vm293, %v284, 0
        %306 = vmatprep.subr.mxu0 0.0
        %307 = vmatpush1.msra.mxu0 %v285
        %308 = vmatprep.subr.mxu0 0.0
        %309 = vmatpush1.msra.mxu0 %v286
        %310 = vmatprep.subr.mxu0 0.0
        %311 = vmatpush1.msra.mxu0 %v287
        %312 = vmatprep.subr.mxu0 0.0
        %313 = vmatpush1.msra.mxu0 %v288
        %314 = vmatprep.subr.mxu0 0.0
        %315 = vmatpush1.msra.mxu0 %v289
        %316 = vmatprep.subr.mxu0 0.0
        %317 = vmatpush1.msra.mxu0 %v290
        %318 = vmatprep.subr.mxu0 0.0
        %319 = vmatpush1.msra.mxu0 %v291
        %320 = vmatprep.subr.mxu0 0.0
        %321 = vmatpush1.msra.mxu0 %v292
        %322 = vmatprep.subr.mxu0 0.0
        %323 = vmatpush1.msra.mxu0 0.0
        %324 = vmatprep.subr.mxu0 0.0
        %325 = vmatpush1.msra.mxu0 0.0
        %326 = vmatprep.subr.mxu0 0.0
        %327 = vmatpush1.msra.mxu0 0.0
        %328 = vmatprep.subr.mxu0 0.0
        %329 = vmatpush1.msra.mxu0 0.0
        %330 = vmatprep.subr.mxu0 0.0
        %331 = vmatpush1.msra.mxu0 0.0
        %332 = vmatprep.subr.mxu0 0.0
        %333 = vmatpush1.msra.mxu0 0.0
        %334 = vmatprep.subr.mxu0 0.0
        %335 = vmatpush1.msra.mxu0 0.0
        %336 = vmatprep.subr.mxu0 0.0
        %337 = vmatpush1.msra.mxu0 0.0
        %338 = vmatprep.subr.mxu0 0.0
        %339 = vmatpush1.msra.mxu0 0.0
        %340 = vmatprep.subr.mxu0 0.0
        %341 = vmatpush1.msra.mxu0 0.0
        %342 = vmatprep.subr.mxu0 0.0
        %343 = vmatpush1.msra.mxu0 0.0
        %344 = vmatprep.subr.mxu0 0.0
        %345 = vmatpush1.msra.mxu0 0.0
        %346 = vmatprep.subr.mxu0 0.0
        %347 = vmatpush1.msra.mxu0 0.0
        %348 = vmatprep.subr.mxu0 0.0
        %349 = vmatpush1.msra.mxu0 0.0
        %350 = vmatprep.subr.mxu0 0.0
        %351 = vmatpush1.msra.mxu0 0.0
        %352 = vmatprep.subr.mxu0 0.0
        %353 = vmatpush1.msra.mxu0 0.0
        %354 = vmatprep.subr.mxu0 0.0
        %355 = vmatpush1.msra.mxu0 0.0
        %356 = vmatprep.subr.mxu0 0.0
        %357 = vmatpush1.msra.mxu0 0.0
        %358 = vmatprep.subr.mxu0 0.0
        %359 = vmatpush1.msra.mxu0 0.0
        %360 = vmatprep.subr.mxu0 0.0
        %361 = vmatpush1.msra.mxu0 0.0
        %362 = vmatprep.subr.mxu0 0.0
        %363 = vmatpush1.msra.mxu0 0.0
        %364 = vmatprep.subr.mxu0 0.0
        %365 = vmatpush1.msra.mxu0 0.0
        %366 = vmatprep.subr.mxu0 0.0
        %367 = vmatpush1.msra.mxu0 0.0
        %368 = vmatprep.subr.mxu0 0.0
        %369 = vmatpush1.msra.mxu0 0.0
        %370 = vmatprep.mubr.f32.mxu0 0.0
        %371 = vmatmul.mubr.f32.gmra.mrb[0].mxu0 %v295
        %v372 = vpop.f32.mrb[0].mxu0
        %v373 = vadd.f32 0.0, %v372
        %v374 = vpop.f32.mrb[0].mxu0
        %375 = vmatprep.mubr.f32.mxu0 0.0
        %376 = vmatmul.mubr.f32.gmra.mrb[0].mxu0 %v298
        %v377 = vpop.f32.mrb[0].mxu0
        %v378 = vadd.f32 0.0, %v377
        %v379 = vpop.f32.mrb[0].mxu0
        %380 = vmatprep.mubr.f32.mxu0 0.0
        %381 = vmatmul.mubr.f32.gmra.mrb[0].mxu0 %v301
        %v382 = vpop.f32.mrb[0].mxu0
        %v383 = vadd.f32 0.0, %v382
        %v384 = vpop.f32.mrb[0].mxu0
        %385 = vmatprep.mubr.f32.mxu0 0.0
        %386 = vmatmul.mubr.f32.gmra.mrb[0].mxu0 %v304
        %v387 = vpop.f32.mrb[0].mxu0
        %v388 = vadd.f32 0.0, %v387
        %v389 = vpop.f32.mrb[0].mxu0
        %390 = vdwg.mxu0
        %v391 = vpack.c.bf16 %v378, %v373
        %v392 = vpack.c.bf16 %v388, %v383
        %393 = vst.msk [vmem:[#allocation2] sm:$0xff] %vm293, %v391
        %394 = vst.msk [vmem:[#allocation2 + $0x8] sm:$0xff] %vm293, %v392
      $region44: #{_lambda_.6} parent=39 // pred_fallthru
        _
      %v395 = vld [vmem:[%s260] sm:$0xff]
      %v396 = vlaneseq
      %v397 = vand.u32 %v396, 127
      %v398 = vlaneseq
      %v399 = vshrl.u32 %v398, 7
      %v400 = vsub.s32 0, %v399
      %v401 = vrot.slane %v395, %v400
      %403 = vbcast.lane.b32.xlu0 %v401, 256
      %v404 = vpop.permute.xlu0 %403
      %s406 = sor.u32 256, 8
      %407 = vbcast.lane.b32.xlu0 %v401, %s406
      %v408 = vpop.permute.xlu0 %407
      %s410 = sor.u32 256, 16
      %411 = vbcast.lane.b32.xlu0 %v401, %s410
      %v412 = vpop.permute.xlu0 %411
      %s414 = sor.u32 256, 24
      %415 = vbcast.lane.b32.xlu0 %v401, %s414
      %v416 = vpop.permute.xlu0 %415
      %v417 = vlaneseq
      %v418 = vshrl.u32 %v417, 7
      %v419 = vsub.s32 1, %v418
      %v420 = vrot.slane %v395, %v419
      %422 = vbcast.lane.b32.xlu0 %v420, 256
      %v423 = vpop.permute.xlu0 %422
      %s425 = sor.u32 256, 8
      %426 = vbcast.lane.b32.xlu0 %v420, %s425
      %v427 = vpop.permute.xlu0 %426
      %s429 = sor.u32 256, 16
      %430 = vbcast.lane.b32.xlu0 %v420, %s429
      %v431 = vpop.permute.xlu0 %430
      %s433 = sor.u32 256, 24
      %434 = vbcast.lane.b32.xlu0 %v420, %s433
      %v435 = vpop.permute.xlu0 %434
      %v436 = vlaneseq
      %v437 = vshrl.u32 %v436, 7
      %v438 = vsub.s32 2, %v437
      %v439 = vrot.slane %v395, %v438
      %441 = vbcast.lane.b32.xlu0 %v439, 256
      %v442 = vpop.permute.xlu0 %441
      %s444 = sor.u32 256, 8
      %445 = vbcast.lane.b32.xlu0 %v439, %s444
      %v446 = vpop.permute.xlu0 %445
      %s448 = sor.u32 256, 16
      %449 = vbcast.lane.b32.xlu0 %v439, %s448
      %v450 = vpop.permute.xlu0 %449
      %s452 = sor.u32 256, 24
      %453 = vbcast.lane.b32.xlu0 %v439, %s452
      %v454 = vpop.permute.xlu0 %453
      %v455 = vlaneseq
      %v456 = vshrl.u32 %v455, 7
      %v457 = vsub.s32 3, %v456
      %v458 = vrot.slane %v395, %v457
      %460 = vbcast.lane.b32.xlu0 %v458, 256
      %v461 = vpop.permute.xlu0 %460
      %s463 = sor.u32 256, 8
      %464 = vbcast.lane.b32.xlu0 %v458, %s463
      %v465 = vpop.permute.xlu0 %464
      %s467 = sor.u32 256, 16
      %468 = vbcast.lane.b32.xlu0 %v458, %s467
      %v469 = vpop.permute.xlu0 %468
      %s471 = sor.u32 256, 24
      %472 = vbcast.lane.b32.xlu0 %v458, %s471
      %v473 = vpop.permute.xlu0 %472
      %v474 = vlaneseq
      %v475 = vshrl.u32 %v474, 7
      %v476 = vsub.s32 4, %v475
      %v477 = vrot.slane %v395, %v476
      %479 = vbcast.lane.b32.xlu0 %v477, 256
      %v480 = vpop.permute.xlu0 %479
      %s482 = sor.u32 256, 8
      %483 = vbcast.lane.b32.xlu0 %v477, %s482
      %v484 = vpop.permute.xlu0 %483
      %s486 = sor.u32 256, 16
      %487 = vbcast.lane.b32.xlu0 %v477, %s486
      %v488 = vpop.permute.xlu0 %487
      %s490 = sor.u32 256, 24
      %491 = vbcast.lane.b32.xlu0 %v477, %s490
      %v492 = vpop.permute.xlu0 %491
      %v493 = vlaneseq
      %v494 = vshrl.u32 %v493, 7
      %v495 = vsub.s32 5, %v494
      %v496 = vrot.slane %v395, %v495
      %498 = vbcast.lane.b32.xlu0 %v496, 256
      %v499 = vpop.permute.xlu0 %498
      %s501 = sor.u32 256, 8
      %502 = vbcast.lane.b32.xlu0 %v496, %s501
      %v503 = vpop.permute.xlu0 %502
      %s505 = sor.u32 256, 16
      %506 = vbcast.lane.b32.xlu0 %v496, %s505
      %v507 = vpop.permute.xlu0 %506
      %s509 = sor.u32 256, 24
      %510 = vbcast.lane.b32.xlu0 %v496, %s509
      %v511 = vpop.permute.xlu0 %510
      %v512 = vlaneseq
      %v513 = vshrl.u32 %v512, 7
      %v514 = vsub.s32 6, %v513
      %v515 = vrot.slane %v395, %v514
      %517 = vbcast.lane.b32.xlu0 %v515, 256
      %v518 = vpop.permute.xlu0 %517
      %s520 = sor.u32 256, 8
      %521 = vbcast.lane.b32.xlu0 %v515, %s520
      %v522 = vpop.permute.xlu0 %521
      %s524 = sor.u32 256, 16
      %525 = vbcast.lane.b32.xlu0 %v515, %s524
      %v526 = vpop.permute.xlu0 %525
      %s528 = sor.u32 256, 24
      %529 = vbcast.lane.b32.xlu0 %v515, %s528
      %v530 = vpop.permute.xlu0 %529
      %v531 = vlaneseq
      %v532 = vshrl.u32 %v531, 7
      %v533 = vsub.s32 7, %v532
      %v534 = vrot.slane %v395, %v533
      %536 = vbcast.lane.b32.xlu0 %v534, 256
      %v537 = vpop.permute.xlu0 %536
      %s539 = sor.u32 256, 8
      %540 = vbcast.lane.b32.xlu0 %v534, %s539
      %v541 = vpop.permute.xlu0 %540
      %s543 = sor.u32 256, 16
      %544 = vbcast.lane.b32.xlu0 %v534, %s543
      %v545 = vpop.permute.xlu0 %544
      %s547 = sor.u32 256, 24
      %548 = vbcast.lane.b32.xlu0 %v534, %s547
      %v549 = vpop.permute.xlu0 %548
      %vm550 = vcmp.eq.s32.totalorder %v397, %v404
      %vm551 = vcmp.eq.s32.totalorder %v397, %v408
      %vm552 = vcmp.eq.s32.totalorder %v397, %v412
      %vm553 = vcmp.eq.s32.totalorder %v397, %v416
      %vm554 = vcmp.eq.s32.totalorder %v397, %v423
      %vm555 = vcmp.eq.s32.totalorder %v397, %v427
      %vm556 = vcmp.eq.s32.totalorder %v397, %v431
      %vm557 = vcmp.eq.s32.totalorder %v397, %v435
      %vm558 = vcmp.eq.s32.totalorder %v397, %v442
      %vm559 = vcmp.eq.s32.totalorder %v397, %v446
      %vm560 = vcmp.eq.s32.totalorder %v397, %v450
      %vm561 = vcmp.eq.s32.totalorder %v397, %v454
      %vm562 = vcmp.eq.s32.totalorder %v397, %v461
      %vm563 = vcmp.eq.s32.totalorder %v397, %v465
      %vm564 = vcmp.eq.s32.totalorder %v397, %v469
      %vm565 = vcmp.eq.s32.totalorder %v397, %v473
      %vm566 = vcmp.eq.s32.totalorder %v397, %v480
      %vm567 = vcmp.eq.s32.totalorder %v397, %v484
      %vm568 = vcmp.eq.s32.totalorder %v397, %v488
      %vm569 = vcmp.eq.s32.totalorder %v397, %v492
      %vm570 = vcmp.eq.s32.totalorder %v397, %v499
      %vm571 = vcmp.eq.s32.totalorder %v397, %v503
      %vm572 = vcmp.eq.s32.totalorder %v397, %v507
      %vm573 = vcmp.eq.s32.totalorder %v397, %v511
      %vm574 = vcmp.eq.s32.totalorder %v397, %v518
      %vm575 = vcmp.eq.s32.totalorder %v397, %v522
      %vm576 = vcmp.eq.s32.totalorder %v397, %v526
      %vm577 = vcmp.eq.s32.totalorder %v397, %v530
      %vm578 = vcmp.eq.s32.totalorder %v397, %v537
      %vm579 = vcmp.eq.s32.totalorder %v397, %v541
      %vm580 = vcmp.eq.s32.totalorder %v397, %v545
      %vm581 = vcmp.eq.s32.totalorder %v397, %v549
      %v582 = vsel %vm550, 1, 0
      %v583 = vsel %vm551, 1, 0
      %v584 = vsel %vm552, 1, 0
      %v585 = vsel %vm553, 1, 0
      %v586 = vsel %vm554, 1, 0
      %v587 = vsel %vm555, 1, 0
      %v588 = vsel %vm556, 1, 0
      %v589 = vsel %vm557, 1, 0
      %v590 = vsel %vm558, 1, 0
      %v591 = vsel %vm559, 1, 0
      %v592 = vsel %vm560, 1, 0
      %v593 = vsel %vm561, 1, 0
      %v594 = vsel %vm562, 1, 0
      %v595 = vsel %vm563, 1, 0
      %v596 = vsel %vm564, 1, 0
      %v597 = vsel %vm565, 1, 0
      %v598 = vsel %vm566, 1, 0
      %v599 = vsel %vm567, 1, 0
      %v600 = vsel %vm568, 1, 0
      %v601 = vsel %vm569, 1, 0
      %v602 = vsel %vm570, 1, 0
      %v603 = vsel %vm571, 1, 0
      %v604 = vsel %vm572, 1, 0
      %v605 = vsel %vm573, 1, 0
      %v606 = vsel %vm574, 1, 0
      %v607 = vsel %vm575, 1, 0
      %v608 = vsel %vm576, 1, 0
      %v609 = vsel %vm577, 1, 0
      %v610 = vsel %vm578, 1, 0
      %v611 = vsel %vm579, 1, 0
      %v612 = vsel %vm580, 1, 0
      %v613 = vsel %vm581, 1, 0
      %v614 = vcvt.s32.f32 %v582
      %v615 = vcvt.s32.f32 %v583
      %v616 = vcvt.s32.f32 %v584
      %v617 = vcvt.s32.f32 %v585
      %v618 = vcvt.s32.f32 %v586
      %v619 = vcvt.s32.f32 %v587
      %v620 = vcvt.s32.f32 %v588
      %v621 = vcvt.s32.f32 %v589
      %v622 = vcvt.s32.f32 %v590
      %v623 = vcvt.s32.f32 %v591
      %v624 = vcvt.s32.f32 %v592
      %v625 = vcvt.s32.f32 %v593
      %v626 = vcvt.s32.f32 %v594
      %v627 = vcvt.s32.f32 %v595
      %v628 = vcvt.s32.f32 %v596
      %v629 = vcvt.s32.f32 %v597
      %v630 = vcvt.s32.f32 %v598
      %v631 = vcvt.s32.f32 %v599
      %v632 = vcvt.s32.f32 %v600
      %v633 = vcvt.s32.f32 %v601
      %v634 = vcvt.s32.f32 %v602
      %v635 = vcvt.s32.f32 %v603
      %v636 = vcvt.s32.f32 %v604
      %v637 = vcvt.s32.f32 %v605
      %v638 = vcvt.s32.f32 %v606
      %v639 = vcvt.s32.f32 %v607
      %v640 = vcvt.s32.f32 %v608
      %v641 = vcvt.s32.f32 %v609
      %v642 = vcvt.s32.f32 %v610
      %v643 = vcvt.s32.f32 %v611
      %v644 = vcvt.s32.f32 %v612
      %v645 = vcvt.s32.f32 %v613
      %v646 = vpack.c.bf16 %v615, %v614
      %v647 = vpack.c.bf16 %v617, %v616
      %v648 = vpack.c.bf16 %v619, %v618
      %v649 = vpack.c.bf16 %v621, %v620
      %v650 = vpack.c.bf16 %v623, %v622
      %v651 = vpack.c.bf16 %v625, %v624
      %v652 = vpack.c.bf16 %v627, %v626
      %v653 = vpack.c.bf16 %v629, %v628
      %v654 = vpack.c.bf16 %v631, %v630
      %v655 = vpack.c.bf16 %v633, %v632
      %v656 = vpack.c.bf16 %v635, %v634
      %v657 = vpack.c.bf16 %v637, %v636
      %v658 = vpack.c.bf16 %v639, %v638
      %v659 = vpack.c.bf16 %v641, %v640
      %v660 = vpack.c.bf16 %v643, %v642
      %v661 = vpack.c.bf16 %v645, %v644
      %v662 = vld [vmem:[#allocation2] sm:$0xff]
      %v663 = vld [vmem:[#allocation2 + $0x8] sm:$0xff]
      %vm664 = vcmask 261120
      %v666 = vsel %vm664, %v646, 0
      %v669 = vsel %vm664, %v647, 0
      %v672 = vsel %vm664, %v648, 0
      %v675 = vsel %vm664, %v649, 0
      %v678 = vsel %vm664, %v650, 0
      %v681 = vsel %vm664, %v651, 0
      %v684 = vsel %vm664, %v652, 0
      %v687 = vsel %vm664, %v653, 0
      %v690 = vsel %vm664, %v654, 0
      %v693 = vsel %vm664, %v655, 0
      %v696 = vsel %vm664, %v656, 0
      %v699 = vsel %vm664, %v657, 0
      %v702 = vsel %vm664, %v658, 0
      %v705 = vsel %vm664, %v659, 0
      %v708 = vsel %vm664, %v660, 0
      %v711 = vsel %vm664, %v661, 0
      %713 = vmatprep.subr.bf16.mxu0 0
      %714 = vmatpush1.bf16.msra.mxu0 %v662
      %715 = vmatprep.subr.bf16.mxu0 0
      %716 = vmatpush1.bf16.msra.mxu0 %v663
      %717 = vmatprep.subr.bf16.mxu0 0
      %718 = vmatpush1.bf16.msra.mxu0 0
      %719 = vmatprep.subr.bf16.mxu0 0
      %720 = vmatpush1.bf16.msra.mxu0 0
      %721 = vmatprep.subr.bf16.mxu0 0
      %722 = vmatpush1.bf16.msra.mxu0 0
      %723 = vmatprep.subr.bf16.mxu0 0
      %724 = vmatpush1.bf16.msra.mxu0 0
      %725 = vmatprep.subr.bf16.mxu0 0
      %726 = vmatpush1.bf16.msra.mxu0 0
      %727 = vmatprep.subr.bf16.mxu0 0
      %728 = vmatpush1.bf16.msra.mxu0 0
      %729 = vmatprep.subr.bf16.mxu0 0
      %730 = vmatpush1.bf16.msra.mxu0 0
      %731 = vmatprep.subr.bf16.mxu0 0
      %732 = vmatpush1.bf16.msra.mxu0 0
      %733 = vmatprep.subr.bf16.mxu0 0
      %734 = vmatpush1.bf16.msra.mxu0 0
      %735 = vmatprep.subr.bf16.mxu0 0
      %736 = vmatpush1.bf16.msra.mxu0 0
      %737 = vmatprep.subr.bf16.mxu0 0
      %738 = vmatpush1.bf16.msra.mxu0 0
      %739 = vmatprep.subr.bf16.mxu0 0
      %740 = vmatpush1.bf16.msra.mxu0 0
      %741 = vmatprep.subr.bf16.mxu0 0
      %742 = vmatpush1.bf16.msra.mxu0 0
      %743 = vmatprep.subr.bf16.mxu0 0
      %744 = vmatpush1.bf16.msra.mxu0 0
      %745 = vmatprep.mubr.bf16.mxu0 0
      %746 = vmatmul.mubr.bf16.gmra.mrb[0].mxu0 %v666
      %v747 = vpop.f32.mrb[0].mxu0
      %v748 = vadd.f32 0.0, %v747
      %v749 = vpop.f32.mrb[0].mxu0
      %v750 = vpop.f32.mrb[0].mxu0
      %v751 = vadd.f32 0.0, %v750
      %v752 = vpop.f32.mrb[0].mxu0
      %753 = vmatprep.mubr.bf16.mxu0 0
      %754 = vmatmul.mubr.bf16.gmra.mrb[0].mxu0 %v669
      %v755 = vpop.f32.mrb[0].mxu0
      %v756 = vadd.f32 0.0, %v755
      %v757 = vpop.f32.mrb[0].mxu0
      %v758 = vpop.f32.mrb[0].mxu0
      %v759 = vadd.f32 0.0, %v758
      %v760 = vpop.f32.mrb[0].mxu0
      %761 = vmatprep.mubr.bf16.mxu0 0
      %762 = vmatmul.mubr.bf16.gmra.mrb[0].mxu0 %v672
      %v763 = vpop.f32.mrb[0].mxu0
      %v764 = vadd.f32 0.0, %v763
      %v765 = vpop.f32.mrb[0].mxu0
      %v766 = vpop.f32.mrb[0].mxu0
      %v767 = vadd.f32 0.0, %v766
      %v768 = vpop.f32.mrb[0].mxu0
      %769 = vmatprep.mubr.bf16.mxu0 0
      %770 = vmatmul.mubr.bf16.gmra.mrb[0].mxu0 %v675
      %v771 = vpop.f32.mrb[0].mxu0
      %v772 = vadd.f32 0.0, %v771
      %v773 = vpop.f32.mrb[0].mxu0
      %v774 = vpop.f32.mrb[0].mxu0
      %v775 = vadd.f32 0.0, %v774
      %v776 = vpop.f32.mrb[0].mxu0
      %777 = vmatprep.mubr.bf16.mxu0 0
      %778 = vmatmul.mubr.bf16.gmra.mrb[0].mxu0 %v678
      %v779 = vpop.f32.mrb[0].mxu0
      %v780 = vadd.f32 0.0, %v779
      %v781 = vpop.f32.mrb[0].mxu0
      %v782 = vpop.f32.mrb[0].mxu0
      %v783 = vadd.f32 0.0, %v782
      %v784 = vpop.f32.mrb[0].mxu0
      %785 = vmatprep.mubr.bf16.mxu0 0
      %786 = vmatmul.mubr.bf16.gmra.mrb[0].mxu0 %v681
      %v787 = vpop.f32.mrb[0].mxu0
      %v788 = vadd.f32 0.0, %v787
      %v789 = vpop.f32.mrb[0].mxu0
      %v790 = vpop.f32.mrb[0].mxu0
      %v791 = vadd.f32 0.0, %v790
      %v792 = vpop.f32.mrb[0].mxu0
      %793 = vmatprep.mubr.bf16.mxu0 0
      %794 = vmatmul.mubr.bf16.gmra.mrb[0].mxu0 %v684
      %v795 = vpop.f32.mrb[0].mxu0
      %v796 = vadd.f32 0.0, %v795
      %v797 = vpop.f32.mrb[0].mxu0
      %v798 = vpop.f32.mrb[0].mxu0
      %v799 = vadd.f32 0.0, %v798
      %v800 = vpop.f32.mrb[0].mxu0
      %801 = vmatprep.mubr.bf16.mxu0 0
      %802 = vmatmul.mubr.bf16.gmra.mrb[0].mxu0 %v687
      %v803 = vpop.f32.mrb[0].mxu0
      %v804 = vadd.f32 0.0, %v803
      %v805 = vpop.f32.mrb[0].mxu0
      %v806 = vpop.f32.mrb[0].mxu0
      %v807 = vadd.f32 0.0, %v806
      %v808 = vpop.f32.mrb[0].mxu0
      %809 = vmatprep.mubr.bf16.mxu0 0
      %810 = vmatmul.mubr.bf16.gmra.mrb[0].mxu0 %v690
      %v811 = vpop.f32.mrb[0].mxu0
      %v812 = vadd.f32 0.0, %v811
      %v813 = vpop.f32.mrb[0].mxu0
      %v814 = vpop.f32.mrb[0].mxu0
      %v815 = vadd.f32 0.0, %v814
      %v816 = vpop.f32.mrb[0].mxu0
      %817 = vmatprep.mubr.bf16.mxu0 0
      %818 = vmatmul.mubr.bf16.gmra.mrb[0].mxu0 %v693
      %v819 = vpop.f32.mrb[0].mxu0
      %v820 = vadd.f32 0.0, %v819
      %v821 = vpop.f32.mrb[0].mxu0
      %v822 = vpop.f32.mrb[0].mxu0
      %v823 = vadd.f32 0.0, %v822
      %v824 = vpop.f32.mrb[0].mxu0
      %825 = vmatprep.mubr.bf16.mxu0 0
      %826 = vmatmul.mubr.bf16.gmra.mrb[0].mxu0 %v696
      %v827 = vpop.f32.mrb[0].mxu0
      %v828 = vadd.f32 0.0, %v827
      %v829 = vpop.f32.mrb[0].mxu0
      %v830 = vpop.f32.mrb[0].mxu0
      %v831 = vadd.f32 0.0, %v830
      %v832 = vpop.f32.mrb[0].mxu0
      %833 = vmatprep.mubr.bf16.mxu0 0
      %834 = vmatmul.mubr.bf16.gmra.mrb[0].mxu0 %v699
      %v835 = vpop.f32.mrb[0].mxu0
      %v836 = vadd.f32 0.0, %v835
      %v837 = vpop.f32.mrb[0].mxu0
      %v838 = vpop.f32.mrb[0].mxu0
      %v839 = vadd.f32 0.0, %v838
      %v840 = vpop.f32.mrb[0].mxu0
      %841 = vmatprep.mubr.bf16.mxu0 0
      %842 = vmatmul.mubr.bf16.gmra.mrb[0].mxu0 %v702
      %v843 = vpop.f32.mrb[0].mxu0
      %v844 = vadd.f32 0.0, %v843
      %v845 = vpop.f32.mrb[0].mxu0
      %v846 = vpop.f32.mrb[0].mxu0
      %v847 = vadd.f32 0.0, %v846
      %v848 = vpop.f32.mrb[0].mxu0
      %849 = vmatprep.mubr.bf16.mxu0 0
      %850 = vmatmul.mubr.bf16.gmra.mrb[0].mxu0 %v705
      %v851 = vpop.f32.mrb[0].mxu0
      %v852 = vadd.f32 0.0, %v851
      %v853 = vpop.f32.mrb[0].mxu0
      %v854 = vpop.f32.mrb[0].mxu0
      %v855 = vadd.f32 0.0, %v854
      %v856 = vpop.f32.mrb[0].mxu0
      %857 = vmatprep.mubr.bf16.mxu0 0
      %858 = vmatmul.mubr.bf16.gmra.mrb[0].mxu0 %v708
      %v859 = vpop.f32.mrb[0].mxu0
      %v860 = vadd.f32 0.0, %v859
      %v861 = vpop.f32.mrb[0].mxu0
      %v862 = vpop.f32.mrb[0].mxu0
      %v863 = vadd.f32 0.0, %v862
      %v864 = vpop.f32.mrb[0].mxu0
      %865 = vmatprep.mubr.bf16.mxu0 0
      %866 = vmatmul.mubr.bf16.gmra.mrb[0].mxu0 %v711
      %v867 = vpop.f32.mrb[0].mxu0
      %v868 = vadd.f32 0.0, %v867
      %v869 = vpop.f32.mrb[0].mxu0
      %v870 = vpop.f32.mrb[0].mxu0
      %v871 = vadd.f32 0.0, %v870
      %v872 = vpop.f32.mrb[0].mxu0
      %873 = vdwg.mxu0
      %vm874 = vcmask 523264
      %v875 = vsel %vm874, %v748, -inf
      %v876 = vsel %vm874, %v764, -inf
      %v877 = vmax.f32 %v875, %v876
      %v878 = vsel %vm874, %v780, -inf
      %v879 = vmax.f32 %v877, %v878
      %v880 = vsel %vm874, %v796, -inf
      %v881 = vmax.f32 %v879, %v880
      %v882 = vsel %vm874, %v812, -inf
      %v883 = vmax.f32 %v881, %v882
      %v884 = vsel %vm874, %v828, -inf
      %v885 = vmax.f32 %v883, %v884
      %v886 = vsel %vm874, %v844, -inf
      %v887 = vmax.f32 %v885, %v886
      %v888 = vsel %vm874, %v860, -inf
      %v889 = vmax.f32 %v887, %v888
      %v890 = vsel %vm874, %v751, -inf
      %v891 = vsel %vm874, %v767, -inf
      %v892 = vmax.f32 %v890, %v891
      %v893 = vsel %vm874, %v783, -inf
      %v894 = vmax.f32 %v892, %v893
      %v895 = vsel %vm874, %v799, -inf
      %v896 = vmax.f32 %v894, %v895
      %v897 = vsel %vm874, %v815, -inf
      %v898 = vmax.f32 %v896, %v897
      %v899 = vsel %vm874, %v831, -inf
      %v900 = vmax.f32 %v898, %v899
      %v901 = vsel %vm874, %v847, -inf
      %v902 = vmax.f32 %v900, %v901
      %v903 = vsel %vm874, %v863, -inf
      %v904 = vmax.f32 %v902, %v903
      %v905 = vsel %vm874, %v756, -inf
      %v906 = vsel %vm874, %v772, -inf
      %v907 = vmax.f32 %v905, %v906
      %v908 = vsel %vm874, %v788, -inf
      %v909 = vmax.f32 %v907, %v908
      %v910 = vsel %vm874, %v804, -inf
      %v911 = vmax.f32 %v909, %v910
      %v912 = vsel %vm874, %v820, -inf
      %v913 = vmax.f32 %v911, %v912
      %v914 = vsel %vm874, %v836, -inf
      %v915 = vmax.f32 %v913, %v914
      %v916 = vsel %vm874, %v852, -inf
      %v917 = vmax.f32 %v915, %v916
      %v918 = vsel %vm874, %v868, -inf
      %v919 = vmax.f32 %v917, %v918
      %v920 = vsel %vm874, %v759, -inf
      %v921 = vsel %vm874, %v775, -inf
      %v922 = vmax.f32 %v920, %v921
      %v923 = vsel %vm874, %v791, -inf
      %v924 = vmax.f32 %v922, %v923
      %v925 = vsel %vm874, %v807, -inf
      %v926 = vmax.f32 %v924, %v925
      %v927 = vsel %vm874, %v823, -inf
      %v928 = vmax.f32 %v926, %v927
      %v929 = vsel %vm874, %v839, -inf
      %v930 = vmax.f32 %v928, %v929
      %v931 = vsel %vm874, %v855, -inf
      %v932 = vmax.f32 %v930, %v931
      %v933 = vsel %vm874, %v871, -inf
      %v934 = vmax.f32 %v932, %v933
      %s935 = smul.u32 %s21, 32
      %s936 = sshra.s32 %s935, 4
      %s937 = sand.u32 %s935, 15
      %s938 = smul.addr %s936, 8
      %s939 = scalar_lea.vmem [#allocation2], %s938
      %v940 = vld [vmem:[%s939] sm:$0xff]
      %v941 = vld [vmem:[%s939 + $0x8] sm:$0xff]
      %v942 = vunpack.c.l.bf16 %v940
      %v943 = vunpack.c.h.bf16 %v940
      %v944 = vunpack.c.l.bf16 %v941
      %v945 = vunpack.c.h.bf16 %v941
      %v946 = vsub.f32 %v889, %v942
      %v947 = vsub.f32 %v904, %v943
      %v948 = vsub.f32 %v919, %v944
      %v949 = vsub.f32 %v934, %v945
      %v950 = vld [vmem:[%s3] sm:$0x1]
      %v952 = vlaneseq
      %v953 = vshrl.u32 %v952, 7
      %v954 = vsub.s32 0, %v953
      %v955 = vrot.slane %v950, %v954
      %v957 = vmul.f32 %v946, %v955
      %v958 = vmul.f32 %v947, %v955
      %v959 = vmul.f32 %v948, %v955
      %v960 = vmul.f32 %v949, %v955
      %v961 = vld [vmem:[%s4] sm:$0x1]
      %v963 = vlaneseq
      %v964 = vshrl.u32 %v963, 7
      %v965 = vsub.s32 0, %v964
      %v966 = vrot.slane %v961, %v965
      %v968 = vadd.f32 %v957, %v966
      %v969 = vadd.f32 %v958, %v966
      %v970 = vadd.f32 %v959, %v966
      %v971 = vadd.f32 %v960, %v966
      %vm972 = vcmp.gt.f32.partialorder %v968, 0.0
      %vm973 = vcmp.gt.f32.partialorder %v969, 0.0
      %vm974 = vcmp.gt.f32.partialorder %v970, 0.0
      %vm975 = vcmp.gt.f32.partialorder %v971, 0.0
      %v976 = vmul.f32 %v968, 0.2
      %v977 = vmul.f32 %v969, 0.2
      %v978 = vmul.f32 %v970, 0.2
      %v979 = vmul.f32 %v971, 0.2
      %v980 = vsel %vm972, %v968, %v976
      %v981 = vsel %vm973, %v969, %v977
      %v982 = vsel %vm974, %v970, %v978
      %v983 = vsel %vm975, %v971, %v979
      %984 = vst.msk [vmem:[%s274] sm:$0xff] %vm874, %v980
      %985 = vst.msk [vmem:[%s274 + $0x8] sm:$0xff] %vm874, %v981
      %986 = vst.msk [vmem:[%s274 + $0x10] sm:$0xff] %vm874, %v982
      %987 = vst.msk [vmem:[%s274 + $0x18] sm:$0xff] %vm874, %v983
      %s988 = smul.u32 4, %s21
      %p989 = scmp.lt.s32.totalorder %s20, 1
      %s990 = scalar_select %p989, %s20, 1
      %p991 = scmp.lt.s32.totalorder %s988, 3
      %s992 = scalar_select %p991, %s988, 3
      %s993 = smul.addr %s990, 4
      %s994 = sadd.s32 %s992, %s993
      %s995 = smul.addr %s994, 8
      %s996 = scalar_lea.vmem %s5, %s995
      // Predicated region
      $region45: #{_lambda_.6} parent=39 // pred_check
        %p997 = pneg %p165
      $region46: #{_lambda_.6} parent=39 // pred_check_branch
        %999 = sbr.rel (%p997) target = $region48
      $region47: #{_lambda_.6} parent=39 // pred_region
        %s1000 = smul.u32 4, %s21
      $region48: #{_lambda_.6} parent=39 // pred_fallthru
        _
    $region40: #{_lambda_.6} parent=5 // pred_fallthru
      _
    %p1001 = scmp.le.s32.totalorder 2, %s11
    // Predicated region
    $region49: #{_lambda_.6} parent=5 // pred_check
      %p1002 = pneg %p1001
    $region50: #{_lambda_.6} parent=5 // pred_check_branch
      %1004 = sbr.rel (%p1002) target = $region52
    $region51: #{_lambda_.6} parent=5 // pred_region
      %s1005 = ssub.s32 %s11, 2
      // Predicated region
      $region53: #{_lambda_.6} parent=51 // pred_check
        %p1006 = pneg %p171
      $region54: #{_lambda_.6} parent=51 // pred_check_branch
        %1008 = sbr.rel (%p1006) target = $region56
      $region55: #{_lambda_.6} parent=51 // pred_region
        %s1009 = smul.u32 4, %s23
        %p1010 = scmp.lt.s32.totalorder %s22, 1
        %s1011 = scalar_select %p1010, %s22, 1
        %p1012 = scmp.lt.s32.totalorder %s1009, 3
        %s1013 = scalar_select %p1012, %s1009, 3
        %s1014 = smul.addr %s1011, 4
        %s1015 = sadd.s32 %s1013, %s1014
        %s1016 = smul.addr %s1015, 8
        %s1017 = scalar_lea.vmem %s5, %s1016
      $region56: #{_lambda_.6} parent=51 // pred_fallthru
        _
    $region52: #{_lambda_.6} parent=5 // pred_fallthru
      _
  $region6: #{_lambda_.6} parent=0 // loop_footer
    %s15 = sadd.s32 1, %s11
  $region7: #{_lambda_.6} parent=0 // loop_footer_branch
    %10 = sbr.rel target = $region3
  $region8: #{_lambda_.6} parent=0 // loop_exit
    _

// kernel: _lambda_.7
$region0: #{_lambda_.7}
  #allocation0 [shape = 'u32[]', space=smem, size = 0x4, offset = 0x4, fixed_abs, tag = 'smem constant byte address 0x4 - core index']
  #allocation1 [shape = 'u32[144,128]{1,0:T(1,128)}', space=vmem, size = 0x12000, scoped, tag = 'internal scratch']
  #allocation2 [shape = 'bf16[32,128]{1,0:T(16,128)(2,1)}', space=vmem, size = 0x2000, scoped, tag = 'scratch operand']
  %s0 = inlined_call_operand.vmem [shape: s32[2,8,32], index: 0, kind: input, shape index: {}]
  %s1 = inlined_call_operand.vmem [shape: f32[2,32,64], index: 1, kind: input, shape index: {}]
  %s2 = inlined_call_operand.vmem [shape: f32[64,128], index: 2, kind: input, shape index: {}]
  %s3 = inlined_call_operand.vmem [shape: f32[1,128], index: 3, kind: input, shape index: {}]
  %s4 = inlined_call_operand.vmem [shape: f32[1,128], index: 4, kind: input, shape index: {}]
  %s5 = inlined_call_operand.vmem [shape: f32[2,32,128], index: 5, kind: output, shape index: {}]
  %s6 = sld [smem:[#allocation0]]
  $region57: #{_lambda_.7} parent=0
    _
  %s8 = ssub.s32 1, %s6
  %s9 = scalar_select 0, %s8, %s6
  loop: start=0, step=1, limit=4
  $region2: #{_lambda_.7} parent=0 // loop_pre_header
    _
  $region3: #{_lambda_.7} parent=0 // loop_header
    %s11 = sphi 0, %s15
    %p12 = scmp.ge.s32.totalorder %s11, 4
    %s18 = sphi 0, %s30
    %s19 = sphi 0, %s26
    %s20 = sphi 0, %s18
    %s21 = sphi 0, %s19
    %s22 = sphi 0, %s20
    %s23 = sphi 0, %s21
    %s35 = sphi 0, %s37
    %s38 = sphi 0, %s35
    %s39 = sphi 0, %s38
    %s55 = sphi 0, %s39
    %s61 = sphi 0, %s63
    %s64 = sphi 0, %s61
    %s65 = sphi 0, %s64
    %s81 = sphi 0, %s65
    %s85 = sphi 0, %s85
    %s87 = sphi 0, %s85
    %s88 = sphi 0, %s87
    %s102 = sphi 0, %s88
    %s106 = sphi 0, %s106
    %s108 = sphi 0, %s106
    %s109 = sphi 0, %s108
    %s123 = sphi 0, %s109
    %s127 = sphi 0, %s127
    %s129 = sphi 0, %s127
    %s130 = sphi 0, %s129
    %s144 = sphi 0, %s130
    %s152 = sphi 0, %s154
    %s155 = sphi 0, %s152
    %s156 = sphi 0, %s155
    %s172 = sphi 0, %s156
  $region4: #{_lambda_.7} parent=0 // loop_header_branch
    %14 = sbr.rel (%p12) target = $region8
  $region5: #{_lambda_.7} parent=0 // loop_body
    %s16 = ssub.s32 %s11, 1
    %s17 = ssub.s32 %s11, 2
    %s24 = sadd.s32 1, %s19
    %p25 = scmp.ge.s32.totalorder %s24, 1
    %s26 = scalar_select %p25, 0, %s24
    %s27 = sadd.s32 1, %s18
    %s28 = scalar_select %p25, %s27, %s18
    %p29 = scmp.ge.s32.totalorder %s28, 2
    %s30 = scalar_select %p29, 0, %s28
    %s31 = ssub.s32 %s18, %s30
    %s32 = ssub.s32 %s19, %s26
    %s33 = sor.u32 %s31, %s32
    %p34 = scmp.eq.s32.totalorder %s33, 0
    %s36 = sadd.s32 %s35, 1
    %s37 = scalar_select %p34, %s35, %s36
    %p40 = pneg %p34
    %p41 = scmp.eq.s32.totalorder %s11, 1
    %p42 = por %p40, %p41
    %p43 = scmp.ne.s32.totalorder %s35, %s38
    %p44 = scmp.eq.s32.totalorder %s11, 0
    %p45 = por %p43, %p44
    %p46 = scmp.ne.s32.totalorder %s35, %s38
    %p47 = scmp.eq.s32.totalorder %s16, 1
    %p48 = por %p46, %p47
    %p49 = scmp.ne.s32.totalorder %s38, %s39
    %p50 = scmp.eq.s32.totalorder %s16, 0
    %p51 = por %p49, %p50
    %p52 = scmp.ne.s32.totalorder %s38, %s39
    %p53 = scmp.eq.s32.totalorder %s17, 1
    %p54 = por %p52, %p53
    %p56 = scmp.ne.s32.totalorder %s39, %s55
    %p57 = scmp.eq.s32.totalorder %s17, 0
    %p58 = por %p56, %p57
    %s59 = ssub.s32 %s18, %s30
    %p60 = scmp.eq.s32.totalorder %s59, 0
    %s62 = sadd.s32 %s61, 1
    %s63 = scalar_select %p60, %s61, %s62
    %p66 = pneg %p60
    %p67 = scmp.eq.s32.totalorder %s11, 1
    %p68 = por %p66, %p67
    %p69 = scmp.ne.s32.totalorder %s61, %s64
    %p70 = scmp.eq.s32.totalorder %s11, 0
    %p71 = por %p69, %p70
    %p72 = scmp.ne.s32.totalorder %s61, %s64
    %p73 = scmp.eq.s32.totalorder %s16, 1
    %p74 = por %p72, %p73
    %p75 = scmp.ne.s32.totalorder %s64, %s65
    %p76 = scmp.eq.s32.totalorder %s16, 0
    %p77 = por %p75, %p76
    %p78 = scmp.ne.s32.totalorder %s64, %s65
    %p79 = scmp.eq.s32.totalorder %s17, 1
    %p80 = por %p78, %p79
    %p82 = scmp.ne.s32.totalorder %s65, %s81
    %p83 = scmp.eq.s32.totalorder %s17, 0
    %p84 = por %p82, %p83
    %s86 = sadd.s32 %s85, 1
    %p89 = scmp.eq.s32.totalorder %s11, 1
    %p90 = scmp.ne.s32.totalorder %s85, %s87
    %p91 = scmp.eq.s32.totalorder %s11, 0
    %p92 = por %p90, %p91
    %p93 = scmp.ne.s32.totalorder %s85, %s87
    %p94 = scmp.eq.s32.totalorder %s16, 1
    %p95 = por %p93, %p94
    %p96 = scmp.ne.s32.totalorder %s87, %s88
    %p97 = scmp.eq.s32.totalorder %s16, 0
    %p98 = por %p96, %p97
    %p99 = scmp.ne.s32.totalorder %s87, %s88
    %p100 = scmp.eq.s32.totalorder %s17, 1
    %p101 = por %p99, %p100
    %p103 = scmp.ne.s32.totalorder %s88, %s102
    %p104 = scmp.eq.s32.totalorder %s17, 0
    %p105 = por %p103, %p104
    %s107 = sadd.s32 %s106, 1
    %p110 = scmp.eq.s32.totalorder %s11, 1
    %p111 = scmp.ne.s32.totalorder %s106, %s108
    %p112 = scmp.eq.s32.totalorder %s11, 0
    %p113 = por %p111, %p112
    %p114 = scmp.ne.s32.totalorder %s106, %s108
    %p115 = scmp.eq.s32.totalorder %s16, 1
    %p116 = por %p114, %p115
    %p117 = scmp.ne.s32.totalorder %s108, %s109
    %p118 = scmp.eq.s32.totalorder %s16, 0
    %p119 = por %p117, %p118
    %p120 = scmp.ne.s32.totalorder %s108, %s109
    %p121 = scmp.eq.s32.totalorder %s17, 1
    %p122 = por %p120, %p121
    %p124 = scmp.ne.s32.totalorder %s109, %s123
    %p125 = scmp.eq.s32.totalorder %s17, 0
    %p126 = por %p124, %p125
    %s128 = sadd.s32 %s127, 1
    %p131 = scmp.eq.s32.totalorder %s11, 1
    %p132 = scmp.ne.s32.totalorder %s127, %s129
    %p133 = scmp.eq.s32.totalorder %s11, 0
    %p134 = por %p132, %p133
    %p135 = scmp.ne.s32.totalorder %s127, %s129
    %p136 = scmp.eq.s32.totalorder %s16, 1
    %p137 = por %p135, %p136
    %p138 = scmp.ne.s32.totalorder %s129, %s130
    %p139 = scmp.eq.s32.totalorder %s16, 0
    %p140 = por %p138, %p139
    %p141 = scmp.ne.s32.totalorder %s129, %s130
    %p142 = scmp.eq.s32.totalorder %s17, 1
    %p143 = por %p141, %p142
    %p145 = scmp.ne.s32.totalorder %s130, %s144
    %p146 = scmp.eq.s32.totalorder %s17, 0
    %p147 = por %p145, %p146
    %s148 = ssub.s32 %s18, %s30
    %s149 = ssub.s32 %s19, %s26
    %s150 = sor.u32 %s148, %s149
    %p151 = scmp.eq.s32.totalorder %s150, 0
    %s153 = sadd.s32 %s152, 1
    %s154 = scalar_select %p151, %s152, %s153
    %p157 = pneg %p151
    %p158 = scmp.eq.s32.totalorder %s11, 1
    %p159 = por %p157, %p158
    %p160 = scmp.ne.s32.totalorder %s152, %s155
    %p161 = scmp.eq.s32.totalorder %s11, 0
    %p162 = por %p160, %p161
    %p163 = scmp.ne.s32.totalorder %s152, %s155
    %p164 = scmp.eq.s32.totalorder %s16, 1
    %p165 = por %p163, %p164
    %p166 = scmp.ne.s32.totalorder %s155, %s156
    %p167 = scmp.eq.s32.totalorder %s16, 0
    %p168 = por %p166, %p167
    %p169 = scmp.ne.s32.totalorder %s155, %s156
    %p170 = scmp.eq.s32.totalorder %s17, 1
    %p171 = por %p169, %p170
    %p173 = scmp.ne.s32.totalorder %s156, %s172
    %p174 = scmp.eq.s32.totalorder %s17, 0
    %p175 = por %p173, %p174
    %p176 = scmp.le.s32.totalorder 1, %s11
    %p177 = scmp.lt.s32.totalorder %s11, 3
    %p178 = pnand %p176, %p177
    %p179 = pneg %p178
    // Predicated region
    $region9: #{_lambda_.7} parent=5 // pred_check
      _
    $region10: #{_lambda_.7} parent=5 // pred_check_branch
      %181 = sbr.rel (%p178) target = $region12
    $region11: #{_lambda_.7} parent=5 // pred_region
      %s182 = ssub.s32 %s11, 1
      // Predicated region
      $region13: #{_lambda_.7} parent=11 // pred_check
        %p183 = pneg %p98
      $region14: #{_lambda_.7} parent=11 // pred_check_branch
        %185 = sbr.rel (%p183) target = $region16
      $region15: #{_lambda_.7} parent=11 // pred_region
        _
      $region16: #{_lambda_.7} parent=11 // pred_fallthru
        _
      // Predicated region
      $region17: #{_lambda_.7} parent=11 // pred_check
        %p186 = pneg %p119
      $region18: #{_lambda_.7} parent=11 // pred_check_branch
        %188 = sbr.rel (%p186) target = $region20
      $region19: #{_lambda_.7} parent=11 // pred_region
        _
      $region20: #{_lambda_.7} parent=11 // pred_fallthru
        _
      // Predicated region
      $region21: #{_lambda_.7} parent=11 // pred_check
        %p189 = pneg %p140
      $region22: #{_lambda_.7} parent=11 // pred_check_branch
        %191 = sbr.rel (%p189) target = $region24
      $region23: #{_lambda_.7} parent=11 // pred_region
        _
      $region24: #{_lambda_.7} parent=11 // pred_fallthru
        _
    $region12: #{_lambda_.7} parent=5 // pred_fallthru
      _
    %p192 = scmp.lt.s32.totalorder %s11, 2
    // Predicated region
    $region25: #{_lambda_.7} parent=5 // pred_check
      %p193 = pneg %p192
    $region26: #{_lambda_.7} parent=5 // pred_check_branch
      %195 = sbr.rel (%p193) target = $region28
    $region27: #{_lambda_.7} parent=5 // pred_region
      // Predicated region
      $region29: #{_lambda_.7} parent=27 // pred_check
        %p196 = pneg %p45
      $region30: #{_lambda_.7} parent=27 // pred_check_branch
        %198 = sbr.rel (%p196) target = $region32
      $region31: #{_lambda_.7} parent=27 // pred_region
        %p199 = scmp.lt.s32.totalorder %s18, 1
        %s200 = scalar_select %p199, %s18, 1
        %p201 = scmp.lt.s32.totalorder %s19, 0
        %s202 = scalar_select %p201, %s19, 0
        %s203 = sadd.s32 %s202, %s200
        %s204 = smul.addr %s203, 8
        %s205 = scalar_lea.vmem %s0, %s204
      $region32: #{_lambda_.7} parent=27 // pred_fallthru
        _
      // Predicated region
      $region33: #{_lambda_.7} parent=27 // pred_check
        %p206 = pneg %p71
      $region34: #{_lambda_.7} parent=27 // pred_check_branch
        %208 = sbr.rel (%p206) target = $region36
      $region35: #{_lambda_.7} parent=27 // pred_region
        %p209 = scmp.lt.s32.totalorder %s18, 1
        %s210 = scalar_select %p209, %s18, 1
        %s211 = smul.addr %s210, 4
        %s212 = smul.addr %s211, 8
        %s213 = scalar_lea.vmem %s1, %s212
      $region36: #{_lambda_.7} parent=27 // pred_fallthru
        _
    $region28: #{_lambda_.7} parent=5 // pred_fallthru
      _
    %p214 = scmp.le.s32.totalorder 1, %s11
    %p215 = scmp.lt.s32.totalorder %s11, 3
    %p216 = pnand %p214, %p215
    %p217 = pneg %p216
    // Predicated region
    $region37: #{_lambda_.7} parent=5 // pred_check
      _
    $region38: #{_lambda_.7} parent=5 // pred_check_branch
      %219 = sbr.rel (%p216) target = $region40
    $region39: #{_lambda_.7} parent=5 // pred_region
      %s220 = ssub.s32 %s11, 1
      %p221 = scmp.lt.s32.totalorder %s20, 1
      %s222 = scalar_select %p221, %s20, 1
      %p223 = scmp.lt.s32.totalorder %s21, 0
      %s224 = scalar_select %p223, %s21, 0
      %s225 = sadd.s32 %s224, %s222
      %s226 = smul.addr %s225, 8
      %s227 = scalar_lea.vmem %s0, %s226
      %p228 = pneg %p51
      %p229 = pneg %p48
      %p230 = scmp.lt.s32.totalorder %s20, 1
      %s231 = scalar_select %p230, %s20, 1
      %s232 = smul.addr %s231, 4
      %s233 = smul.addr %s232, 8
      %s234 = scalar_lea.vmem %s1, %s233
      %p235 = pneg %p77
      %p236 = pneg %p74
      %p237 = pneg %p98
      %p238 = pneg %p95
      %p239 = pneg %p119
      %p240 = pneg %p116
      %p241 = pneg %p140
      %p242 = pneg %p137
      %p243 = pneg %p168
      %p244 = pneg %p165
      %s245 = smul.u32 4, %s21
      %p246 = scmp.lt.s32.totalorder %s20, 1
      %s247 = scalar_select %p246, %s20, 1
      %p248 = scmp.lt.s32.totalorder %s245, 3
      %s249 = scalar_select %p248, %s245, 3
      %s250 = smul.addr %s247, 4
      %s251 = sadd.s32 %s249, %s250
      %s252 = smul.addr %s251, 8
      %s253 = scalar_lea.vmem %s5, %s252
      %p254 = scmp.lt.s32.totalorder %s20, 1
      %s255 = scalar_select %p254, %s20, 1
      %p256 = scmp.lt.s32.totalorder %s21, 0
      %s257 = scalar_select %p256, %s21, 0
      %s258 = sadd.s32 %s257, %s255
      %s259 = smul.addr %s258, 8
      %s260 = scalar_lea.vmem %s0, %s259
      %p261 = scmp.lt.s32.totalorder %s20, 1
      %s262 = scalar_select %p261, %s20, 1
      %s263 = smul.addr %s262, 4
      %s264 = smul.addr %s263, 8
      %s265 = scalar_lea.vmem %s1, %s264
      %s266 = smul.u32 4, %s21
      %p267 = scmp.lt.s32.totalorder %s20, 1
      %s268 = scalar_select %p267, %s20, 1
      %p269 = scmp.lt.s32.totalorder %s266, 3
      %s270 = scalar_select %p269, %s266, 3
      %s271 = smul.addr %s268, 4
      %s272 = sadd.s32 %s270, %s271
      %s273 = smul.addr %s272, 8
      %s274 = scalar_lea.vmem %s5, %s273
      %s275 = smul.u32 4, %s21
      %p277 = scmp.eq.s32.totalorder %s21, 0
      // Predicated region
      $region41: #{_lambda_.7} parent=39 // pred_check
        %p278 = pneg %p277
      $region42: #{_lambda_.7} parent=39 // pred_check_branch
        %280 = sbr.rel (%p278) target = $region44
      $region43: #{_lambda_.7} parent=39 // pred_region
        %v281 = vld [vmem:[%s265] sm:$0xff]
        %v282 = vld [vmem:[%s265 + $0x8] sm:$0xff]
        %v283 = vld [vmem:[%s265 + $0x10] sm:$0xff]
        %v284 = vld [vmem:[%s265 + $0x18] sm:$0xff]
        %v285 = vld [vmem:[%s2] sm:$0xff]
        %v286 = vld [vmem:[%s2 + $0x8] sm:$0xff]
        %v287 = vld [vmem:[%s2 + $0x10] sm:$0xff]
        %v288 = vld [vmem:[%s2 + $0x18] sm:$0xff]
        %v289 = vld [vmem:[%s2 + $0x20] sm:$0xff]
        %v290 = vld [vmem:[%s2 + $0x28] sm:$0xff]
        %v291 = vld [vmem:[%s2 + $0x30] sm:$0xff]
        %v292 = vld [vmem:[%s2 + $0x38] sm:$0xff]
        %vm293 = vcmask 523264
        %v295 = vsel %vm293, %v281, 0
        %v298 = vsel %vm293, %v282, 0
        %v301 = vsel %vm293, %v283, 0
        %v304 = vsel %vm293, %v284, 0
        %306 = vmatprep.subr.mxu0 0.0
        %307 = vmatpush1.msra.mxu0 %v285
        %308 = vmatprep.subr.mxu0 0.0
        %309 = vmatpush1.msra.mxu0 %v286
        %310 = vmatprep.subr.mxu0 0.0
        %311 = vmatpush1.msra.mxu0 %v287
        %312 = vmatprep.subr.mxu0 0.0
        %313 = vmatpush1.msra.mxu0 %v288
        %314 = vmatprep.subr.mxu0 0.0
        %315 = vmatpush1.msra.mxu0 %v289
        %316 = vmatprep.subr.mxu0 0.0
        %317 = vmatpush1.msra.mxu0 %v290
        %318 = vmatprep.subr.mxu0 0.0
        %319 = vmatpush1.msra.mxu0 %v291
        %320 = vmatprep.subr.mxu0 0.0
        %321 = vmatpush1.msra.mxu0 %v292
        %322 = vmatprep.subr.mxu0 0.0
        %323 = vmatpush1.msra.mxu0 0.0
        %324 = vmatprep.subr.mxu0 0.0
        %325 = vmatpush1.msra.mxu0 0.0
        %326 = vmatprep.subr.mxu0 0.0
        %327 = vmatpush1.msra.mxu0 0.0
        %328 = vmatprep.subr.mxu0 0.0
        %329 = vmatpush1.msra.mxu0 0.0
        %330 = vmatprep.subr.mxu0 0.0
        %331 = vmatpush1.msra.mxu0 0.0
        %332 = vmatprep.subr.mxu0 0.0
        %333 = vmatpush1.msra.mxu0 0.0
        %334 = vmatprep.subr.mxu0 0.0
        %335 = vmatpush1.msra.mxu0 0.0
        %336 = vmatprep.subr.mxu0 0.0
        %337 = vmatpush1.msra.mxu0 0.0
        %338 = vmatprep.subr.mxu0 0.0
        %339 = vmatpush1.msra.mxu0 0.0
        %340 = vmatprep.subr.mxu0 0.0
        %341 = vmatpush1.msra.mxu0 0.0
        %342 = vmatprep.subr.mxu0 0.0
        %343 = vmatpush1.msra.mxu0 0.0
        %344 = vmatprep.subr.mxu0 0.0
        %345 = vmatpush1.msra.mxu0 0.0
        %346 = vmatprep.subr.mxu0 0.0
        %347 = vmatpush1.msra.mxu0 0.0
        %348 = vmatprep.subr.mxu0 0.0
        %349 = vmatpush1.msra.mxu0 0.0
        %350 = vmatprep.subr.mxu0 0.0
        %351 = vmatpush1.msra.mxu0 0.0
        %352 = vmatprep.subr.mxu0 0.0
        %353 = vmatpush1.msra.mxu0 0.0
        %354 = vmatprep.subr.mxu0 0.0
        %355 = vmatpush1.msra.mxu0 0.0
        %356 = vmatprep.subr.mxu0 0.0
        %357 = vmatpush1.msra.mxu0 0.0
        %358 = vmatprep.subr.mxu0 0.0
        %359 = vmatpush1.msra.mxu0 0.0
        %360 = vmatprep.subr.mxu0 0.0
        %361 = vmatpush1.msra.mxu0 0.0
        %362 = vmatprep.subr.mxu0 0.0
        %363 = vmatpush1.msra.mxu0 0.0
        %364 = vmatprep.subr.mxu0 0.0
        %365 = vmatpush1.msra.mxu0 0.0
        %366 = vmatprep.subr.mxu0 0.0
        %367 = vmatpush1.msra.mxu0 0.0
        %368 = vmatprep.subr.mxu0 0.0
        %369 = vmatpush1.msra.mxu0 0.0
        %370 = vmatprep.mubr.f32.mxu0 0.0
        %371 = vmatmul.mubr.f32.gmra.mrb[0].mxu0 %v295
        %v372 = vpop.f32.mrb[0].mxu0
        %v373 = vadd.f32 0.0, %v372
        %v374 = vpop.f32.mrb[0].mxu0
        %375 = vmatprep.mubr.f32.mxu0 0.0
        %376 = vmatmul.mubr.f32.gmra.mrb[0].mxu0 %v298
        %v377 = vpop.f32.mrb[0].mxu0
        %v378 = vadd.f32 0.0, %v377
        %v379 = vpop.f32.mrb[0].mxu0
        %380 = vmatprep.mubr.f32.mxu0 0.0
        %381 = vmatmul.mubr.f32.gmra.mrb[0].mxu0 %v301
        %v382 = vpop.f32.mrb[0].mxu0
        %v383 = vadd.f32 0.0, %v382
        %v384 = vpop.f32.mrb[0].mxu0
        %385 = vmatprep.mubr.f32.mxu0 0.0
        %386 = vmatmul.mubr.f32.gmra.mrb[0].mxu0 %v304
        %v387 = vpop.f32.mrb[0].mxu0
        %v388 = vadd.f32 0.0, %v387
        %v389 = vpop.f32.mrb[0].mxu0
        %390 = vdwg.mxu0
        %v391 = vpack.c.bf16 %v378, %v373
        %v392 = vpack.c.bf16 %v388, %v383
        %393 = vst [vmem:[#allocation2] sm:$0xff] %v391
        %394 = vst [vmem:[#allocation2 + $0x8] sm:$0xff] %v392
      $region44: #{_lambda_.7} parent=39 // pred_fallthru
        _
      %v395 = vld [vmem:[%s260] sm:$0xff]
      %v396 = vlaneseq
      %v397 = vand.u32 %v396, 127
      %v398 = vlaneseq
      %v399 = vshrl.u32 %v398, 7
      %v400 = vsub.s32 0, %v399
      %v401 = vrot.slane %v395, %v400
      %403 = vbcast.lane.b32.xlu0 %v401, 256
      %v404 = vpop.permute.xlu0 %403
      %s406 = sor.u32 256, 8
      %407 = vbcast.lane.b32.xlu0 %v401, %s406
      %v408 = vpop.permute.xlu0 %407
      %s410 = sor.u32 256, 16
      %411 = vbcast.lane.b32.xlu0 %v401, %s410
      %v412 = vpop.permute.xlu0 %411
      %s414 = sor.u32 256, 24
      %415 = vbcast.lane.b32.xlu0 %v401, %s414
      %v416 = vpop.permute.xlu0 %415
      %v417 = vlaneseq
      %v418 = vshrl.u32 %v417, 7
      %v419 = vsub.s32 1, %v418
      %v420 = vrot.slane %v395, %v419
      %422 = vbcast.lane.b32.xlu0 %v420, 256
      %v423 = vpop.permute.xlu0 %422
      %s425 = sor.u32 256, 8
      %426 = vbcast.lane.b32.xlu0 %v420, %s425
      %v427 = vpop.permute.xlu0 %426
      %s429 = sor.u32 256, 16
      %430 = vbcast.lane.b32.xlu0 %v420, %s429
      %v431 = vpop.permute.xlu0 %430
      %s433 = sor.u32 256, 24
      %434 = vbcast.lane.b32.xlu0 %v420, %s433
      %v435 = vpop.permute.xlu0 %434
      %v436 = vlaneseq
      %v437 = vshrl.u32 %v436, 7
      %v438 = vsub.s32 2, %v437
      %v439 = vrot.slane %v395, %v438
      %441 = vbcast.lane.b32.xlu0 %v439, 256
      %v442 = vpop.permute.xlu0 %441
      %s444 = sor.u32 256, 8
      %445 = vbcast.lane.b32.xlu0 %v439, %s444
      %v446 = vpop.permute.xlu0 %445
      %s448 = sor.u32 256, 16
      %449 = vbcast.lane.b32.xlu0 %v439, %s448
      %v450 = vpop.permute.xlu0 %449
      %s452 = sor.u32 256, 24
      %453 = vbcast.lane.b32.xlu0 %v439, %s452
      %v454 = vpop.permute.xlu0 %453
      %v455 = vlaneseq
      %v456 = vshrl.u32 %v455, 7
      %v457 = vsub.s32 3, %v456
      %v458 = vrot.slane %v395, %v457
      %460 = vbcast.lane.b32.xlu0 %v458, 256
      %v461 = vpop.permute.xlu0 %460
      %s463 = sor.u32 256, 8
      %464 = vbcast.lane.b32.xlu0 %v458, %s463
      %v465 = vpop.permute.xlu0 %464
      %s467 = sor.u32 256, 16
      %468 = vbcast.lane.b32.xlu0 %v458, %s467
      %v469 = vpop.permute.xlu0 %468
      %s471 = sor.u32 256, 24
      %472 = vbcast.lane.b32.xlu0 %v458, %s471
      %v473 = vpop.permute.xlu0 %472
      %v474 = vlaneseq
      %v475 = vshrl.u32 %v474, 7
      %v476 = vsub.s32 4, %v475
      %v477 = vrot.slane %v395, %v476
      %479 = vbcast.lane.b32.xlu0 %v477, 256
      %v480 = vpop.permute.xlu0 %479
      %s482 = sor.u32 256, 8
      %483 = vbcast.lane.b32.xlu0 %v477, %s482
      %v484 = vpop.permute.xlu0 %483
      %s486 = sor.u32 256, 16
      %487 = vbcast.lane.b32.xlu0 %v477, %s486
      %v488 = vpop.permute.xlu0 %487
      %s490 = sor.u32 256, 24
      %491 = vbcast.lane.b32.xlu0 %v477, %s490
      %v492 = vpop.permute.xlu0 %491
      %v493 = vlaneseq
      %v494 = vshrl.u32 %v493, 7
      %v495 = vsub.s32 5, %v494
      %v496 = vrot.slane %v395, %v495
      %498 = vbcast.lane.b32.xlu0 %v496, 256
      %v499 = vpop.permute.xlu0 %498
      %s501 = sor.u32 256, 8
      %502 = vbcast.lane.b32.xlu0 %v496, %s501
      %v503 = vpop.permute.xlu0 %502
      %s505 = sor.u32 256, 16
      %506 = vbcast.lane.b32.xlu0 %v496, %s505
      %v507 = vpop.permute.xlu0 %506
      %s509 = sor.u32 256, 24
      %510 = vbcast.lane.b32.xlu0 %v496, %s509
      %v511 = vpop.permute.xlu0 %510
      %v512 = vlaneseq
      %v513 = vshrl.u32 %v512, 7
      %v514 = vsub.s32 6, %v513
      %v515 = vrot.slane %v395, %v514
      %517 = vbcast.lane.b32.xlu0 %v515, 256
      %v518 = vpop.permute.xlu0 %517
      %s520 = sor.u32 256, 8
      %521 = vbcast.lane.b32.xlu0 %v515, %s520
      %v522 = vpop.permute.xlu0 %521
      %s524 = sor.u32 256, 16
      %525 = vbcast.lane.b32.xlu0 %v515, %s524
      %v526 = vpop.permute.xlu0 %525
      %s528 = sor.u32 256, 24
      %529 = vbcast.lane.b32.xlu0 %v515, %s528
      %v530 = vpop.permute.xlu0 %529
      %v531 = vlaneseq
      %v532 = vshrl.u32 %v531, 7
      %v533 = vsub.s32 7, %v532
      %v534 = vrot.slane %v395, %v533
      %536 = vbcast.lane.b32.xlu0 %v534, 256
      %v537 = vpop.permute.xlu0 %536
      %s539 = sor.u32 256, 8
      %540 = vbcast.lane.b32.xlu0 %v534, %s539
      %v541 = vpop.permute.xlu0 %540
      %s543 = sor.u32 256, 16
      %544 = vbcast.lane.b32.xlu0 %v534, %s543
      %v545 = vpop.permute.xlu0 %544
      %s547 = sor.u32 256, 24
      %548 = vbcast.lane.b32.xlu0 %v534, %s547
      %v549 = vpop.permute.xlu0 %548
      %vm550 = vcmp.eq.s32.totalorder %v397, %v404
      %vm551 = vcmp.eq.s32.totalorder %v397, %v408
      %vm552 = vcmp.eq.s32.totalorder %v397, %v412
      %vm553 = vcmp.eq.s32.totalorder %v397, %v416
      %vm554 = vcmp.eq.s32.totalorder %v397, %v423
      %vm555 = vcmp.eq.s32.totalorder %v397, %v427
      %vm556 = vcmp.eq.s32.totalorder %v397, %v431
      %vm557 = vcmp.eq.s32.totalorder %v397, %v435
      %vm558 = vcmp.eq.s32.totalorder %v397, %v442
      %vm559 = vcmp.eq.s32.totalorder %v397, %v446
      %vm560 = vcmp.eq.s32.totalorder %v397, %v450
      %vm561 = vcmp.eq.s32.totalorder %v397, %v454
      %vm562 = vcmp.eq.s32.totalorder %v397, %v461
      %vm563 = vcmp.eq.s32.totalorder %v397, %v465
      %vm564 = vcmp.eq.s32.totalorder %v397, %v469
      %vm565 = vcmp.eq.s32.totalorder %v397, %v473
      %vm566 = vcmp.eq.s32.totalorder %v397, %v480
      %vm567 = vcmp.eq.s32.totalorder %v397, %v484
      %vm568 = vcmp.eq.s32.totalorder %v397, %v488
      %vm569 = vcmp.eq.s32.totalorder %v397, %v492
      %vm570 = vcmp.eq.s32.totalorder %v397, %v499
      %vm571 = vcmp.eq.s32.totalorder %v397, %v503
      %vm572 = vcmp.eq.s32.totalorder %v397, %v507
      %vm573 = vcmp.eq.s32.totalorder %v397, %v511
      %vm574 = vcmp.eq.s32.totalorder %v397, %v518
      %vm575 = vcmp.eq.s32.totalorder %v397, %v522
      %vm576 = vcmp.eq.s32.totalorder %v397, %v526
      %vm577 = vcmp.eq.s32.totalorder %v397, %v530
      %vm578 = vcmp.eq.s32.totalorder %v397, %v537
      %vm579 = vcmp.eq.s32.totalorder %v397, %v541
      %vm580 = vcmp.eq.s32.totalorder %v397, %v545
      %vm581 = vcmp.eq.s32.totalorder %v397, %v549
      %v582 = vsel %vm550, 1, 0
      %v583 = vsel %vm551, 1, 0
      %v584 = vsel %vm552, 1, 0
      %v585 = vsel %vm553, 1, 0
      %v586 = vsel %vm554, 1, 0
      %v587 = vsel %vm555, 1, 0
      %v588 = vsel %vm556, 1, 0
      %v589 = vsel %vm557, 1, 0
      %v590 = vsel %vm558, 1, 0
      %v591 = vsel %vm559, 1, 0
      %v592 = vsel %vm560, 1, 0
      %v593 = vsel %vm561, 1, 0
      %v594 = vsel %vm562, 1, 0
      %v595 = vsel %vm563, 1, 0
      %v596 = vsel %vm564, 1, 0
      %v597 = vsel %vm565, 1, 0
      %v598 = vsel %vm566, 1, 0
      %v599 = vsel %vm567, 1, 0
      %v600 = vsel %vm568, 1, 0
      %v601 = vsel %vm569, 1, 0
      %v602 = vsel %vm570, 1, 0
      %v603 = vsel %vm571, 1, 0
      %v604 = vsel %vm572, 1, 0
      %v605 = vsel %vm573, 1, 0
      %v606 = vsel %vm574, 1, 0
      %v607 = vsel %vm575, 1, 0
      %v608 = vsel %vm576, 1, 0
      %v609 = vsel %vm577, 1, 0
      %v610 = vsel %vm578, 1, 0
      %v611 = vsel %vm579, 1, 0
      %v612 = vsel %vm580, 1, 0
      %v613 = vsel %vm581, 1, 0
      %v614 = vcvt.s32.f32 %v582
      %v615 = vcvt.s32.f32 %v583
      %v616 = vcvt.s32.f32 %v584
      %v617 = vcvt.s32.f32 %v585
      %v618 = vcvt.s32.f32 %v586
      %v619 = vcvt.s32.f32 %v587
      %v620 = vcvt.s32.f32 %v588
      %v621 = vcvt.s32.f32 %v589
      %v622 = vcvt.s32.f32 %v590
      %v623 = vcvt.s32.f32 %v591
      %v624 = vcvt.s32.f32 %v592
      %v625 = vcvt.s32.f32 %v593
      %v626 = vcvt.s32.f32 %v594
      %v627 = vcvt.s32.f32 %v595
      %v628 = vcvt.s32.f32 %v596
      %v629 = vcvt.s32.f32 %v597
      %v630 = vcvt.s32.f32 %v598
      %v631 = vcvt.s32.f32 %v599
      %v632 = vcvt.s32.f32 %v600
      %v633 = vcvt.s32.f32 %v601
      %v634 = vcvt.s32.f32 %v602
      %v635 = vcvt.s32.f32 %v603
      %v636 = vcvt.s32.f32 %v604
      %v637 = vcvt.s32.f32 %v605
      %v638 = vcvt.s32.f32 %v606
      %v639 = vcvt.s32.f32 %v607
      %v640 = vcvt.s32.f32 %v608
      %v641 = vcvt.s32.f32 %v609
      %v642 = vcvt.s32.f32 %v610
      %v643 = vcvt.s32.f32 %v611
      %v644 = vcvt.s32.f32 %v612
      %v645 = vcvt.s32.f32 %v613
      %v646 = vpack.c.bf16 %v615, %v614
      %v647 = vpack.c.bf16 %v617, %v616
      %v648 = vpack.c.bf16 %v619, %v618
      %v649 = vpack.c.bf16 %v621, %v620
      %v650 = vpack.c.bf16 %v623, %v622
      %v651 = vpack.c.bf16 %v625, %v624
      %v652 = vpack.c.bf16 %v627, %v626
      %v653 = vpack.c.bf16 %v629, %v628
      %v654 = vpack.c.bf16 %v631, %v630
      %v655 = vpack.c.bf16 %v633, %v632
      %v656 = vpack.c.bf16 %v635, %v634
      %v657 = vpack.c.bf16 %v637, %v636
      %v658 = vpack.c.bf16 %v639, %v638
      %v659 = vpack.c.bf16 %v641, %v640
      %v660 = vpack.c.bf16 %v643, %v642
      %v661 = vpack.c.bf16 %v645, %v644
      %v662 = vld [vmem:[#allocation2] sm:$0xff]
      %v663 = vld [vmem:[#allocation2 + $0x8] sm:$0xff]
      %vm664 = vcmask 261120
      %v666 = vsel %vm664, %v646, 0
      %v669 = vsel %vm664, %v647, 0
      %v672 = vsel %vm664, %v648, 0
      %v675 = vsel %vm664, %v649, 0
      %v678 = vsel %vm664, %v650, 0
      %v681 = vsel %vm664, %v651, 0
      %v684 = vsel %vm664, %v652, 0
      %v687 = vsel %vm664, %v653, 0
      %v690 = vsel %vm664, %v654, 0
      %v693 = vsel %vm664, %v655, 0
      %v696 = vsel %vm664, %v656, 0
      %v699 = vsel %vm664, %v657, 0
      %v702 = vsel %vm664, %v658, 0
      %v705 = vsel %vm664, %v659, 0
      %v708 = vsel %vm664, %v660, 0
      %v711 = vsel %vm664, %v661, 0
      %713 = vmatprep.subr.bf16.mxu0 0
      %714 = vmatpush1.bf16.msra.mxu0 %v662
      %715 = vmatprep.subr.bf16.mxu0 0
      %716 = vmatpush1.bf16.msra.mxu0 %v663
      %717 = vmatprep.subr.bf16.mxu0 0
      %718 = vmatpush1.bf16.msra.mxu0 0
      %719 = vmatprep.subr.bf16.mxu0 0
      %720 = vmatpush1.bf16.msra.mxu0 0
      %721 = vmatprep.subr.bf16.mxu0 0
      %722 = vmatpush1.bf16.msra.mxu0 0
      %723 = vmatprep.subr.bf16.mxu0 0
      %724 = vmatpush1.bf16.msra.mxu0 0
      %725 = vmatprep.subr.bf16.mxu0 0
      %726 = vmatpush1.bf16.msra.mxu0 0
      %727 = vmatprep.subr.bf16.mxu0 0
      %728 = vmatpush1.bf16.msra.mxu0 0
      %729 = vmatprep.subr.bf16.mxu0 0
      %730 = vmatpush1.bf16.msra.mxu0 0
      %731 = vmatprep.subr.bf16.mxu0 0
      %732 = vmatpush1.bf16.msra.mxu0 0
      %733 = vmatprep.subr.bf16.mxu0 0
      %734 = vmatpush1.bf16.msra.mxu0 0
      %735 = vmatprep.subr.bf16.mxu0 0
      %736 = vmatpush1.bf16.msra.mxu0 0
      %737 = vmatprep.subr.bf16.mxu0 0
      %738 = vmatpush1.bf16.msra.mxu0 0
      %739 = vmatprep.subr.bf16.mxu0 0
      %740 = vmatpush1.bf16.msra.mxu0 0
      %741 = vmatprep.subr.bf16.mxu0 0
      %742 = vmatpush1.bf16.msra.mxu0 0
      %743 = vmatprep.subr.bf16.mxu0 0
      %744 = vmatpush1.bf16.msra.mxu0 0
      %745 = vmatprep.mubr.bf16.mxu0 0
      %746 = vmatmul.mubr.bf16.gmra.mrb[0].mxu0 %v666
      %v747 = vpop.f32.mrb[0].mxu0
      %v748 = vadd.f32 0.0, %v747
      %v749 = vpop.f32.mrb[0].mxu0
      %v750 = vpop.f32.mrb[0].mxu0
      %v751 = vadd.f32 0.0, %v750
      %v752 = vpop.f32.mrb[0].mxu0
      %753 = vmatprep.mubr.bf16.mxu0 0
      %754 = vmatmul.mubr.bf16.gmra.mrb[0].mxu0 %v669
      %v755 = vpop.f32.mrb[0].mxu0
      %v756 = vadd.f32 0.0, %v755
      %v757 = vpop.f32.mrb[0].mxu0
      %v758 = vpop.f32.mrb[0].mxu0
      %v759 = vadd.f32 0.0, %v758
      %v760 = vpop.f32.mrb[0].mxu0
      %761 = vmatprep.mubr.bf16.mxu0 0
      %762 = vmatmul.mubr.bf16.gmra.mrb[0].mxu0 %v672
      %v763 = vpop.f32.mrb[0].mxu0
      %v764 = vadd.f32 0.0, %v763
      %v765 = vpop.f32.mrb[0].mxu0
      %v766 = vpop.f32.mrb[0].mxu0
      %v767 = vadd.f32 0.0, %v766
      %v768 = vpop.f32.mrb[0].mxu0
      %769 = vmatprep.mubr.bf16.mxu0 0
      %770 = vmatmul.mubr.bf16.gmra.mrb[0].mxu0 %v675
      %v771 = vpop.f32.mrb[0].mxu0
      %v772 = vadd.f32 0.0, %v771
      %v773 = vpop.f32.mrb[0].mxu0
      %v774 = vpop.f32.mrb[0].mxu0
      %v775 = vadd.f32 0.0, %v774
      %v776 = vpop.f32.mrb[0].mxu0
      %777 = vmatprep.mubr.bf16.mxu0 0
      %778 = vmatmul.mubr.bf16.gmra.mrb[0].mxu0 %v678
      %v779 = vpop.f32.mrb[0].mxu0
      %v780 = vadd.f32 0.0, %v779
      %v781 = vpop.f32.mrb[0].mxu0
      %v782 = vpop.f32.mrb[0].mxu0
      %v783 = vadd.f32 0.0, %v782
      %v784 = vpop.f32.mrb[0].mxu0
      %785 = vmatprep.mubr.bf16.mxu0 0
      %786 = vmatmul.mubr.bf16.gmra.mrb[0].mxu0 %v681
      %v787 = vpop.f32.mrb[0].mxu0
      %v788 = vadd.f32 0.0, %v787
      %v789 = vpop.f32.mrb[0].mxu0
      %v790 = vpop.f32.mrb[0].mxu0
      %v791 = vadd.f32 0.0, %v790
      %v792 = vpop.f32.mrb[0].mxu0
      %793 = vmatprep.mubr.bf16.mxu0 0
      %794 = vmatmul.mubr.bf16.gmra.mrb[0].mxu0 %v684
      %v795 = vpop.f32.mrb[0].mxu0
      %v796 = vadd.f32 0.0, %v795
      %v797 = vpop.f32.mrb[0].mxu0
      %v798 = vpop.f32.mrb[0].mxu0
      %v799 = vadd.f32 0.0, %v798
      %v800 = vpop.f32.mrb[0].mxu0
      %801 = vmatprep.mubr.bf16.mxu0 0
      %802 = vmatmul.mubr.bf16.gmra.mrb[0].mxu0 %v687
      %v803 = vpop.f32.mrb[0].mxu0
      %v804 = vadd.f32 0.0, %v803
      %v805 = vpop.f32.mrb[0].mxu0
      %v806 = vpop.f32.mrb[0].mxu0
      %v807 = vadd.f32 0.0, %v806
      %v808 = vpop.f32.mrb[0].mxu0
      %809 = vmatprep.mubr.bf16.mxu0 0
      %810 = vmatmul.mubr.bf16.gmra.mrb[0].mxu0 %v690
      %v811 = vpop.f32.mrb[0].mxu0
      %v812 = vadd.f32 0.0, %v811
      %v813 = vpop.f32.mrb[0].mxu0
      %v814 = vpop.f32.mrb[0].mxu0
      %v815 = vadd.f32 0.0, %v814
      %v816 = vpop.f32.mrb[0].mxu0
      %817 = vmatprep.mubr.bf16.mxu0 0
      %818 = vmatmul.mubr.bf16.gmra.mrb[0].mxu0 %v693
      %v819 = vpop.f32.mrb[0].mxu0
      %v820 = vadd.f32 0.0, %v819
      %v821 = vpop.f32.mrb[0].mxu0
      %v822 = vpop.f32.mrb[0].mxu0
      %v823 = vadd.f32 0.0, %v822
      %v824 = vpop.f32.mrb[0].mxu0
      %825 = vmatprep.mubr.bf16.mxu0 0
      %826 = vmatmul.mubr.bf16.gmra.mrb[0].mxu0 %v696
      %v827 = vpop.f32.mrb[0].mxu0
      %v828 = vadd.f32 0.0, %v827
      %v829 = vpop.f32.mrb[0].mxu0
      %v830 = vpop.f32.mrb[0].mxu0
      %v831 = vadd.f32 0.0, %v830
      %v832 = vpop.f32.mrb[0].mxu0
      %833 = vmatprep.mubr.bf16.mxu0 0
      %834 = vmatmul.mubr.bf16.gmra.mrb[0].mxu0 %v699
      %v835 = vpop.f32.mrb[0].mxu0
      %v836 = vadd.f32 0.0, %v835
      %v837 = vpop.f32.mrb[0].mxu0
      %v838 = vpop.f32.mrb[0].mxu0
      %v839 = vadd.f32 0.0, %v838
      %v840 = vpop.f32.mrb[0].mxu0
      %841 = vmatprep.mubr.bf16.mxu0 0
      %842 = vmatmul.mubr.bf16.gmra.mrb[0].mxu0 %v702
      %v843 = vpop.f32.mrb[0].mxu0
      %v844 = vadd.f32 0.0, %v843
      %v845 = vpop.f32.mrb[0].mxu0
      %v846 = vpop.f32.mrb[0].mxu0
      %v847 = vadd.f32 0.0, %v846
      %v848 = vpop.f32.mrb[0].mxu0
      %849 = vmatprep.mubr.bf16.mxu0 0
      %850 = vmatmul.mubr.bf16.gmra.mrb[0].mxu0 %v705
      %v851 = vpop.f32.mrb[0].mxu0
      %v852 = vadd.f32 0.0, %v851
      %v853 = vpop.f32.mrb[0].mxu0
      %v854 = vpop.f32.mrb[0].mxu0
      %v855 = vadd.f32 0.0, %v854
      %v856 = vpop.f32.mrb[0].mxu0
      %857 = vmatprep.mubr.bf16.mxu0 0
      %858 = vmatmul.mubr.bf16.gmra.mrb[0].mxu0 %v708
      %v859 = vpop.f32.mrb[0].mxu0
      %v860 = vadd.f32 0.0, %v859
      %v861 = vpop.f32.mrb[0].mxu0
      %v862 = vpop.f32.mrb[0].mxu0
      %v863 = vadd.f32 0.0, %v862
      %v864 = vpop.f32.mrb[0].mxu0
      %865 = vmatprep.mubr.bf16.mxu0 0
      %866 = vmatmul.mubr.bf16.gmra.mrb[0].mxu0 %v711
      %v867 = vpop.f32.mrb[0].mxu0
      %v868 = vadd.f32 0.0, %v867
      %v869 = vpop.f32.mrb[0].mxu0
      %v870 = vpop.f32.mrb[0].mxu0
      %v871 = vadd.f32 0.0, %v870
      %v872 = vpop.f32.mrb[0].mxu0
      %873 = vdwg.mxu0
      %v874 = vmax.f32 %v748, %v764
      %v875 = vmax.f32 %v874, %v780
      %v876 = vmax.f32 %v875, %v796
      %v877 = vmax.f32 %v876, %v812
      %v878 = vmax.f32 %v877, %v828
      %v879 = vmax.f32 %v878, %v844
      %v880 = vmax.f32 %v879, %v860
      %v881 = vmax.f32 %v751, %v767
      %v882 = vmax.f32 %v881, %v783
      %v883 = vmax.f32 %v882, %v799
      %v884 = vmax.f32 %v883, %v815
      %v885 = vmax.f32 %v884, %v831
      %v886 = vmax.f32 %v885, %v847
      %v887 = vmax.f32 %v886, %v863
      %v888 = vmax.f32 %v756, %v772
      %v889 = vmax.f32 %v888, %v788
      %v890 = vmax.f32 %v889, %v804
      %v891 = vmax.f32 %v890, %v820
      %v892 = vmax.f32 %v891, %v836
      %v893 = vmax.f32 %v892, %v852
      %v894 = vmax.f32 %v893, %v868
      %v895 = vmax.f32 %v759, %v775
      %v896 = vmax.f32 %v895, %v791
      %v897 = vmax.f32 %v896, %v807
      %v898 = vmax.f32 %v897, %v823
      %v899 = vmax.f32 %v898, %v839
      %v900 = vmax.f32 %v899, %v855
      %v901 = vmax.f32 %v900, %v871
      %s902 = smul.u32 %s21, 32
      %s903 = sshra.s32 %s902, 4
      %s904 = sand.u32 %s902, 15
      %s905 = smul.addr %s903, 8
      %s906 = scalar_lea.vmem [#allocation2], %s905
      %v907 = vld [vmem:[%s906] sm:$0xff]
      %v908 = vld [vmem:[%s906 + $0x8] sm:$0xff]
      %v909 = vunpack.c.l.bf16 %v907
      %v910 = vunpack.c.h.bf16 %v907
      %v911 = vunpack.c.l.bf16 %v908
      %v912 = vunpack.c.h.bf16 %v908
      %v913 = vsub.f32 %v880, %v909
      %v914 = vsub.f32 %v887, %v910
      %v915 = vsub.f32 %v894, %v911
      %v916 = vsub.f32 %v901, %v912
      %v917 = vld [vmem:[%s3] sm:$0x1]
      %v919 = vlaneseq
      %v920 = vshrl.u32 %v919, 7
      %v921 = vsub.s32 0, %v920
      %v922 = vrot.slane %v917, %v921
      %v924 = vmul.f32 %v913, %v922
      %v925 = vmul.f32 %v914, %v922
      %v926 = vmul.f32 %v915, %v922
      %v927 = vmul.f32 %v916, %v922
      %v928 = vld [vmem:[%s4] sm:$0x1]
      %v930 = vlaneseq
      %v931 = vshrl.u32 %v930, 7
      %v932 = vsub.s32 0, %v931
      %v933 = vrot.slane %v928, %v932
      %v935 = vadd.f32 %v924, %v933
      %v936 = vadd.f32 %v925, %v933
      %v937 = vadd.f32 %v926, %v933
      %v938 = vadd.f32 %v927, %v933
      %vm939 = vcmp.gt.f32.partialorder %v935, 0.0
      %vm940 = vcmp.gt.f32.partialorder %v936, 0.0
      %vm941 = vcmp.gt.f32.partialorder %v937, 0.0
      %vm942 = vcmp.gt.f32.partialorder %v938, 0.0
      %v943 = vmul.f32 %v935, 0.2
      %v944 = vmul.f32 %v936, 0.2
      %v945 = vmul.f32 %v937, 0.2
      %v946 = vmul.f32 %v938, 0.2
      %v947 = vsel %vm939, %v935, %v943
      %v948 = vsel %vm940, %v936, %v944
      %v949 = vsel %vm941, %v937, %v945
      %v950 = vsel %vm942, %v938, %v946
      %951 = vst [vmem:[%s274] sm:$0xff] %v947
      %952 = vst [vmem:[%s274 + $0x8] sm:$0xff] %v948
      %953 = vst [vmem:[%s274 + $0x10] sm:$0xff] %v949
      %954 = vst [vmem:[%s274 + $0x18] sm:$0xff] %v950
      %s955 = smul.u32 4, %s21
      %p956 = scmp.lt.s32.totalorder %s20, 1
      %s957 = scalar_select %p956, %s20, 1
      %p958 = scmp.lt.s32.totalorder %s955, 3
      %s959 = scalar_select %p958, %s955, 3
      %s960 = smul.addr %s957, 4
      %s961 = sadd.s32 %s959, %s960
      %s962 = smul.addr %s961, 8
      %s963 = scalar_lea.vmem %s5, %s962
      // Predicated region
      $region45: #{_lambda_.7} parent=39 // pred_check
        %p964 = pneg %p165
      $region46: #{_lambda_.7} parent=39 // pred_check_branch
        %966 = sbr.rel (%p964) target = $region48
      $region47: #{_lambda_.7} parent=39 // pred_region
        %s967 = smul.u32 4, %s21
      $region48: #{_lambda_.7} parent=39 // pred_fallthru
        _
    $region40: #{_lambda_.7} parent=5 // pred_fallthru
      _
    %p968 = scmp.le.s32.totalorder 2, %s11
    // Predicated region
    $region49: #{_lambda_.7} parent=5 // pred_check
      %p969 = pneg %p968
    $region50: #{_lambda_.7} parent=5 // pred_check_branch
      %971 = sbr.rel (%p969) target = $region52
    $region51: #{_lambda_.7} parent=5 // pred_region
      %s972 = ssub.s32 %s11, 2
      // Predicated region
      $region53: #{_lambda_.7} parent=51 // pred_check
        %p973 = pneg %p171
      $region54: #{_lambda_.7} parent=51 // pred_check_branch
        %975 = sbr.rel (%p973) target = $region56
      $region55: #{_lambda_.7} parent=51 // pred_region
        %s976 = smul.u32 4, %s23
        %p977 = scmp.lt.s32.totalorder %s22, 1
        %s978 = scalar_select %p977, %s22, 1
        %p979 = scmp.lt.s32.totalorder %s976, 3
        %s980 = scalar_select %p979, %s976, 3
        %s981 = smul.addr %s978, 4
        %s982 = sadd.s32 %s980, %s981
        %s983 = smul.addr %s982, 8
        %s984 = scalar_lea.vmem %s5, %s983
      $region56: #{_lambda_.7} parent=51 // pred_fallthru
        _
    $region52: #{_lambda_.7} parent=5 // pred_fallthru
      _
  $region6: #{_lambda_.7} parent=0 // loop_footer
    %s15 = sadd.s32 1, %s11
  $region7: #{_lambda_.7} parent=0 // loop_footer_branch
    %10 = sbr.rel target = $region3
  $region8: #{_lambda_.7} parent=0 // loop_exit
    _

// kernel: _lambda_.8
$region0: #{_lambda_.8}
  #allocation0 [shape = 'u32[]', space=smem, size = 0x4, offset = 0x4, fixed_abs, tag = 'smem constant byte address 0x4 - core index']
  #allocation1 [shape = 'u32[144,128]{1,0:T(1,128)}', space=vmem, size = 0x12000, scoped, tag = 'internal scratch']
  #allocation2 [shape = 'bf16[32,256]{1,0:T(16,128)(2,1)}', space=vmem, size = 0x4000, scoped, tag = 'scratch operand']
  %s0 = inlined_call_operand.vmem [shape: s32[2,8,32], index: 0, kind: input, shape index: {}]
  %s1 = inlined_call_operand.vmem [shape: f32[2,32,128], index: 1, kind: input, shape index: {}]
  %s2 = inlined_call_operand.vmem [shape: f32[128,256], index: 2, kind: input, shape index: {}]
  %s3 = inlined_call_operand.vmem [shape: f32[1,256], index: 3, kind: input, shape index: {}]
  %s4 = inlined_call_operand.vmem [shape: f32[1,256], index: 4, kind: input, shape index: {}]
  %s5 = inlined_call_operand.vmem [shape: f32[2,32,256], index: 5, kind: output, shape index: {}]
  %s6 = sld [smem:[#allocation0]]
  $region57: #{_lambda_.8} parent=0
    _
  %s8 = ssub.s32 1, %s6
  %s9 = scalar_select 0, %s8, %s6
  loop: start=0, step=1, limit=4
  $region2: #{_lambda_.8} parent=0 // loop_pre_header
    _
  $region3: #{_lambda_.8} parent=0 // loop_header
    %s11 = sphi 0, %s15
    %p12 = scmp.ge.s32.totalorder %s11, 4
    %s18 = sphi 0, %s30
    %s19 = sphi 0, %s26
    %s20 = sphi 0, %s18
    %s21 = sphi 0, %s19
    %s22 = sphi 0, %s20
    %s23 = sphi 0, %s21
    %s35 = sphi 0, %s37
    %s38 = sphi 0, %s35
    %s39 = sphi 0, %s38
    %s55 = sphi 0, %s39
    %s61 = sphi 0, %s63
    %s64 = sphi 0, %s61
    %s65 = sphi 0, %s64
    %s81 = sphi 0, %s65
    %s85 = sphi 0, %s85
    %s87 = sphi 0, %s85
    %s88 = sphi 0, %s87
    %s102 = sphi 0, %s88
    %s106 = sphi 0, %s106
    %s108 = sphi 0, %s106
    %s109 = sphi 0, %s108
    %s123 = sphi 0, %s109
    %s127 = sphi 0, %s127
    %s129 = sphi 0, %s127
    %s130 = sphi 0, %s129
    %s144 = sphi 0, %s130
    %s152 = sphi 0, %s154
    %s155 = sphi 0, %s152
    %s156 = sphi 0, %s155
    %s172 = sphi 0, %s156
  $region4: #{_lambda_.8} parent=0 // loop_header_branch
    %14 = sbr.rel (%p12) target = $region8
  $region5: #{_lambda_.8} parent=0 // loop_body
    %s16 = ssub.s32 %s11, 1
    %s17 = ssub.s32 %s11, 2
    %s24 = sadd.s32 1, %s19
    %p25 = scmp.ge.s32.totalorder %s24, 1
    %s26 = scalar_select %p25, 0, %s24
    %s27 = sadd.s32 1, %s18
    %s28 = scalar_select %p25, %s27, %s18
    %p29 = scmp.ge.s32.totalorder %s28, 2
    %s30 = scalar_select %p29, 0, %s28
    %s31 = ssub.s32 %s18, %s30
    %s32 = ssub.s32 %s19, %s26
    %s33 = sor.u32 %s31, %s32
    %p34 = scmp.eq.s32.totalorder %s33, 0
    %s36 = sadd.s32 %s35, 1
    %s37 = scalar_select %p34, %s35, %s36
    %p40 = pneg %p34
    %p41 = scmp.eq.s32.totalorder %s11, 1
    %p42 = por %p40, %p41
    %p43 = scmp.ne.s32.totalorder %s35, %s38
    %p44 = scmp.eq.s32.totalorder %s11, 0
    %p45 = por %p43, %p44
    %p46 = scmp.ne.s32.totalorder %s35, %s38
    %p47 = scmp.eq.s32.totalorder %s16, 1
    %p48 = por %p46, %p47
    %p49 = scmp.ne.s32.totalorder %s38, %s39
    %p50 = scmp.eq.s32.totalorder %s16, 0
    %p51 = por %p49, %p50
    %p52 = scmp.ne.s32.totalorder %s38, %s39
    %p53 = scmp.eq.s32.totalorder %s17, 1
    %p54 = por %p52, %p53
    %p56 = scmp.ne.s32.totalorder %s39, %s55
    %p57 = scmp.eq.s32.totalorder %s17, 0
    %p58 = por %p56, %p57
    %s59 = ssub.s32 %s18, %s30
    %p60 = scmp.eq.s32.totalorder %s59, 0
    %s62 = sadd.s32 %s61, 1
    %s63 = scalar_select %p60, %s61, %s62
    %p66 = pneg %p60
    %p67 = scmp.eq.s32.totalorder %s11, 1
    %p68 = por %p66, %p67
    %p69 = scmp.ne.s32.totalorder %s61, %s64
    %p70 = scmp.eq.s32.totalorder %s11, 0
    %p71 = por %p69, %p70
    %p72 = scmp.ne.s32.totalorder %s61, %s64
    %p73 = scmp.eq.s32.totalorder %s16, 1
    %p74 = por %p72, %p73
    %p75 = scmp.ne.s32.totalorder %s64, %s65
    %p76 = scmp.eq.s32.totalorder %s16, 0
    %p77 = por %p75, %p76
    %p78 = scmp.ne.s32.totalorder %s64, %s65
    %p79 = scmp.eq.s32.totalorder %s17, 1
    %p80 = por %p78, %p79
    %p82 = scmp.ne.s32.totalorder %s65, %s81
    %p83 = scmp.eq.s32.totalorder %s17, 0
    %p84 = por %p82, %p83
    %s86 = sadd.s32 %s85, 1
    %p89 = scmp.eq.s32.totalorder %s11, 1
    %p90 = scmp.ne.s32.totalorder %s85, %s87
    %p91 = scmp.eq.s32.totalorder %s11, 0
    %p92 = por %p90, %p91
    %p93 = scmp.ne.s32.totalorder %s85, %s87
    %p94 = scmp.eq.s32.totalorder %s16, 1
    %p95 = por %p93, %p94
    %p96 = scmp.ne.s32.totalorder %s87, %s88
    %p97 = scmp.eq.s32.totalorder %s16, 0
    %p98 = por %p96, %p97
    %p99 = scmp.ne.s32.totalorder %s87, %s88
    %p100 = scmp.eq.s32.totalorder %s17, 1
    %p101 = por %p99, %p100
    %p103 = scmp.ne.s32.totalorder %s88, %s102
    %p104 = scmp.eq.s32.totalorder %s17, 0
    %p105 = por %p103, %p104
    %s107 = sadd.s32 %s106, 1
    %p110 = scmp.eq.s32.totalorder %s11, 1
    %p111 = scmp.ne.s32.totalorder %s106, %s108
    %p112 = scmp.eq.s32.totalorder %s11, 0
    %p113 = por %p111, %p112
    %p114 = scmp.ne.s32.totalorder %s106, %s108
    %p115 = scmp.eq.s32.totalorder %s16, 1
    %p116 = por %p114, %p115
    %p117 = scmp.ne.s32.totalorder %s108, %s109
    %p118 = scmp.eq.s32.totalorder %s16, 0
    %p119 = por %p117, %p118
    %p120 = scmp.ne.s32.totalorder %s108, %s109
    %p121 = scmp.eq.s32.totalorder %s17, 1
    %p122 = por %p120, %p121
    %p124 = scmp.ne.s32.totalorder %s109, %s123
    %p125 = scmp.eq.s32.totalorder %s17, 0
    %p126 = por %p124, %p125
    %s128 = sadd.s32 %s127, 1
    %p131 = scmp.eq.s32.totalorder %s11, 1
    %p132 = scmp.ne.s32.totalorder %s127, %s129
    %p133 = scmp.eq.s32.totalorder %s11, 0
    %p134 = por %p132, %p133
    %p135 = scmp.ne.s32.totalorder %s127, %s129
    %p136 = scmp.eq.s32.totalorder %s16, 1
    %p137 = por %p135, %p136
    %p138 = scmp.ne.s32.totalorder %s129, %s130
    %p139 = scmp.eq.s32.totalorder %s16, 0
    %p140 = por %p138, %p139
    %p141 = scmp.ne.s32.totalorder %s129, %s130
    %p142 = scmp.eq.s32.totalorder %s17, 1
    %p143 = por %p141, %p142
    %p145 = scmp.ne.s32.totalorder %s130, %s144
    %p146 = scmp.eq.s32.totalorder %s17, 0
    %p147 = por %p145, %p146
    %s148 = ssub.s32 %s18, %s30
    %s149 = ssub.s32 %s19, %s26
    %s150 = sor.u32 %s148, %s149
    %p151 = scmp.eq.s32.totalorder %s150, 0
    %s153 = sadd.s32 %s152, 1
    %s154 = scalar_select %p151, %s152, %s153
    %p157 = pneg %p151
    %p158 = scmp.eq.s32.totalorder %s11, 1
    %p159 = por %p157, %p158
    %p160 = scmp.ne.s32.totalorder %s152, %s155
    %p161 = scmp.eq.s32.totalorder %s11, 0
    %p162 = por %p160, %p161
    %p163 = scmp.ne.s32.totalorder %s152, %s155
    %p164 = scmp.eq.s32.totalorder %s16, 1
    %p165 = por %p163, %p164
    %p166 = scmp.ne.s32.totalorder %s155, %s156
    %p167 = scmp.eq.s32.totalorder %s16, 0
    %p168 = por %p166, %p167
    %p169 = scmp.ne.s32.totalorder %s155, %s156
    %p170 = scmp.eq.s32.totalorder %s17, 1
    %p171 = por %p169, %p170
    %p173 = scmp.ne.s32.totalorder %s156, %s172
    %p174 = scmp.eq.s32.totalorder %s17, 0
    %p175 = por %p173, %p174
    %p176 = scmp.le.s32.totalorder 1, %s11
    %p177 = scmp.lt.s32.totalorder %s11, 3
    %p178 = pnand %p176, %p177
    %p179 = pneg %p178
    // Predicated region
    $region9: #{_lambda_.8} parent=5 // pred_check
      _
    $region10: #{_lambda_.8} parent=5 // pred_check_branch
      %181 = sbr.rel (%p178) target = $region12
    $region11: #{_lambda_.8} parent=5 // pred_region
      %s182 = ssub.s32 %s11, 1
      // Predicated region
      $region13: #{_lambda_.8} parent=11 // pred_check
        %p183 = pneg %p98
      $region14: #{_lambda_.8} parent=11 // pred_check_branch
        %185 = sbr.rel (%p183) target = $region16
      $region15: #{_lambda_.8} parent=11 // pred_region
        _
      $region16: #{_lambda_.8} parent=11 // pred_fallthru
        _
      // Predicated region
      $region17: #{_lambda_.8} parent=11 // pred_check
        %p186 = pneg %p119
      $region18: #{_lambda_.8} parent=11 // pred_check_branch
        %188 = sbr.rel (%p186) target = $region20
      $region19: #{_lambda_.8} parent=11 // pred_region
        _
      $region20: #{_lambda_.8} parent=11 // pred_fallthru
        _
      // Predicated region
      $region21: #{_lambda_.8} parent=11 // pred_check
        %p189 = pneg %p140
      $region22: #{_lambda_.8} parent=11 // pred_check_branch
        %191 = sbr.rel (%p189) target = $region24
      $region23: #{_lambda_.8} parent=11 // pred_region
        _
      $region24: #{_lambda_.8} parent=11 // pred_fallthru
        _
    $region12: #{_lambda_.8} parent=5 // pred_fallthru
      _
    %p192 = scmp.lt.s32.totalorder %s11, 2
    // Predicated region
    $region25: #{_lambda_.8} parent=5 // pred_check
      %p193 = pneg %p192
    $region26: #{_lambda_.8} parent=5 // pred_check_branch
      %195 = sbr.rel (%p193) target = $region28
    $region27: #{_lambda_.8} parent=5 // pred_region
      // Predicated region
      $region29: #{_lambda_.8} parent=27 // pred_check
        %p196 = pneg %p45
      $region30: #{_lambda_.8} parent=27 // pred_check_branch
        %198 = sbr.rel (%p196) target = $region32
      $region31: #{_lambda_.8} parent=27 // pred_region
        %p199 = scmp.lt.s32.totalorder %s18, 1
        %s200 = scalar_select %p199, %s18, 1
        %p201 = scmp.lt.s32.totalorder %s19, 0
        %s202 = scalar_select %p201, %s19, 0
        %s203 = sadd.s32 %s202, %s200
        %s204 = smul.addr %s203, 8
        %s205 = scalar_lea.vmem %s0, %s204
      $region32: #{_lambda_.8} parent=27 // pred_fallthru
        _
      // Predicated region
      $region33: #{_lambda_.8} parent=27 // pred_check
        %p206 = pneg %p71
      $region34: #{_lambda_.8} parent=27 // pred_check_branch
        %208 = sbr.rel (%p206) target = $region36
      $region35: #{_lambda_.8} parent=27 // pred_region
        %p209 = scmp.lt.s32.totalorder %s18, 1
        %s210 = scalar_select %p209, %s18, 1
        %s211 = smul.addr %s210, 4
        %s212 = smul.addr %s211, 8
        %s213 = scalar_lea.vmem %s1, %s212
      $region36: #{_lambda_.8} parent=27 // pred_fallthru
        _
    $region28: #{_lambda_.8} parent=5 // pred_fallthru
      _
    %p214 = scmp.le.s32.totalorder 1, %s11
    %p215 = scmp.lt.s32.totalorder %s11, 3
    %p216 = pnand %p214, %p215
    %p217 = pneg %p216
    // Predicated region
    $region37: #{_lambda_.8} parent=5 // pred_check
      _
    $region38: #{_lambda_.8} parent=5 // pred_check_branch
      %219 = sbr.rel (%p216) target = $region40
    $region39: #{_lambda_.8} parent=5 // pred_region
      %s220 = ssub.s32 %s11, 1
      %p221 = scmp.lt.s32.totalorder %s20, 1
      %s222 = scalar_select %p221, %s20, 1
      %p223 = scmp.lt.s32.totalorder %s21, 0
      %s224 = scalar_select %p223, %s21, 0
      %s225 = sadd.s32 %s224, %s222
      %s226 = smul.addr %s225, 8
      %s227 = scalar_lea.vmem %s0, %s226
      %p228 = pneg %p51
      %p229 = pneg %p48
      %p230 = scmp.lt.s32.totalorder %s20, 1
      %s231 = scalar_select %p230, %s20, 1
      %s232 = smul.addr %s231, 4
      %s233 = smul.addr %s232, 8
      %s234 = scalar_lea.vmem %s1, %s233
      %p235 = pneg %p77
      %p236 = pneg %p74
      %p237 = pneg %p98
      %p238 = pneg %p95
      %p239 = pneg %p119
      %p240 = pneg %p116
      %p241 = pneg %p140
      %p242 = pneg %p137
      %p243 = pneg %p168
      %p244 = pneg %p165
      %s245 = smul.u32 4, %s21
      %p246 = scmp.lt.s32.totalorder %s20, 1
      %s247 = scalar_select %p246, %s20, 1
      %p248 = scmp.lt.s32.totalorder %s245, 3
      %s249 = scalar_select %p248, %s245, 3
      %s250 = smul.addr %s249, 2
      %s251 = smul.addr %s247, 8
      %s252 = sadd.s32 %s250, %s251
      %s253 = smul.addr %s252, 8
      %s254 = scalar_lea.vmem %s5, %s253
      %p255 = scmp.lt.s32.totalorder %s20, 1
      %s256 = scalar_select %p255, %s20, 1
      %p257 = scmp.lt.s32.totalorder %s21, 0
      %s258 = scalar_select %p257, %s21, 0
      %s259 = sadd.s32 %s258, %s256
      %s260 = smul.addr %s259, 8
      %s261 = scalar_lea.vmem %s0, %s260
      %p262 = scmp.lt.s32.totalorder %s20, 1
      %s263 = scalar_select %p262, %s20, 1
      %s264 = smul.addr %s263, 4
      %s265 = smul.addr %s264, 8
      %s266 = scalar_lea.vmem %s1, %s265
      %s267 = smul.u32 4, %s21
      %p268 = scmp.lt.s32.totalorder %s20, 1
      %s269 = scalar_select %p268, %s20, 1
      %p270 = scmp.lt.s32.totalorder %s267, 3
      %s271 = scalar_select %p270, %s267, 3
      %s272 = smul.addr %s271, 2
      %s273 = smul.addr %s269, 8
      %s274 = sadd.s32 %s272, %s273
      %s275 = smul.addr %s274, 8
      %s276 = scalar_lea.vmem %s5, %s275
      %s277 = smul.u32 4, %s21
      %p279 = scmp.eq.s32.totalorder %s21, 0
      // Predicated region
      $region41: #{_lambda_.8} parent=39 // pred_check
        %p280 = pneg %p279
      $region42: #{_lambda_.8} parent=39 // pred_check_branch
        %282 = sbr.rel (%p280) target = $region44
      $region43: #{_lambda_.8} parent=39 // pred_region
        %v283 = vld [vmem:[%s266] sm:$0xff]
        %v284 = vld [vmem:[%s266 + $0x8] sm:$0xff]
        %v285 = vld [vmem:[%s266 + $0x10] sm:$0xff]
        %v286 = vld [vmem:[%s266 + $0x18] sm:$0xff]
        %v287 = vld [vmem:[%s2] sm:$0xff]
        %v288 = vld [vmem:[%s2 + $0x8] sm:$0xff]
        %v289 = vld [vmem:[%s2 + $0x10] sm:$0xff]
        %v290 = vld [vmem:[%s2 + $0x18] sm:$0xff]
        %v291 = vld [vmem:[%s2 + $0x20] sm:$0xff]
        %v292 = vld [vmem:[%s2 + $0x28] sm:$0xff]
        %v293 = vld [vmem:[%s2 + $0x30] sm:$0xff]
        %v294 = vld [vmem:[%s2 + $0x38] sm:$0xff]
        %v295 = vld [vmem:[%s2 + $0x40] sm:$0xff]
        %v296 = vld [vmem:[%s2 + $0x48] sm:$0xff]
        %v297 = vld [vmem:[%s2 + $0x50] sm:$0xff]
        %v298 = vld [vmem:[%s2 + $0x58] sm:$0xff]
        %v299 = vld [vmem:[%s2 + $0x60] sm:$0xff]
        %v300 = vld [vmem:[%s2 + $0x68] sm:$0xff]
        %v301 = vld [vmem:[%s2 + $0x70] sm:$0xff]
        %v302 = vld [vmem:[%s2 + $0x78] sm:$0xff]
        %v303 = vld [vmem:[%s2 + $0x80] sm:$0xff]
        %v304 = vld [vmem:[%s2 + $0x88] sm:$0xff]
        %v305 = vld [vmem:[%s2 + $0x90] sm:$0xff]
        %v306 = vld [vmem:[%s2 + $0x98] sm:$0xff]
        %v307 = vld [vmem:[%s2 + $0xa0] sm:$0xff]
        %v308 = vld [vmem:[%s2 + $0xa8] sm:$0xff]
        %v309 = vld [vmem:[%s2 + $0xb0] sm:$0xff]
        %v310 = vld [vmem:[%s2 + $0xb8] sm:$0xff]
        %v311 = vld [vmem:[%s2 + $0xc0] sm:$0xff]
        %v312 = vld [vmem:[%s2 + $0xc8] sm:$0xff]
        %v313 = vld [vmem:[%s2 + $0xd0] sm:$0xff]
        %v314 = vld [vmem:[%s2 + $0xd8] sm:$0xff]
        %v315 = vld [vmem:[%s2 + $0xe0] sm:$0xff]
        %v316 = vld [vmem:[%s2 + $0xe8] sm:$0xff]
        %v317 = vld [vmem:[%s2 + $0xf0] sm:$0xff]
        %v318 = vld [vmem:[%s2 + $0xf8] sm:$0xff]
        %319 = vmatprep.subr.mxu0 %v288
        %320 = vmatpush1.msra.mxu0 %v287
        %321 = vmatprep.subr.mxu0 %v290
        %322 = vmatpush1.msra.mxu0 %v289
        %323 = vmatprep.subr.mxu0 %v292
        %324 = vmatpush1.msra.mxu0 %v291
        %325 = vmatprep.subr.mxu0 %v294
        %326 = vmatpush1.msra.mxu0 %v293
        %327 = vmatprep.subr.mxu0 %v296
        %328 = vmatpush1.msra.mxu0 %v295
        %329 = vmatprep.subr.mxu0 %v298
        %330 = vmatpush1.msra.mxu0 %v297
        %331 = vmatprep.subr.mxu0 %v300
        %332 = vmatpush1.msra.mxu0 %v299
        %333 = vmatprep.subr.mxu0 %v302
        %334 = vmatpush1.msra.mxu0 %v301
        %335 = vmatprep.subr.mxu0 %v304
        %336 = vmatpush1.msra.mxu0 %v303
        %337 = vmatprep.subr.mxu0 %v306
        %338 = vmatpush1.msra.mxu0 %v305
        %339 = vmatprep.subr.mxu0 %v308
        %340 = vmatpush1.msra.mxu0 %v307
        %341 = vmatprep.subr.mxu0 %v310
        %342 = vmatpush1.msra.mxu0 %v309
        %343 = vmatprep.subr.mxu0 %v312
        %344 = vmatpush1.msra.mxu0 %v311
        %345 = vmatprep.subr.mxu0 %v314
        %346 = vmatpush1.msra.mxu0 %v313
        %347 = vmatprep.subr.mxu0 %v316
        %348 = vmatpush1.msra.mxu0 %v315
        %349 = vmatprep.subr.mxu0 %v318
        %350 = vmatpush1.msra.mxu0 %v317
        %351 = vmatprep.subr.mxu0 0.0
        %352 = vmatpush1.msra.mxu0 0.0
        %353 = vmatprep.subr.mxu0 0.0
        %354 = vmatpush1.msra.mxu0 0.0
        %355 = vmatprep.subr.mxu0 0.0
        %356 = vmatpush1.msra.mxu0 0.0
        %357 = vmatprep.subr.mxu0 0.0
        %358 = vmatpush1.msra.mxu0 0.0
        %359 = vmatprep.subr.mxu0 0.0
        %360 = vmatpush1.msra.mxu0 0.0
        %361 = vmatprep.subr.mxu0 0.0
        %362 = vmatpush1.msra.mxu0 0.0
        %363 = vmatprep.subr.mxu0 0.0
        %364 = vmatpush1.msra.mxu0 0.0
        %365 = vmatprep.subr.mxu0 0.0
        %366 = vmatpush1.msra.mxu0 0.0
        %367 = vmatprep.subr.mxu0 0.0
        %368 = vmatpush1.msra.mxu0 0.0
        %369 = vmatprep.subr.mxu0 0.0
        %370 = vmatpush1.msra.mxu0 0.0
        %371 = vmatprep.subr.mxu0 0.0
        %372 = vmatpush1.msra.mxu0 0.0
        %373 = vmatprep.subr.mxu0 0.0
        %374 = vmatpush1.msra.mxu0 0.0
        %375 = vmatprep.subr.mxu0 0.0
        %376 = vmatpush1.msra.mxu0 0.0
        %377 = vmatprep.subr.mxu0 0.0
        %378 = vmatpush1.msra.mxu0 0.0
        %379 = vmatprep.subr.mxu0 0.0
        %380 = vmatpush1.msra.mxu0 0.0
        %381 = vmatprep.subr.mxu0 0.0
        %382 = vmatpush1.msra.mxu0 0.0
        %383 = vmatprep.mubr.f32.mxu0 0.0
        %384 = vmatmul.mubr.f32.gmra.mrb[0].mxu0 %v283
        %v385 = vpop.f32.mrb[0].mxu0
        %v386 = vadd.f32 0.0, %v385
        %v387 = vpop.f32.mrb[0].mxu0
        %v388 = vadd.f32 0.0, %v387
        %389 = vmatprep.mubr.f32.mxu0 0.0
        %390 = vmatmul.mubr.f32.gmra.mrb[0].mxu0 %v284
        %v391 = vpop.f32.mrb[0].mxu0
        %v392 = vadd.f32 0.0, %v391
        %v393 = vpop.f32.mrb[0].mxu0
        %v394 = vadd.f32 0.0, %v393
        %395 = vmatprep.mubr.f32.mxu0 0.0
        %396 = vmatmul.mubr.f32.gmra.mrb[0].mxu0 %v285
        %v397 = vpop.f32.mrb[0].mxu0
        %v398 = vadd.f32 0.0, %v397
        %v399 = vpop.f32.mrb[0].mxu0
        %v400 = vadd.f32 0.0, %v399
        %401 = vmatprep.mubr.f32.mxu0 0.0
        %402 = vmatmul.mubr.f32.gmra.mrb[0].mxu0 %v286
        %v403 = vpop.f32.mrb[0].mxu0
        %v404 = vadd.f32 0.0, %v403
        %v405 = vpop.f32.mrb[0].mxu0
        %v406 = vadd.f32 0.0, %v405
        %407 = vdwg.mxu0
        %v408 = vpack.c.bf16 %v392, %v386
        %v409 = vpack.c.bf16 %v394, %v388
        %v410 = vpack.c.bf16 %v404, %v398
        %v411 = vpack.c.bf16 %v406, %v400
        %412 = vst [vmem:[#allocation2] sm:$0xff] %v408
        %413 = vst [vmem:[#allocation2 + $0x8] sm:$0xff] %v409
        %414 = vst [vmem:[#allocation2 + $0x10] sm:$0xff] %v410
        %415 = vst [vmem:[#allocation2 + $0x18] sm:$0xff] %v411
      $region44: #{_lambda_.8} parent=39 // pred_fallthru
        _
      %v416 = vld [vmem:[%s261] sm:$0xff]
      %v417 = vlaneseq
      %v418 = vand.u32 %v417, 127
      %v419 = vlaneseq
      %v420 = vshrl.u32 %v419, 7
      %v421 = vsub.s32 0, %v420
      %v422 = vrot.slane %v416, %v421
      %424 = vbcast.lane.b32.xlu0 %v422, 256
      %v425 = vpop.permute.xlu0 %424
      %s427 = sor.u32 256, 8
      %428 = vbcast.lane.b32.xlu0 %v422, %s427
      %v429 = vpop.permute.xlu0 %428
      %s431 = sor.u32 256, 16
      %432 = vbcast.lane.b32.xlu0 %v422, %s431
      %v433 = vpop.permute.xlu0 %432
      %s435 = sor.u32 256, 24
      %436 = vbcast.lane.b32.xlu0 %v422, %s435
      %v437 = vpop.permute.xlu0 %436
      %v438 = vlaneseq
      %v439 = vshrl.u32 %v438, 7
      %v440 = vsub.s32 1, %v439
      %v441 = vrot.slane %v416, %v440
      %443 = vbcast.lane.b32.xlu0 %v441, 256
      %v444 = vpop.permute.xlu0 %443
      %s446 = sor.u32 256, 8
      %447 = vbcast.lane.b32.xlu0 %v441, %s446
      %v448 = vpop.permute.xlu0 %447
      %s450 = sor.u32 256, 16
      %451 = vbcast.lane.b32.xlu0 %v441, %s450
      %v452 = vpop.permute.xlu0 %451
      %s454 = sor.u32 256, 24
      %455 = vbcast.lane.b32.xlu0 %v441, %s454
      %v456 = vpop.permute.xlu0 %455
      %v457 = vlaneseq
      %v458 = vshrl.u32 %v457, 7
      %v459 = vsub.s32 2, %v458
      %v460 = vrot.slane %v416, %v459
      %462 = vbcast.lane.b32.xlu0 %v460, 256
      %v463 = vpop.permute.xlu0 %462
      %s465 = sor.u32 256, 8
      %466 = vbcast.lane.b32.xlu0 %v460, %s465
      %v467 = vpop.permute.xlu0 %466
      %s469 = sor.u32 256, 16
      %470 = vbcast.lane.b32.xlu0 %v460, %s469
      %v471 = vpop.permute.xlu0 %470
      %s473 = sor.u32 256, 24
      %474 = vbcast.lane.b32.xlu0 %v460, %s473
      %v475 = vpop.permute.xlu0 %474
      %v476 = vlaneseq
      %v477 = vshrl.u32 %v476, 7
      %v478 = vsub.s32 3, %v477
      %v479 = vrot.slane %v416, %v478
      %481 = vbcast.lane.b32.xlu0 %v479, 256
      %v482 = vpop.permute.xlu0 %481
      %s484 = sor.u32 256, 8
      %485 = vbcast.lane.b32.xlu0 %v479, %s484
      %v486 = vpop.permute.xlu0 %485
      %s488 = sor.u32 256, 16
      %489 = vbcast.lane.b32.xlu0 %v479, %s488
      %v490 = vpop.permute.xlu0 %489
      %s492 = sor.u32 256, 24
      %493 = vbcast.lane.b32.xlu0 %v479, %s492
      %v494 = vpop.permute.xlu0 %493
      %v495 = vlaneseq
      %v496 = vshrl.u32 %v495, 7
      %v497 = vsub.s32 4, %v496
      %v498 = vrot.slane %v416, %v497
      %500 = vbcast.lane.b32.xlu0 %v498, 256
      %v501 = vpop.permute.xlu0 %500
      %s503 = sor.u32 256, 8
      %504 = vbcast.lane.b32.xlu0 %v498, %s503
      %v505 = vpop.permute.xlu0 %504
      %s507 = sor.u32 256, 16
      %508 = vbcast.lane.b32.xlu0 %v498, %s507
      %v509 = vpop.permute.xlu0 %508
      %s511 = sor.u32 256, 24
      %512 = vbcast.lane.b32.xlu0 %v498, %s511
      %v513 = vpop.permute.xlu0 %512
      %v514 = vlaneseq
      %v515 = vshrl.u32 %v514, 7
      %v516 = vsub.s32 5, %v515
      %v517 = vrot.slane %v416, %v516
      %519 = vbcast.lane.b32.xlu0 %v517, 256
      %v520 = vpop.permute.xlu0 %519
      %s522 = sor.u32 256, 8
      %523 = vbcast.lane.b32.xlu0 %v517, %s522
      %v524 = vpop.permute.xlu0 %523
      %s526 = sor.u32 256, 16
      %527 = vbcast.lane.b32.xlu0 %v517, %s526
      %v528 = vpop.permute.xlu0 %527
      %s530 = sor.u32 256, 24
      %531 = vbcast.lane.b32.xlu0 %v517, %s530
      %v532 = vpop.permute.xlu0 %531
      %v533 = vlaneseq
      %v534 = vshrl.u32 %v533, 7
      %v535 = vsub.s32 6, %v534
      %v536 = vrot.slane %v416, %v535
      %538 = vbcast.lane.b32.xlu0 %v536, 256
      %v539 = vpop.permute.xlu0 %538
      %s541 = sor.u32 256, 8
      %542 = vbcast.lane.b32.xlu0 %v536, %s541
      %v543 = vpop.permute.xlu0 %542
      %s545 = sor.u32 256, 16
      %546 = vbcast.lane.b32.xlu0 %v536, %s545
      %v547 = vpop.permute.xlu0 %546
      %s549 = sor.u32 256, 24
      %550 = vbcast.lane.b32.xlu0 %v536, %s549
      %v551 = vpop.permute.xlu0 %550
      %v552 = vlaneseq
      %v553 = vshrl.u32 %v552, 7
      %v554 = vsub.s32 7, %v553
      %v555 = vrot.slane %v416, %v554
      %557 = vbcast.lane.b32.xlu0 %v555, 256
      %v558 = vpop.permute.xlu0 %557
      %s560 = sor.u32 256, 8
      %561 = vbcast.lane.b32.xlu0 %v555, %s560
      %v562 = vpop.permute.xlu0 %561
      %s564 = sor.u32 256, 16
      %565 = vbcast.lane.b32.xlu0 %v555, %s564
      %v566 = vpop.permute.xlu0 %565
      %s568 = sor.u32 256, 24
      %569 = vbcast.lane.b32.xlu0 %v555, %s568
      %v570 = vpop.permute.xlu0 %569
      %vm571 = vcmp.eq.s32.totalorder %v418, %v425
      %vm572 = vcmp.eq.s32.totalorder %v418, %v429
      %vm573 = vcmp.eq.s32.totalorder %v418, %v433
      %vm574 = vcmp.eq.s32.totalorder %v418, %v437
      %vm575 = vcmp.eq.s32.totalorder %v418, %v444
      %vm576 = vcmp.eq.s32.totalorder %v418, %v448
      %vm577 = vcmp.eq.s32.totalorder %v418, %v452
      %vm578 = vcmp.eq.s32.totalorder %v418, %v456
      %vm579 = vcmp.eq.s32.totalorder %v418, %v463
      %vm580 = vcmp.eq.s32.totalorder %v418, %v467
      %vm581 = vcmp.eq.s32.totalorder %v418, %v471
      %vm582 = vcmp.eq.s32.totalorder %v418, %v475
      %vm583 = vcmp.eq.s32.totalorder %v418, %v482
      %vm584 = vcmp.eq.s32.totalorder %v418, %v486
      %vm585 = vcmp.eq.s32.totalorder %v418, %v490
      %vm586 = vcmp.eq.s32.totalorder %v418, %v494
      %vm587 = vcmp.eq.s32.totalorder %v418, %v501
      %vm588 = vcmp.eq.s32.totalorder %v418, %v505
      %vm589 = vcmp.eq.s32.totalorder %v418, %v509
      %vm590 = vcmp.eq.s32.totalorder %v418, %v513
      %vm591 = vcmp.eq.s32.totalorder %v418, %v520
      %vm592 = vcmp.eq.s32.totalorder %v418, %v524
      %vm593 = vcmp.eq.s32.totalorder %v418, %v528
      %vm594 = vcmp.eq.s32.totalorder %v418, %v532
      %vm595 = vcmp.eq.s32.totalorder %v418, %v539
      %vm596 = vcmp.eq.s32.totalorder %v418, %v543
      %vm597 = vcmp.eq.s32.totalorder %v418, %v547
      %vm598 = vcmp.eq.s32.totalorder %v418, %v551
      %vm599 = vcmp.eq.s32.totalorder %v418, %v558
      %vm600 = vcmp.eq.s32.totalorder %v418, %v562
      %vm601 = vcmp.eq.s32.totalorder %v418, %v566
      %vm602 = vcmp.eq.s32.totalorder %v418, %v570
      %v603 = vsel %vm571, 1, 0
      %v604 = vsel %vm572, 1, 0
      %v605 = vsel %vm573, 1, 0
      %v606 = vsel %vm574, 1, 0
      %v607 = vsel %vm575, 1, 0
      %v608 = vsel %vm576, 1, 0
      %v609 = vsel %vm577, 1, 0
      %v610 = vsel %vm578, 1, 0
      %v611 = vsel %vm579, 1, 0
      %v612 = vsel %vm580, 1, 0
      %v613 = vsel %vm581, 1, 0
      %v614 = vsel %vm582, 1, 0
      %v615 = vsel %vm583, 1, 0
      %v616 = vsel %vm584, 1, 0
      %v617 = vsel %vm585, 1, 0
      %v618 = vsel %vm586, 1, 0
      %v619 = vsel %vm587, 1, 0
      %v620 = vsel %vm588, 1, 0
      %v621 = vsel %vm589, 1, 0
      %v622 = vsel %vm590, 1, 0
      %v623 = vsel %vm591, 1, 0
      %v624 = vsel %vm592, 1, 0
      %v625 = vsel %vm593, 1, 0
      %v626 = vsel %vm594, 1, 0
      %v627 = vsel %vm595, 1, 0
      %v628 = vsel %vm596, 1, 0
      %v629 = vsel %vm597, 1, 0
      %v630 = vsel %vm598, 1, 0
      %v631 = vsel %vm599, 1, 0
      %v632 = vsel %vm600, 1, 0
      %v633 = vsel %vm601, 1, 0
      %v634 = vsel %vm602, 1, 0
      %v635 = vcvt.s32.f32 %v603
      %v636 = vcvt.s32.f32 %v604
      %v637 = vcvt.s32.f32 %v605
      %v638 = vcvt.s32.f32 %v606
      %v639 = vcvt.s32.f32 %v607
      %v640 = vcvt.s32.f32 %v608
      %v641 = vcvt.s32.f32 %v609
      %v642 = vcvt.s32.f32 %v610
      %v643 = vcvt.s32.f32 %v611
      %v644 = vcvt.s32.f32 %v612
      %v645 = vcvt.s32.f32 %v613
      %v646 = vcvt.s32.f32 %v614
      %v647 = vcvt.s32.f32 %v615
      %v648 = vcvt.s32.f32 %v616
      %v649 = vcvt.s32.f32 %v617
      %v650 = vcvt.s32.f32 %v618
      %v651 = vcvt.s32.f32 %v619
      %v652 = vcvt.s32.f32 %v620
      %v653 = vcvt.s32.f32 %v621
      %v654 = vcvt.s32.f32 %v622
      %v655 = vcvt.s32.f32 %v623
      %v656 = vcvt.s32.f32 %v624
      %v657 = vcvt.s32.f32 %v625
      %v658 = vcvt.s32.f32 %v626
      %v659 = vcvt.s32.f32 %v627
      %v660 = vcvt.s32.f32 %v628
      %v661 = vcvt.s32.f32 %v629
      %v662 = vcvt.s32.f32 %v630
      %v663 = vcvt.s32.f32 %v631
      %v664 = vcvt.s32.f32 %v632
      %v665 = vcvt.s32.f32 %v633
      %v666 = vcvt.s32.f32 %v634
      %v667 = vpack.c.bf16 %v636, %v635
      %v668 = vpack.c.bf16 %v638, %v637
      %v669 = vpack.c.bf16 %v640, %v639
      %v670 = vpack.c.bf16 %v642, %v641
      %v671 = vpack.c.bf16 %v644, %v643
      %v672 = vpack.c.bf16 %v646, %v645
      %v673 = vpack.c.bf16 %v648, %v647
      %v674 = vpack.c.bf16 %v650, %v649
      %v675 = vpack.c.bf16 %v652, %v651
      %v676 = vpack.c.bf16 %v654, %v653
      %v677 = vpack.c.bf16 %v656, %v655
      %v678 = vpack.c.bf16 %v658, %v657
      %v679 = vpack.c.bf16 %v660, %v659
      %v680 = vpack.c.bf16 %v662, %v661
      %v681 = vpack.c.bf16 %v664, %v663
      %v682 = vpack.c.bf16 %v666, %v665
      %v683 = vld [vmem:[#allocation2] sm:$0xff]
      %v684 = vld [vmem:[#allocation2 + $0x8] sm:$0xff]
      %v685 = vld [vmem:[#allocation2 + $0x10] sm:$0xff]
      %v686 = vld [vmem:[#allocation2 + $0x18] sm:$0xff]
      %vm687 = vcmask 261120
      %v689 = vsel %vm687, %v667, 0
      %v692 = vsel %vm687, %v668, 0
      %v695 = vsel %vm687, %v669, 0
      %v698 = vsel %vm687, %v670, 0
      %v701 = vsel %vm687, %v671, 0
      %v704 = vsel %vm687, %v672, 0
      %v707 = vsel %vm687, %v673, 0
      %v710 = vsel %vm687, %v674, 0
      %v713 = vsel %vm687, %v675, 0
      %v716 = vsel %vm687, %v676, 0
      %v719 = vsel %vm687, %v677, 0
      %v722 = vsel %vm687, %v678, 0
      %v725 = vsel %vm687, %v679, 0
      %v728 = vsel %vm687, %v680, 0
      %v731 = vsel %vm687, %v681, 0
      %v734 = vsel %vm687, %v682, 0
      %736 = vmatprep.subr.bf16.mxu0 %v684
      %737 = vmatpush1.bf16.msra.mxu0 %v683
      %738 = vmatprep.subr.bf16.mxu0 %v686
      %739 = vmatpush1.bf16.msra.mxu0 %v685
      %740 = vmatprep.subr.bf16.mxu0 0
      %741 = vmatpush1.bf16.msra.mxu0 0
      %742 = vmatprep.subr.bf16.mxu0 0
      %743 = vmatpush1.bf16.msra.mxu0 0
      %744 = vmatprep.subr.bf16.mxu0 0
      %745 = vmatpush1.bf16.msra.mxu0 0
      %746 = vmatprep.subr.bf16.mxu0 0
      %747 = vmatpush1.bf16.msra.mxu0 0
      %748 = vmatprep.subr.bf16.mxu0 0
      %749 = vmatpush1.bf16.msra.mxu0 0
      %750 = vmatprep.subr.bf16.mxu0 0
      %751 = vmatpush1.bf16.msra.mxu0 0
      %752 = vmatprep.subr.bf16.mxu0 0
      %753 = vmatpush1.bf16.msra.mxu0 0
      %754 = vmatprep.subr.bf16.mxu0 0
      %755 = vmatpush1.bf16.msra.mxu0 0
      %756 = vmatprep.subr.bf16.mxu0 0
      %757 = vmatpush1.bf16.msra.mxu0 0
      %758 = vmatprep.subr.bf16.mxu0 0
      %759 = vmatpush1.bf16.msra.mxu0 0
      %760 = vmatprep.subr.bf16.mxu0 0
      %761 = vmatpush1.bf16.msra.mxu0 0
      %762 = vmatprep.subr.bf16.mxu0 0
      %763 = vmatpush1.bf16.msra.mxu0 0
      %764 = vmatprep.subr.bf16.mxu0 0
      %765 = vmatpush1.bf16.msra.mxu0 0
      %766 = vmatprep.subr.bf16.mxu0 0
      %767 = vmatpush1.bf16.msra.mxu0 0
      %768 = vmatprep.mubr.bf16.mxu0 0
      %769 = vmatmul.mubr.bf16.gmra.mrb[0].mxu0 %v689
      %v770 = vpop.f32.mrb[0].mxu0
      %v771 = vadd.f32 0.0, %v770
      %v772 = vpop.f32.mrb[0].mxu0
      %v773 = vadd.f32 0.0, %v772
      %v774 = vpop.f32.mrb[0].mxu0
      %v775 = vadd.f32 0.0, %v774
      %v776 = vpop.f32.mrb[0].mxu0
      %v777 = vadd.f32 0.0, %v776
      %778 = vmatprep.mubr.bf16.mxu0 0
      %779 = vmatmul.mubr.bf16.gmra.mrb[0].mxu0 %v692
      %v780 = vpop.f32.mrb[0].mxu0
      %v781 = vadd.f32 0.0, %v780
      %v782 = vpop.f32.mrb[0].mxu0
      %v783 = vadd.f32 0.0, %v782
      %v784 = vpop.f32.mrb[0].mxu0
      %v785 = vadd.f32 0.0, %v784
      %v786 = vpop.f32.mrb[0].mxu0
      %v787 = vadd.f32 0.0, %v786
      %788 = vmatprep.mubr.bf16.mxu0 0
      %789 = vmatmul.mubr.bf16.gmra.mrb[0].mxu0 %v695
      %v790 = vpop.f32.mrb[0].mxu0
      %v791 = vadd.f32 0.0, %v790
      %v792 = vpop.f32.mrb[0].mxu0
      %v793 = vadd.f32 0.0, %v792
      %v794 = vpop.f32.mrb[0].mxu0
      %v795 = vadd.f32 0.0, %v794
      %v796 = vpop.f32.mrb[0].mxu0
      %v797 = vadd.f32 0.0, %v796
      %798 = vmatprep.mubr.bf16.mxu0 0
      %799 = vmatmul.mubr.bf16.gmra.mrb[0].mxu0 %v698
      %v800 = vpop.f32.mrb[0].mxu0
      %v801 = vadd.f32 0.0, %v800
      %v802 = vpop.f32.mrb[0].mxu0
      %v803 = vadd.f32 0.0, %v802
      %v804 = vpop.f32.mrb[0].mxu0
      %v805 = vadd.f32 0.0, %v804
      %v806 = vpop.f32.mrb[0].mxu0
      %v807 = vadd.f32 0.0, %v806
      %808 = vmatprep.mubr.bf16.mxu0 0
      %809 = vmatmul.mubr.bf16.gmra.mrb[0].mxu0 %v701
      %v810 = vpop.f32.mrb[0].mxu0
      %v811 = vadd.f32 0.0, %v810
      %v812 = vpop.f32.mrb[0].mxu0
      %v813 = vadd.f32 0.0, %v812
      %v814 = vpop.f32.mrb[0].mxu0
      %v815 = vadd.f32 0.0, %v814
      %v816 = vpop.f32.mrb[0].mxu0
      %v817 = vadd.f32 0.0, %v816
      %818 = vmatprep.mubr.bf16.mxu0 0
      %819 = vmatmul.mubr.bf16.gmra.mrb[0].mxu0 %v704
      %v820 = vpop.f32.mrb[0].mxu0
      %v821 = vadd.f32 0.0, %v820
      %v822 = vpop.f32.mrb[0].mxu0
      %v823 = vadd.f32 0.0, %v822
      %v824 = vpop.f32.mrb[0].mxu0
      %v825 = vadd.f32 0.0, %v824
      %v826 = vpop.f32.mrb[0].mxu0
      %v827 = vadd.f32 0.0, %v826
      %828 = vmatprep.mubr.bf16.mxu0 0
      %829 = vmatmul.mubr.bf16.gmra.mrb[0].mxu0 %v707
      %v830 = vpop.f32.mrb[0].mxu0
      %v831 = vadd.f32 0.0, %v830
      %v832 = vpop.f32.mrb[0].mxu0
      %v833 = vadd.f32 0.0, %v832
      %v834 = vpop.f32.mrb[0].mxu0
      %v835 = vadd.f32 0.0, %v834
      %v836 = vpop.f32.mrb[0].mxu0
      %v837 = vadd.f32 0.0, %v836
      %838 = vmatprep.mubr.bf16.mxu0 0
      %839 = vmatmul.mubr.bf16.gmra.mrb[0].mxu0 %v710
      %v840 = vpop.f32.mrb[0].mxu0
      %v841 = vadd.f32 0.0, %v840
      %v842 = vpop.f32.mrb[0].mxu0
      %v843 = vadd.f32 0.0, %v842
      %v844 = vpop.f32.mrb[0].mxu0
      %v845 = vadd.f32 0.0, %v844
      %v846 = vpop.f32.mrb[0].mxu0
      %v847 = vadd.f32 0.0, %v846
      %848 = vmatprep.mubr.bf16.mxu0 0
      %849 = vmatmul.mubr.bf16.gmra.mrb[0].mxu0 %v713
      %v850 = vpop.f32.mrb[0].mxu0
      %v851 = vadd.f32 0.0, %v850
      %v852 = vpop.f32.mrb[0].mxu0
      %v853 = vadd.f32 0.0, %v852
      %v854 = vpop.f32.mrb[0].mxu0
      %v855 = vadd.f32 0.0, %v854
      %v856 = vpop.f32.mrb[0].mxu0
      %v857 = vadd.f32 0.0, %v856
      %858 = vmatprep.mubr.bf16.mxu0 0
      %859 = vmatmul.mubr.bf16.gmra.mrb[0].mxu0 %v716
      %v860 = vpop.f32.mrb[0].mxu0
      %v861 = vadd.f32 0.0, %v860
      %v862 = vpop.f32.mrb[0].mxu0
      %v863 = vadd.f32 0.0, %v862
      %v864 = vpop.f32.mrb[0].mxu0
      %v865 = vadd.f32 0.0, %v864
      %v866 = vpop.f32.mrb[0].mxu0
      %v867 = vadd.f32 0.0, %v866
      %868 = vmatprep.mubr.bf16.mxu0 0
      %869 = vmatmul.mubr.bf16.gmra.mrb[0].mxu0 %v719
      %v870 = vpop.f32.mrb[0].mxu0
      %v871 = vadd.f32 0.0, %v870
      %v872 = vpop.f32.mrb[0].mxu0
      %v873 = vadd.f32 0.0, %v872
      %v874 = vpop.f32.mrb[0].mxu0
      %v875 = vadd.f32 0.0, %v874
      %v876 = vpop.f32.mrb[0].mxu0
      %v877 = vadd.f32 0.0, %v876
      %878 = vmatprep.mubr.bf16.mxu0 0
      %879 = vmatmul.mubr.bf16.gmra.mrb[0].mxu0 %v722
      %v880 = vpop.f32.mrb[0].mxu0
      %v881 = vadd.f32 0.0, %v880
      %v882 = vpop.f32.mrb[0].mxu0
      %v883 = vadd.f32 0.0, %v882
      %v884 = vpop.f32.mrb[0].mxu0
      %v885 = vadd.f32 0.0, %v884
      %v886 = vpop.f32.mrb[0].mxu0
      %v887 = vadd.f32 0.0, %v886
      %888 = vmatprep.mubr.bf16.mxu0 0
      %889 = vmatmul.mubr.bf16.gmra.mrb[0].mxu0 %v725
      %v890 = vpop.f32.mrb[0].mxu0
      %v891 = vadd.f32 0.0, %v890
      %v892 = vpop.f32.mrb[0].mxu0
      %v893 = vadd.f32 0.0, %v892
      %v894 = vpop.f32.mrb[0].mxu0
      %v895 = vadd.f32 0.0, %v894
      %v896 = vpop.f32.mrb[0].mxu0
      %v897 = vadd.f32 0.0, %v896
      %898 = vmatprep.mubr.bf16.mxu0 0
      %899 = vmatmul.mubr.bf16.gmra.mrb[0].mxu0 %v728
      %v900 = vpop.f32.mrb[0].mxu0
      %v901 = vadd.f32 0.0, %v900
      %v902 = vpop.f32.mrb[0].mxu0
      %v903 = vadd.f32 0.0, %v902
      %v904 = vpop.f32.mrb[0].mxu0
      %v905 = vadd.f32 0.0, %v904
      %v906 = vpop.f32.mrb[0].mxu0
      %v907 = vadd.f32 0.0, %v906
      %908 = vmatprep.mubr.bf16.mxu0 0
      %909 = vmatmul.mubr.bf16.gmra.mrb[0].mxu0 %v731
      %v910 = vpop.f32.mrb[0].mxu0
      %v911 = vadd.f32 0.0, %v910
      %v912 = vpop.f32.mrb[0].mxu0
      %v913 = vadd.f32 0.0, %v912
      %v914 = vpop.f32.mrb[0].mxu0
      %v915 = vadd.f32 0.0, %v914
      %v916 = vpop.f32.mrb[0].mxu0
      %v917 = vadd.f32 0.0, %v916
      %918 = vmatprep.mubr.bf16.mxu0 0
      %919 = vmatmul.mubr.bf16.gmra.mrb[0].mxu0 %v734
      %v920 = vpop.f32.mrb[0].mxu0
      %v921 = vadd.f32 0.0, %v920
      %v922 = vpop.f32.mrb[0].mxu0
      %v923 = vadd.f32 0.0, %v922
      %v924 = vpop.f32.mrb[0].mxu0
      %v925 = vadd.f32 0.0, %v924
      %v926 = vpop.f32.mrb[0].mxu0
      %v927 = vadd.f32 0.0, %v926
      %928 = vdwg.mxu0
      %v929 = vmax.f32 %v771, %v791
      %v930 = vmax.f32 %v929, %v811
      %v931 = vmax.f32 %v930, %v831
      %v932 = vmax.f32 %v931, %v851
      %v933 = vmax.f32 %v932, %v871
      %v934 = vmax.f32 %v933, %v891
      %v935 = vmax.f32 %v934, %v911
      %v936 = vmax.f32 %v773, %v793
      %v937 = vmax.f32 %v936, %v813
      %v938 = vmax.f32 %v937, %v833
      %v939 = vmax.f32 %v938, %v853
      %v940 = vmax.f32 %v939, %v873
      %v941 = vmax.f32 %v940, %v893
      %v942 = vmax.f32 %v941, %v913
      %v943 = vmax.f32 %v775, %v795
      %v944 = vmax.f32 %v943, %v815
      %v945 = vmax.f32 %v944, %v835
      %v946 = vmax.f32 %v945, %v855
      %v947 = vmax.f32 %v946, %v875
      %v948 = vmax.f32 %v947, %v895
      %v949 = vmax.f32 %v948, %v915
      %v950 = vmax.f32 %v777, %v797
      %v951 = vmax.f32 %v950, %v817
      %v952 = vmax.f32 %v951, %v837
      %v953 = vmax.f32 %v952, %v857
      %v954 = vmax.f32 %v953, %v877
      %v955 = vmax.f32 %v954, %v897
      %v956 = vmax.f32 %v955, %v917
      %v957 = vmax.f32 %v781, %v801
      %v958 = vmax.f32 %v957, %v821
      %v959 = vmax.f32 %v958, %v841
      %v960 = vmax.f32 %v959, %v861
      %v961 = vmax.f32 %v960, %v881
      %v962 = vmax.f32 %v961, %v901
      %v963 = vmax.f32 %v962, %v921
      %v964 = vmax.f32 %v783, %v803
      %v965 = vmax.f32 %v964, %v823
      %v966 = vmax.f32 %v965, %v843
      %v967 = vmax.f32 %v966, %v863
      %v968 = vmax.f32 %v967, %v883
      %v969 = vmax.f32 %v968, %v903
      %v970 = vmax.f32 %v969, %v923
      %v971 = vmax.f32 %v785, %v805
      %v972 = vmax.f32 %v971, %v825
      %v973 = vmax.f32 %v972, %v845
      %v974 = vmax.f32 %v973, %v865
      %v975 = vmax.f32 %v974, %v885
      %v976 = vmax.f32 %v975, %v905
      %v977 = vmax.f32 %v976, %v925
      %v978 = vmax.f32 %v787, %v807
      %v979 = vmax.f32 %v978, %v827
      %v980 = vmax.f32 %v979, %v847
      %v981 = vmax.f32 %v980, %v867
      %v982 = vmax.f32 %v981, %v887
      %v983 = vmax.f32 %v982, %v907
      %v984 = vmax.f32 %v983, %v927
      %s985 = smul.u32 %s21, 32
      %s986 = sshra.s32 %s985, 4
      %s987 = sand.u32 %s985, 15
      %s988 = smul.u32 %s986, 2
      %s989 = smul.addr %s988, 8
      %s990 = scalar_lea.vmem [#allocation2], %s989
      %v991 = vld [vmem:[%s990] sm:$0xff]
      %v992 = vld [vmem:[%s990 + $0x8] sm:$0xff]
      %v993 = vld [vmem:[%s990 + $0x10] sm:$0xff]
      %v994 = vld [vmem:[%s990 + $0x18] sm:$0xff]
      %v995 = vunpack.c.l.bf16 %v991
      %v996 = vunpack.c.l.bf16 %v992
      %v997 = vunpack.c.h.bf16 %v991
      %v998 = vunpack.c.h.bf16 %v992
      %v999 = vunpack.c.l.bf16 %v993
      %v1000 = vunpack.c.l.bf16 %v994
      %v1001 = vunpack.c.h.bf16 %v993
      %v1002 = vunpack.c.h.bf16 %v994
      %v1003 = vsub.f32 %v935, %v995
      %v1004 = vsub.f32 %v942, %v996
      %v1005 = vsub.f32 %v949, %v997
      %v1006 = vsub.f32 %v956, %v998
      %v1007 = vsub.f32 %v963, %v999
      %v1008 = vsub.f32 %v970, %v1000
      %v1009 = vsub.f32 %v977, %v1001
      %v1010 = vsub.f32 %v984, %v1002
      %v1011 = vld [vmem:[%s3] sm:$0x3]
      %v1013 = vlaneseq
      %v1014 = vshrl.u32 %v1013, 7
      %v1015 = vsub.s32 0, %v1014
      %v1016 = vrot.slane %v1011, %v1015
      %v1017 = vlaneseq
      %v1018 = vshrl.u32 %v1017, 7
      %v1019 = vsub.s32 1, %v1018
      %v1020 = vrot.slane %v1011, %v1019
      %v1023 = vmul.f32 %v1003, %v1016
      %v1024 = vmul.f32 %v1004, %v1020
      %v1025 = vmul.f32 %v1005, %v1016
      %v1026 = vmul.f32 %v1006, %v1020
      %v1027 = vmul.f32 %v1007, %v1016
      %v1028 = vmul.f32 %v1008, %v1020
      %v1029 = vmul.f32 %v1009, %v1016
      %v1030 = vmul.f32 %v1010, %v1020
      %v1031 = vld [vmem:[%s4] sm:$0x3]
      %v1033 = vlaneseq
      %v1034 = vshrl.u32 %v1033, 7
      %v1035 = vsub.s32 0, %v1034
      %v1036 = vrot.slane %v1031, %v1035
      %v1037 = vlaneseq
      %v1038 = vshrl.u32 %v1037, 7
      %v1039 = vsub.s32 1, %v1038
      %v1040 = vrot.slane %v1031, %v1039
      %v1043 = vadd.f32 %v1023, %v1036
      %v1044 = vadd.f32 %v1024, %v1040
      %v1045 = vadd.f32 %v1025, %v1036
      %v1046 = vadd.f32 %v1026, %v1040
      %v1047 = vadd.f32 %v1027, %v1036
      %v1048 = vadd.f32 %v1028, %v1040
      %v1049 = vadd.f32 %v1029, %v1036
      %v1050 = vadd.f32 %v1030, %v1040
      %vm1051 = vcmp.gt.f32.partialorder %v1043, 0.0
      %vm1052 = vcmp.gt.f32.partialorder %v1044, 0.0
      %vm1053 = vcmp.gt.f32.partialorder %v1045, 0.0
      %vm1054 = vcmp.gt.f32.partialorder %v1046, 0.0
      %vm1055 = vcmp.gt.f32.partialorder %v1047, 0.0
      %vm1056 = vcmp.gt.f32.partialorder %v1048, 0.0
      %vm1057 = vcmp.gt.f32.partialorder %v1049, 0.0
      %vm1058 = vcmp.gt.f32.partialorder %v1050, 0.0
      %v1059 = vmul.f32 %v1043, 0.2
      %v1060 = vmul.f32 %v1044, 0.2
      %v1061 = vmul.f32 %v1045, 0.2
      %v1062 = vmul.f32 %v1046, 0.2
      %v1063 = vmul.f32 %v1047, 0.2
      %v1064 = vmul.f32 %v1048, 0.2
      %v1065 = vmul.f32 %v1049, 0.2
      %v1066 = vmul.f32 %v1050, 0.2
      %v1067 = vsel %vm1051, %v1043, %v1059
      %v1068 = vsel %vm1052, %v1044, %v1060
      %v1069 = vsel %vm1053, %v1045, %v1061
      %v1070 = vsel %vm1054, %v1046, %v1062
      %v1071 = vsel %vm1055, %v1047, %v1063
      %v1072 = vsel %vm1056, %v1048, %v1064
      %v1073 = vsel %vm1057, %v1049, %v1065
      %v1074 = vsel %vm1058, %v1050, %v1066
      %1075 = vst [vmem:[%s276] sm:$0xff] %v1067
      %1076 = vst [vmem:[%s276 + $0x8] sm:$0xff] %v1068
      %1077 = vst [vmem:[%s276 + $0x10] sm:$0xff] %v1069
      %1078 = vst [vmem:[%s276 + $0x18] sm:$0xff] %v1070
      %1079 = vst [vmem:[%s276 + $0x20] sm:$0xff] %v1071
      %1080 = vst [vmem:[%s276 + $0x28] sm:$0xff] %v1072
      %1081 = vst [vmem:[%s276 + $0x30] sm:$0xff] %v1073
      %1082 = vst [vmem:[%s276 + $0x38] sm:$0xff] %v1074
      %s1083 = smul.u32 4, %s21
      %p1084 = scmp.lt.s32.totalorder %s20, 1
      %s1085 = scalar_select %p1084, %s20, 1
      %p1086 = scmp.lt.s32.totalorder %s1083, 3
      %s1087 = scalar_select %p1086, %s1083, 3
      %s1088 = smul.addr %s1087, 2
      %s1089 = smul.addr %s1085, 8
      %s1090 = sadd.s32 %s1088, %s1089
      %s1091 = smul.addr %s1090, 8
      %s1092 = scalar_lea.vmem %s5, %s1091
      // Predicated region
      $region45: #{_lambda_.8} parent=39 // pred_check
        %p1093 = pneg %p165
      $region46: #{_lambda_.8} parent=39 // pred_check_branch
        %1095 = sbr.rel (%p1093) target = $region48
      $region47: #{_lambda_.8} parent=39 // pred_region
        %s1096 = smul.u32 4, %s21
      $region48: #{_lambda_.8} parent=39 // pred_fallthru
        _
    $region40: #{_lambda_.8} parent=5 // pred_fallthru
      _
    %p1097 = scmp.le.s32.totalorder 2, %s11
    // Predicated region
    $region49: #{_lambda_.8} parent=5 // pred_check
      %p1098 = pneg %p1097
    $region50: #{_lambda_.8} parent=5 // pred_check_branch
      %1100 = sbr.rel (%p1098) target = $region52
    $region51: #{_lambda_.8} parent=5 // pred_region
      %s1101 = ssub.s32 %s11, 2
      // Predicated region
      $region53: #{_lambda_.8} parent=51 // pred_check
        %p1102 = pneg %p171
      $region54: #{_lambda_.8} parent=51 // pred_check_branch
        %1104 = sbr.rel (%p1102) target = $region56
      $region55: #{_lambda_.8} parent=51 // pred_region
        %s1105 = smul.u32 4, %s23
        %p1106 = scmp.lt.s32.totalorder %s22, 1
        %s1107 = scalar_select %p1106, %s22, 1
        %p1108 = scmp.lt.s32.totalorder %s1105, 3
        %s1109 = scalar_select %p1108, %s1105, 3
        %s1110 = smul.addr %s1109, 2
        %s1111 = smul.addr %s1107, 8
        %s1112 = sadd.s32 %s1110, %s1111
        %s1113 = smul.addr %s1112, 8
        %s1114 = scalar_lea.vmem %s5, %s1113
      $region56: #{_lambda_.8} parent=51 // pred_fallthru
        _
    $region52: #{_lambda_.8} parent=5 // pred_fallthru
      _
  $region6: #{_lambda_.8} parent=0 // loop_footer
    %s15 = sadd.s32 1, %s11
  $region7: #{_lambda_.8} parent=0 // loop_footer_branch
    %10 = sbr.rel target = $region3
  $region8: #{_lambda_.8} parent=0 // loop_exit
    _

// kernel: _lambda_.9
$region0: #{_lambda_.9}
  #allocation0 [shape = 'u32[]', space=smem, size = 0x4, offset = 0x4, fixed_abs, tag = 'smem constant byte address 0x4 - core index']
  #allocation1 [shape = 'u32[144,128]{1,0:T(1,128)}', space=vmem, size = 0x12000, scoped, tag = 'internal scratch']
  %s0 = inlined_call_operand.vmem [shape: f32[2,32,64], index: 0, kind: input, shape index: {}]
  %s1 = inlined_call_operand.vmem [shape: f32[2,32,64], index: 1, kind: input, shape index: {}]
  %s2 = inlined_call_operand.vmem [shape: f32[2,32,128], index: 2, kind: input, shape index: {}]
  %s3 = inlined_call_operand.vmem [shape: f32[2,32,256], index: 3, kind: input, shape index: {}]
  %s4 = inlined_call_operand.vmem [shape: f32[64,256], index: 4, kind: input, shape index: {}]
  %s5 = inlined_call_operand.vmem [shape: f32[64,256], index: 5, kind: input, shape index: {}]
  %s6 = inlined_call_operand.vmem [shape: f32[128,256], index: 6, kind: input, shape index: {}]
  %s7 = inlined_call_operand.vmem [shape: f32[256,256], index: 7, kind: input, shape index: {}]
  %s8 = inlined_call_operand.vmem [shape: f32[1,256], index: 8, kind: input, shape index: {}]
  %s9 = inlined_call_operand.vmem [shape: f32[1,256], index: 9, kind: input, shape index: {}]
  %s10 = inlined_call_operand.vmem [shape: f32[256,128], index: 10, kind: input, shape index: {}]
  %s11 = inlined_call_operand.vmem [shape: f32[1,128], index: 11, kind: input, shape index: {}]
  %s12 = inlined_call_operand.vmem [shape: f32[1,128], index: 12, kind: input, shape index: {}]
  %s13 = inlined_call_operand.vmem [shape: f32[1,128], index: 13, kind: input, shape index: {}]
  %s14 = inlined_call_operand.hbm [shape: f32[2,1,32], index: 14, kind: output, shape index: {}]
  %s15 = sld [smem:[#allocation0]]
  $region89: #{_lambda_.9} parent=0
    _
  %s17 = ssub.s32 1, %s15
  %s18 = scalar_select 0, %s17, %s15
  $region1: #{_lambda_.9} parent=0
    #allocation2 [shape = 'u8[1024]{0}', space=vmem, size = 0x400, scoped, tag = 'output window, operand 0']
    #allocation3 [shape = 's32[2]{0}', space=sflag, size = 0x8, scoped, tag = 'scoped memory for _lambda_.9']
    %19 = vsyncpa [#allocation3], 0
    %s20 = scalar_lea.sflag [#allocation3], 1
    %21 = vsyncpa %s20, 0
    loop: start=0, step=1, limit=4
    $region2: #{_lambda_.9} parent=1 // loop_pre_header
      _
    $region3: #{_lambda_.9} parent=1 // loop_header
      %s23 = sphi 0, %s27
      %p24 = scmp.ge.s32.totalorder %s23, 4
      %s30 = sphi 0, %s42
      %s31 = sphi 0, %s38
      %s32 = sphi 0, %s30
      %s33 = sphi 0, %s31
      %s34 = sphi 0, %s32
      %s35 = sphi 0, %s33
      %s47 = sphi 0, %s49
      %s50 = sphi 0, %s47
      %s51 = sphi 0, %s50
      %s67 = sphi 0, %s51
      %s75 = sphi 0, %s77
      %s78 = sphi 0, %s75
      %s79 = sphi 0, %s78
      %s95 = sphi 0, %s79
      %s103 = sphi 0, %s105
      %s106 = sphi 0, %s103
      %s107 = sphi 0, %s106
      %s123 = sphi 0, %s107
      %s131 = sphi 0, %s133
      %s134 = sphi 0, %s131
      %s135 = sphi 0, %s134
      %s151 = sphi 0, %s135
      %s155 = sphi 0, %s155
      %s157 = sphi 0, %s155
      %s158 = sphi 0, %s157
      %s172 = sphi 0, %s158
      %s176 = sphi 0, %s176
      %s178 = sphi 0, %s176
      %s179 = sphi 0, %s178
      %s193 = sphi 0, %s179
      %s197 = sphi 0, %s197
      %s199 = sphi 0, %s197
      %s200 = sphi 0, %s199
      %s214 = sphi 0, %s200
      %s218 = sphi 0, %s218
      %s220 = sphi 0, %s218
      %s221 = sphi 0, %s220
      %s235 = sphi 0, %s221
      %s239 = sphi 0, %s239
      %s241 = sphi 0, %s239
      %s242 = sphi 0, %s241
      %s256 = sphi 0, %s242
      %s260 = sphi 0, %s260
      %s262 = sphi 0, %s260
      %s263 = sphi 0, %s262
      %s277 = sphi 0, %s263
      %s281 = sphi 0, %s281
      %s283 = sphi 0, %s281
      %s284 = sphi 0, %s283
      %s298 = sphi 0, %s284
      %s302 = sphi 0, %s302
      %s304 = sphi 0, %s302
      %s305 = sphi 0, %s304
      %s319 = sphi 0, %s305
      %s323 = sphi 0, %s323
      %s325 = sphi 0, %s323
      %s326 = sphi 0, %s325
      %s340 = sphi 0, %s326
      %s344 = sphi 0, %s344
      %s346 = sphi 0, %s344
      %s347 = sphi 0, %s346
      %s361 = sphi 0, %s347
      %s369 = sphi 0, %s371
      %s372 = sphi 0, %s369
      %s373 = sphi 0, %s372
      %s389 = sphi 0, %s373
    $region4: #{_lambda_.9} parent=1 // loop_header_branch
      %26 = sbr.rel (%p24) target = $region8
    $region5: #{_lambda_.9} parent=1 // loop_body
      %s28 = ssub.s32 %s23, 1
      %s29 = ssub.s32 %s23, 2
      %s36 = sadd.s32 1, %s31
      %p37 = scmp.ge.s32.totalorder %s36, 1
      %s38 = scalar_select %p37, 0, %s36
      %s39 = sadd.s32 1, %s30
      %s40 = scalar_select %p37, %s39, %s30
      %p41 = scmp.ge.s32.totalorder %s40, 2
      %s42 = scalar_select %p41, 0, %s40
      %s43 = ssub.s32 %s30, %s42
      %s44 = ssub.s32 %s31, %s38
      %s45 = sor.u32 %s43, %s44
      %p46 = scmp.eq.s32.totalorder %s45, 0
      %s48 = sadd.s32 %s47, 1
      %s49 = scalar_select %p46, %s47, %s48
      %p52 = pneg %p46
      %p53 = scmp.eq.s32.totalorder %s23, 1
      %p54 = por %p52, %p53
      %p55 = scmp.ne.s32.totalorder %s47, %s50
      %p56 = scmp.eq.s32.totalorder %s23, 0
      %p57 = por %p55, %p56
      %p58 = scmp.ne.s32.totalorder %s47, %s50
      %p59 = scmp.eq.s32.totalorder %s28, 1
      %p60 = por %p58, %p59
      %p61 = scmp.ne.s32.totalorder %s50, %s51
      %p62 = scmp.eq.s32.totalorder %s28, 0
      %p63 = por %p61, %p62
      %p64 = scmp.ne.s32.totalorder %s50, %s51
      %p65 = scmp.eq.s32.totalorder %s29, 1
      %p66 = por %p64, %p65
      %p68 = scmp.ne.s32.totalorder %s51, %s67
      %p69 = scmp.eq.s32.totalorder %s29, 0
      %p70 = por %p68, %p69
      %s71 = ssub.s32 %s30, %s42
      %s72 = ssub.s32 %s31, %s38
      %s73 = sor.u32 %s71, %s72
      %p74 = scmp.eq.s32.totalorder %s73, 0
      %s76 = sadd.s32 %s75, 1
      %s77 = scalar_select %p74, %s75, %s76
      %p80 = pneg %p74
      %p81 = scmp.eq.s32.totalorder %s23, 1
      %p82 = por %p80, %p81
      %p83 = scmp.ne.s32.totalorder %s75, %s78
      %p84 = scmp.eq.s32.totalorder %s23, 0
      %p85 = por %p83, %p84
      %p86 = scmp.ne.s32.totalorder %s75, %s78
      %p87 = scmp.eq.s32.totalorder %s28, 1
      %p88 = por %p86, %p87
      %p89 = scmp.ne.s32.totalorder %s78, %s79
      %p90 = scmp.eq.s32.totalorder %s28, 0
      %p91 = por %p89, %p90
      %p92 = scmp.ne.s32.totalorder %s78, %s79
      %p93 = scmp.eq.s32.totalorder %s29, 1
      %p94 = por %p92, %p93
      %p96 = scmp.ne.s32.totalorder %s79, %s95
      %p97 = scmp.eq.s32.totalorder %s29, 0
      %p98 = por %p96, %p97
      %s99 = ssub.s32 %s30, %s42
      %s100 = ssub.s32 %s31, %s38
      %s101 = sor.u32 %s99, %s100
      %p102 = scmp.eq.s32.totalorder %s101, 0
      %s104 = sadd.s32 %s103, 1
      %s105 = scalar_select %p102, %s103, %s104
      %p108 = pneg %p102
      %p109 = scmp.eq.s32.totalorder %s23, 1
      %p110 = por %p108, %p109
      %p111 = scmp.ne.s32.totalorder %s103, %s106
      %p112 = scmp.eq.s32.totalorder %s23, 0
      %p113 = por %p111, %p112
      %p114 = scmp.ne.s32.totalorder %s103, %s106
      %p115 = scmp.eq.s32.totalorder %s28, 1
      %p116 = por %p114, %p115
      %p117 = scmp.ne.s32.totalorder %s106, %s107
      %p118 = scmp.eq.s32.totalorder %s28, 0
      %p119 = por %p117, %p118
      %p120 = scmp.ne.s32.totalorder %s106, %s107
      %p121 = scmp.eq.s32.totalorder %s29, 1
      %p122 = por %p120, %p121
      %p124 = scmp.ne.s32.totalorder %s107, %s123
      %p125 = scmp.eq.s32.totalorder %s29, 0
      %p126 = por %p124, %p125
      %s127 = ssub.s32 %s30, %s42
      %s128 = ssub.s32 %s31, %s38
      %s129 = sor.u32 %s127, %s128
      %p130 = scmp.eq.s32.totalorder %s129, 0
      %s132 = sadd.s32 %s131, 1
      %s133 = scalar_select %p130, %s131, %s132
      %p136 = pneg %p130
      %p137 = scmp.eq.s32.totalorder %s23, 1
      %p138 = por %p136, %p137
      %p139 = scmp.ne.s32.totalorder %s131, %s134
      %p140 = scmp.eq.s32.totalorder %s23, 0
      %p141 = por %p139, %p140
      %p142 = scmp.ne.s32.totalorder %s131, %s134
      %p143 = scmp.eq.s32.totalorder %s28, 1
      %p144 = por %p142, %p143
      %p145 = scmp.ne.s32.totalorder %s134, %s135
      %p146 = scmp.eq.s32.totalorder %s28, 0
      %p147 = por %p145, %p146
      %p148 = scmp.ne.s32.totalorder %s134, %s135
      %p149 = scmp.eq.s32.totalorder %s29, 1
      %p150 = por %p148, %p149
      %p152 = scmp.ne.s32.totalorder %s135, %s151
      %p153 = scmp.eq.s32.totalorder %s29, 0
      %p154 = por %p152, %p153
      %s156 = sadd.s32 %s155, 1
      %p159 = scmp.eq.s32.totalorder %s23, 1
      %p160 = scmp.ne.s32.totalorder %s155, %s157
      %p161 = scmp.eq.s32.totalorder %s23, 0
      %p162 = por %p160, %p161
      %p163 = scmp.ne.s32.totalorder %s155, %s157
      %p164 = scmp.eq.s32.totalorder %s28, 1
      %p165 = por %p163, %p164
      %p166 = scmp.ne.s32.totalorder %s157, %s158
      %p167 = scmp.eq.s32.totalorder %s28, 0
      %p168 = por %p166, %p167
      %p169 = scmp.ne.s32.totalorder %s157, %s158
      %p170 = scmp.eq.s32.totalorder %s29, 1
      %p171 = por %p169, %p170
      %p173 = scmp.ne.s32.totalorder %s158, %s172
      %p174 = scmp.eq.s32.totalorder %s29, 0
      %p175 = por %p173, %p174
      %s177 = sadd.s32 %s176, 1
      %p180 = scmp.eq.s32.totalorder %s23, 1
      %p181 = scmp.ne.s32.totalorder %s176, %s178
      %p182 = scmp.eq.s32.totalorder %s23, 0
      %p183 = por %p181, %p182
      %p184 = scmp.ne.s32.totalorder %s176, %s178
      %p185 = scmp.eq.s32.totalorder %s28, 1
      %p186 = por %p184, %p185
      %p187 = scmp.ne.s32.totalorder %s178, %s179
      %p188 = scmp.eq.s32.totalorder %s28, 0
      %p189 = por %p187, %p188
      %p190 = scmp.ne.s32.totalorder %s178, %s179
      %p191 = scmp.eq.s32.totalorder %s29, 1
      %p192 = por %p190, %p191
      %p194 = scmp.ne.s32.totalorder %s179, %s193
      %p195 = scmp.eq.s32.totalorder %s29, 0
      %p196 = por %p194, %p195
      %s198 = sadd.s32 %s197, 1
      %p201 = scmp.eq.s32.totalorder %s23, 1
      %p202 = scmp.ne.s32.totalorder %s197, %s199
      %p203 = scmp.eq.s32.totalorder %s23, 0
      %p204 = por %p202, %p203
      %p205 = scmp.ne.s32.totalorder %s197, %s199
      %p206 = scmp.eq.s32.totalorder %s28, 1
      %p207 = por %p205, %p206
      %p208 = scmp.ne.s32.totalorder %s199, %s200
      %p209 = scmp.eq.s32.totalorder %s28, 0
      %p210 = por %p208, %p209
      %p211 = scmp.ne.s32.totalorder %s199, %s200
      %p212 = scmp.eq.s32.totalorder %s29, 1
      %p213 = por %p211, %p212
      %p215 = scmp.ne.s32.totalorder %s200, %s214
      %p216 = scmp.eq.s32.totalorder %s29, 0
      %p217 = por %p215, %p216
      %s219 = sadd.s32 %s218, 1
      %p222 = scmp.eq.s32.totalorder %s23, 1
      %p223 = scmp.ne.s32.totalorder %s218, %s220
      %p224 = scmp.eq.s32.totalorder %s23, 0
      %p225 = por %p223, %p224
      %p226 = scmp.ne.s32.totalorder %s218, %s220
      %p227 = scmp.eq.s32.totalorder %s28, 1
      %p228 = por %p226, %p227
      %p229 = scmp.ne.s32.totalorder %s220, %s221
      %p230 = scmp.eq.s32.totalorder %s28, 0
      %p231 = por %p229, %p230
      %p232 = scmp.ne.s32.totalorder %s220, %s221
      %p233 = scmp.eq.s32.totalorder %s29, 1
      %p234 = por %p232, %p233
      %p236 = scmp.ne.s32.totalorder %s221, %s235
      %p237 = scmp.eq.s32.totalorder %s29, 0
      %p238 = por %p236, %p237
      %s240 = sadd.s32 %s239, 1
      %p243 = scmp.eq.s32.totalorder %s23, 1
      %p244 = scmp.ne.s32.totalorder %s239, %s241
      %p245 = scmp.eq.s32.totalorder %s23, 0
      %p246 = por %p244, %p245
      %p247 = scmp.ne.s32.totalorder %s239, %s241
      %p248 = scmp.eq.s32.totalorder %s28, 1
      %p249 = por %p247, %p248
      %p250 = scmp.ne.s32.totalorder %s241, %s242
      %p251 = scmp.eq.s32.totalorder %s28, 0
      %p252 = por %p250, %p251
      %p253 = scmp.ne.s32.totalorder %s241, %s242
      %p254 = scmp.eq.s32.totalorder %s29, 1
      %p255 = por %p253, %p254
      %p257 = scmp.ne.s32.totalorder %s242, %s256
      %p258 = scmp.eq.s32.totalorder %s29, 0
      %p259 = por %p257, %p258
      %s261 = sadd.s32 %s260, 1
      %p264 = scmp.eq.s32.totalorder %s23, 1
      %p265 = scmp.ne.s32.totalorder %s260, %s262
      %p266 = scmp.eq.s32.totalorder %s23, 0
      %p267 = por %p265, %p266
      %p268 = scmp.ne.s32.totalorder %s260, %s262
      %p269 = scmp.eq.s32.totalorder %s28, 1
      %p270 = por %p268, %p269
      %p271 = scmp.ne.s32.totalorder %s262, %s263
      %p272 = scmp.eq.s32.totalorder %s28, 0
      %p273 = por %p271, %p272
      %p274 = scmp.ne.s32.totalorder %s262, %s263
      %p275 = scmp.eq.s32.totalorder %s29, 1
      %p276 = por %p274, %p275
      %p278 = scmp.ne.s32.totalorder %s263, %s277
      %p279 = scmp.eq.s32.totalorder %s29, 0
      %p280 = por %p278, %p279
      %s282 = sadd.s32 %s281, 1
      %p285 = scmp.eq.s32.totalorder %s23, 1
      %p286 = scmp.ne.s32.totalorder %s281, %s283
      %p287 = scmp.eq.s32.totalorder %s23, 0
      %p288 = por %p286, %p287
      %p289 = scmp.ne.s32.totalorder %s281, %s283
      %p290 = scmp.eq.s32.totalorder %s28, 1
      %p291 = por %p289, %p290
      %p292 = scmp.ne.s32.totalorder %s283, %s284
      %p293 = scmp.eq.s32.totalorder %s28, 0
      %p294 = por %p292, %p293
      %p295 = scmp.ne.s32.totalorder %s283, %s284
      %p296 = scmp.eq.s32.totalorder %s29, 1
      %p297 = por %p295, %p296
      %p299 = scmp.ne.s32.totalorder %s284, %s298
      %p300 = scmp.eq.s32.totalorder %s29, 0
      %p301 = por %p299, %p300
      %s303 = sadd.s32 %s302, 1
      %p306 = scmp.eq.s32.totalorder %s23, 1
      %p307 = scmp.ne.s32.totalorder %s302, %s304
      %p308 = scmp.eq.s32.totalorder %s23, 0
      %p309 = por %p307, %p308
      %p310 = scmp.ne.s32.totalorder %s302, %s304
      %p311 = scmp.eq.s32.totalorder %s28, 1
      %p312 = por %p310, %p311
      %p313 = scmp.ne.s32.totalorder %s304, %s305
      %p314 = scmp.eq.s32.totalorder %s28, 0
      %p315 = por %p313, %p314
      %p316 = scmp.ne.s32.totalorder %s304, %s305
      %p317 = scmp.eq.s32.totalorder %s29, 1
      %p318 = por %p316, %p317
      %p320 = scmp.ne.s32.totalorder %s305, %s319
      %p321 = scmp.eq.s32.totalorder %s29, 0
      %p322 = por %p320, %p321
      %s324 = sadd.s32 %s323, 1
      %p327 = scmp.eq.s32.totalorder %s23, 1
      %p328 = scmp.ne.s32.totalorder %s323, %s325
      %p329 = scmp.eq.s32.totalorder %s23, 0
      %p330 = por %p328, %p329
      %p331 = scmp.ne.s32.totalorder %s323, %s325
      %p332 = scmp.eq.s32.totalorder %s28, 1
      %p333 = por %p331, %p332
      %p334 = scmp.ne.s32.totalorder %s325, %s326
      %p335 = scmp.eq.s32.totalorder %s28, 0
      %p336 = por %p334, %p335
      %p337 = scmp.ne.s32.totalorder %s325, %s326
      %p338 = scmp.eq.s32.totalorder %s29, 1
      %p339 = por %p337, %p338
      %p341 = scmp.ne.s32.totalorder %s326, %s340
      %p342 = scmp.eq.s32.totalorder %s29, 0
      %p343 = por %p341, %p342
      %s345 = sadd.s32 %s344, 1
      %p348 = scmp.eq.s32.totalorder %s23, 1
      %p349 = scmp.ne.s32.totalorder %s344, %s346
      %p350 = scmp.eq.s32.totalorder %s23, 0
      %p351 = por %p349, %p350
      %p352 = scmp.ne.s32.totalorder %s344, %s346
      %p353 = scmp.eq.s32.totalorder %s28, 1
      %p354 = por %p352, %p353
      %p355 = scmp.ne.s32.totalorder %s346, %s347
      %p356 = scmp.eq.s32.totalorder %s28, 0
      %p357 = por %p355, %p356
      %p358 = scmp.ne.s32.totalorder %s346, %s347
      %p359 = scmp.eq.s32.totalorder %s29, 1
      %p360 = por %p358, %p359
      %p362 = scmp.ne.s32.totalorder %s347, %s361
      %p363 = scmp.eq.s32.totalorder %s29, 0
      %p364 = por %p362, %p363
      %s365 = ssub.s32 %s30, %s42
      %s366 = ssub.s32 %s31, %s38
      %s367 = sor.u32 %s365, %s366
      %p368 = scmp.eq.s32.totalorder %s367, 0
      %s370 = sadd.s32 %s369, 1
      %s371 = scalar_select %p368, %s369, %s370
      %p374 = pneg %p368
      %p375 = scmp.eq.s32.totalorder %s23, 1
      %p376 = por %p374, %p375
      %p377 = scmp.ne.s32.totalorder %s369, %s372
      %p378 = scmp.eq.s32.totalorder %s23, 0
      %p379 = por %p377, %p378
      %p380 = scmp.ne.s32.totalorder %s369, %s372
      %p381 = scmp.eq.s32.totalorder %s28, 1
      %p382 = por %p380, %p381
      %p383 = scmp.ne.s32.totalorder %s372, %s373
      %p384 = scmp.eq.s32.totalorder %s28, 0
      %p385 = por %p383, %p384
      %p386 = scmp.ne.s32.totalorder %s372, %s373
      %p387 = scmp.eq.s32.totalorder %s29, 1
      %p388 = por %p386, %p387
      %p390 = scmp.ne.s32.totalorder %s373, %s389
      %p391 = scmp.eq.s32.totalorder %s29, 0
      %p392 = por %p390, %p391
      %p393 = scmp.le.s32.totalorder 1, %s23
      %p394 = scmp.lt.s32.totalorder %s23, 3
      %p395 = pnand %p393, %p394
      %p396 = pneg %p395
      // Predicated region
      $region9: #{_lambda_.9} parent=5 // pred_check
        _
      $region10: #{_lambda_.9} parent=5 // pred_check_branch
        %398 = sbr.rel (%p395) target = $region12
      $region11: #{_lambda_.9} parent=5 // pred_region
        %s399 = ssub.s32 %s23, 1
        // Predicated region
        $region13: #{_lambda_.9} parent=11 // pred_check
          %p400 = pneg %p168
        $region14: #{_lambda_.9} parent=11 // pred_check_branch
          %402 = sbr.rel (%p400) target = $region16
        $region15: #{_lambda_.9} parent=11 // pred_region
          _
        $region16: #{_lambda_.9} parent=11 // pred_fallthru
          _
        // Predicated region
        $region17: #{_lambda_.9} parent=11 // pred_check
          %p403 = pneg %p189
        $region18: #{_lambda_.9} parent=11 // pred_check_branch
          %405 = sbr.rel (%p403) target = $region20
        $region19: #{_lambda_.9} parent=11 // pred_region
          _
        $region20: #{_lambda_.9} parent=11 // pred_fallthru
          _
        // Predicated region
        $region21: #{_lambda_.9} parent=11 // pred_check
          %p406 = pneg %p210
        $region22: #{_lambda_.9} parent=11 // pred_check_branch
          %408 = sbr.rel (%p406) target = $region24
        $region23: #{_lambda_.9} parent=11 // pred_region
          _
        $region24: #{_lambda_.9} parent=11 // pred_fallthru
          _
        // Predicated region
        $region25: #{_lambda_.9} parent=11 // pred_check
          %p409 = pneg %p231
        $region26: #{_lambda_.9} parent=11 // pred_check_branch
          %411 = sbr.rel (%p409) target = $region28
        $region27: #{_lambda_.9} parent=11 // pred_region
          _
        $region28: #{_lambda_.9} parent=11 // pred_fallthru
          _
        // Predicated region
        $region29: #{_lambda_.9} parent=11 // pred_check
          %p412 = pneg %p252
        $region30: #{_lambda_.9} parent=11 // pred_check_branch
          %414 = sbr.rel (%p412) target = $region32
        $region31: #{_lambda_.9} parent=11 // pred_region
          _
        $region32: #{_lambda_.9} parent=11 // pred_fallthru
          _
        // Predicated region
        $region33: #{_lambda_.9} parent=11 // pred_check
          %p415 = pneg %p273
        $region34: #{_lambda_.9} parent=11 // pred_check_branch
          %417 = sbr.rel (%p415) target = $region36
        $region35: #{_lambda_.9} parent=11 // pred_region
          _
        $region36: #{_lambda_.9} parent=11 // pred_fallthru
          _
        // Predicated region
        $region37: #{_lambda_.9} parent=11 // pred_check
          %p418 = pneg %p294
        $region38: #{_lambda_.9} parent=11 // pred_check_branch
          %420 = sbr.rel (%p418) target = $region40
        $region39: #{_lambda_.9} parent=11 // pred_region
          _
        $region40: #{_lambda_.9} parent=11 // pred_fallthru
          _
        // Predicated region
        $region41: #{_lambda_.9} parent=11 // pred_check
          %p421 = pneg %p315
        $region42: #{_lambda_.9} parent=11 // pred_check_branch
          %423 = sbr.rel (%p421) target = $region44
        $region43: #{_lambda_.9} parent=11 // pred_region
          _
        $region44: #{_lambda_.9} parent=11 // pred_fallthru
          _
        // Predicated region
        $region45: #{_lambda_.9} parent=11 // pred_check
          %p424 = pneg %p336
        $region46: #{_lambda_.9} parent=11 // pred_check_branch
          %426 = sbr.rel (%p424) target = $region48
        $region47: #{_lambda_.9} parent=11 // pred_region
          _
        $region48: #{_lambda_.9} parent=11 // pred_fallthru
          _
        // Predicated region
        $region49: #{_lambda_.9} parent=11 // pred_check
          %p427 = pneg %p357
        $region50: #{_lambda_.9} parent=11 // pred_check_branch
          %429 = sbr.rel (%p427) target = $region52
        $region51: #{_lambda_.9} parent=11 // pred_region
          _
        $region52: #{_lambda_.9} parent=11 // pred_fallthru
          _
      $region12: #{_lambda_.9} parent=5 // pred_fallthru
        _
      %p430 = scmp.lt.s32.totalorder %s23, 2
      // Predicated region
      $region53: #{_lambda_.9} parent=5 // pred_check
        %p431 = pneg %p430
      $region54: #{_lambda_.9} parent=5 // pred_check_branch
        %433 = sbr.rel (%p431) target = $region56
      $region55: #{_lambda_.9} parent=5 // pred_region
        // Predicated region
        $region57: #{_lambda_.9} parent=55 // pred_check
          %p434 = pneg %p57
        $region58: #{_lambda_.9} parent=55 // pred_check_branch
          %436 = sbr.rel (%p434) target = $region60
        $region59: #{_lambda_.9} parent=55 // pred_region
          %s437 = smul.u32 4, %s31
          %p438 = scmp.lt.s32.totalorder %s30, 1
          %s439 = scalar_select %p438, %s30, 1
          %p440 = scmp.lt.s32.totalorder %s437, 3
          %s441 = scalar_select %p440, %s437, 3
          %s442 = smul.addr %s439, 4
          %s443 = sadd.s32 %s441, %s442
          %s444 = smul.addr %s443, 8
          %s445 = scalar_lea.vmem %s0, %s444
          %s446 = smul.u32 4, %s31
        $region60: #{_lambda_.9} parent=55 // pred_fallthru
          _
        // Predicated region
        $region61: #{_lambda_.9} parent=55 // pred_check
          %p447 = pneg %p85
        $region62: #{_lambda_.9} parent=55 // pred_check_branch
          %449 = sbr.rel (%p447) target = $region64
        $region63: #{_lambda_.9} parent=55 // pred_region
          %s450 = smul.u32 4, %s31
          %p451 = scmp.lt.s32.totalorder %s30, 1
          %s452 = scalar_select %p451, %s30, 1
          %p453 = scmp.lt.s32.totalorder %s450, 3
          %s454 = scalar_select %p453, %s450, 3
          %s455 = smul.addr %s452, 4
          %s456 = sadd.s32 %s454, %s455
          %s457 = smul.addr %s456, 8
          %s458 = scalar_lea.vmem %s1, %s457
          %s459 = smul.u32 4, %s31
        $region64: #{_lambda_.9} parent=55 // pred_fallthru
          _
        // Predicated region
        $region65: #{_lambda_.9} parent=55 // pred_check
          %p460 = pneg %p113
        $region66: #{_lambda_.9} parent=55 // pred_check_branch
          %462 = sbr.rel (%p460) target = $region68
        $region67: #{_lambda_.9} parent=55 // pred_region
          %s463 = smul.u32 4, %s31
          %p464 = scmp.lt.s32.totalorder %s30, 1
          %s465 = scalar_select %p464, %s30, 1
          %p466 = scmp.lt.s32.totalorder %s463, 3
          %s467 = scalar_select %p466, %s463, 3
          %s468 = smul.addr %s465, 4
          %s469 = sadd.s32 %s467, %s468
          %s470 = smul.addr %s469, 8
          %s471 = scalar_lea.vmem %s2, %s470
          %s472 = smul.u32 4, %s31
        $region68: #{_lambda_.9} parent=55 // pred_fallthru
          _
        // Predicated region
        $region69: #{_lambda_.9} parent=55 // pred_check
          %p473 = pneg %p141
        $region70: #{_lambda_.9} parent=55 // pred_check_branch
          %475 = sbr.rel (%p473) target = $region72
        $region71: #{_lambda_.9} parent=55 // pred_region
          %s476 = smul.u32 4, %s31
          %p477 = scmp.lt.s32.totalorder %s30, 1
          %s478 = scalar_select %p477, %s30, 1
          %p479 = scmp.lt.s32.totalorder %s476, 3
          %s480 = scalar_select %p479, %s476, 3
          %s481 = smul.addr %s480, 2
          %s482 = smul.addr %s478, 8
          %s483 = sadd.s32 %s481, %s482
          %s484 = smul.addr %s483, 8
          %s485 = scalar_lea.vmem %s3, %s484
          %s486 = smul.u32 4, %s31
        $region72: #{_lambda_.9} parent=55 // pred_fallthru
          _
      $region56: #{_lambda_.9} parent=5 // pred_fallthru
        _
      %p487 = scmp.le.s32.totalorder 1, %s23
      %p488 = scmp.lt.s32.totalorder %s23, 3
      %p489 = pnand %p487, %p488
      %p490 = pneg %p489
      // Predicated region
      $region73: #{_lambda_.9} parent=5 // pred_check
        _
      $region74: #{_lambda_.9} parent=5 // pred_check_branch
        %492 = sbr.rel (%p489) target = $region76
      $region75: #{_lambda_.9} parent=5 // pred_region
        %s493 = ssub.s32 %s23, 1
        %s494 = smul.u32 4, %s33
        %p495 = scmp.lt.s32.totalorder %s32, 1
        %s496 = scalar_select %p495, %s32, 1
        %p497 = scmp.lt.s32.totalorder %s494, 3
        %s498 = scalar_select %p497, %s494, 3
        %s499 = smul.addr %s496, 4
        %s500 = sadd.s32 %s498, %s499
        %s501 = smul.addr %s500, 8
        %s502 = scalar_lea.vmem %s0, %s501
        %p503 = pneg %p63
        %p504 = pneg %p60
        %s505 = smul.u32 4, %s33
        %p506 = scmp.lt.s32.totalorder %s32, 1
        %s507 = scalar_select %p506, %s32, 1
        %p508 = scmp.lt.s32.totalorder %s505, 3
        %s509 = scalar_select %p508, %s505, 3
        %s510 = smul.addr %s507, 4
        %s511 = sadd.s32 %s509, %s510
        %s512 = smul.addr %s511, 8
        %s513 = scalar_lea.vmem %s1, %s512
        %p514 = pneg %p91
        %p515 = pneg %p88
        %s516 = smul.u32 4, %s33
        %p517 = scmp.lt.s32.totalorder %s32, 1
        %s518 = scalar_select %p517, %s32, 1
        %p519 = scmp.lt.s32.totalorder %s516, 3
        %s520 = scalar_select %p519, %s516, 3
        %s521 = smul.addr %s518, 4
        %s522 = sadd.s32 %s520, %s521
        %s523 = smul.addr %s522, 8
        %s524 = scalar_lea.vmem %s2, %s523
        %p525 = pneg %p119
        %p526 = pneg %p116
        %s527 = smul.u32 4, %s33
        %p528 = scmp.lt.s32.totalorder %s32, 1
        %s529 = scalar_select %p528, %s32, 1
        %p530 = scmp.lt.s32.totalorder %s527, 3
        %s531 = scalar_select %p530, %s527, 3
        %s532 = smul.addr %s531, 2
        %s533 = smul.addr %s529, 8
        %s534 = sadd.s32 %s532, %s533
        %s535 = smul.addr %s534, 8
        %s536 = scalar_lea.vmem %s3, %s535
        %p537 = pneg %p147
        %p538 = pneg %p144
        %p539 = pneg %p168
        %p540 = pneg %p165
        %p541 = pneg %p189
        %p542 = pneg %p186
        %p543 = pneg %p210
        %p544 = pneg %p207
        %p545 = pneg %p231
        %p546 = pneg %p228
        %p547 = pneg %p252
        %p548 = pneg %p249
        %p549 = pneg %p273
        %p550 = pneg %p270
        %p551 = pneg %p294
        %p552 = pneg %p291
        %p553 = pneg %p315
        %p554 = pneg %p312
        %p555 = pneg %p336
        %p556 = pneg %p333
        %p557 = pneg %p357
        %p558 = pneg %p354
        %p559 = pneg %p385
        %p560 = pneg %p382
        %s561 = sand.u32 %s372, 1
        %s562 = scalar_lea.sflag [#allocation3], %s561
        %s563 = sand.u32 %s372, 1
        %s564 = scalar_lea.vmem [#allocation2], %s563
        %s565 = smul.u32 4, %s33
        %p566 = scmp.lt.s32.totalorder %s32, 1
        %s567 = scalar_select %p566, %s32, 1
        %p568 = scmp.lt.s32.totalorder %s565, 3
        %s569 = scalar_select %p568, %s565, 3
        %s570 = smul.addr %s567, 4
        %s571 = sadd.s32 %s569, %s570
        %s572 = smul.addr %s571, 8
        %s573 = scalar_lea.vmem %s0, %s572
        %s574 = smul.u32 4, %s33
        %s575 = smul.u32 4, %s33
        %p576 = scmp.lt.s32.totalorder %s32, 1
        %s577 = scalar_select %p576, %s32, 1
        %p578 = scmp.lt.s32.totalorder %s575, 3
        %s579 = scalar_select %p578, %s575, 3
        %s580 = smul.addr %s577, 4
        %s581 = sadd.s32 %s579, %s580
        %s582 = smul.addr %s581, 8
        %s583 = scalar_lea.vmem %s1, %s582
        %s584 = smul.u32 4, %s33
        %s585 = smul.u32 4, %s33
        %p586 = scmp.lt.s32.totalorder %s32, 1
        %s587 = scalar_select %p586, %s32, 1
        %p588 = scmp.lt.s32.totalorder %s585, 3
        %s589 = scalar_select %p588, %s585, 3
        %s590 = smul.addr %s587, 4
        %s591 = sadd.s32 %s589, %s590
        %s592 = smul.addr %s591, 8
        %s593 = scalar_lea.vmem %s2, %s592
        %s594 = smul.u32 4, %s33
        %s595 = smul.u32 4, %s33
        %p596 = scmp.lt.s32.totalorder %s32, 1
        %s597 = scalar_select %p596, %s32, 1
        %p598 = scmp.lt.s32.totalorder %s595, 3
        %s599 = scalar_select %p598, %s595, 3
        %s600 = smul.addr %s599, 2
        %s601 = smul.addr %s597, 8
        %s602 = sadd.s32 %s600, %s601
        %s603 = smul.addr %s602, 8
        %s604 = scalar_lea.vmem %s3, %s603
        %s605 = smul.u32 4, %s33
        %v606 = vld [vmem:[%s573] sm:$0xff]
        %v607 = vld [vmem:[%s573 + $0x8] sm:$0xff]
        %v608 = vld [vmem:[%s573 + $0x10] sm:$0xff]
        %v609 = vld [vmem:[%s573 + $0x18] sm:$0xff]
        %v610 = vld [vmem:[%s4] sm:$0xff]
        %v611 = vld [vmem:[%s4 + $0x8] sm:$0xff]
        %v612 = vld [vmem:[%s4 + $0x10] sm:$0xff]
        %v613 = vld [vmem:[%s4 + $0x18] sm:$0xff]
        %v614 = vld [vmem:[%s4 + $0x20] sm:$0xff]
        %v615 = vld [vmem:[%s4 + $0x28] sm:$0xff]
        %v616 = vld [vmem:[%s4 + $0x30] sm:$0xff]
        %v617 = vld [vmem:[%s4 + $0x38] sm:$0xff]
        %v618 = vld [vmem:[%s4 + $0x40] sm:$0xff]
        %v619 = vld [vmem:[%s4 + $0x48] sm:$0xff]
        %v620 = vld [vmem:[%s4 + $0x50] sm:$0xff]
        %v621 = vld [vmem:[%s4 + $0x58] sm:$0xff]
        %v622 = vld [vmem:[%s4 + $0x60] sm:$0xff]
        %v623 = vld [vmem:[%s4 + $0x68] sm:$0xff]
        %v624 = vld [vmem:[%s4 + $0x70] sm:$0xff]
        %v625 = vld [vmem:[%s4 + $0x78] sm:$0xff]
        %v626 = vld [vmem:[%s583] sm:$0xff]
        %v627 = vld [vmem:[%s583 + $0x8] sm:$0xff]
        %v628 = vld [vmem:[%s583 + $0x10] sm:$0xff]
        %v629 = vld [vmem:[%s583 + $0x18] sm:$0xff]
        %v630 = vld [vmem:[%s5] sm:$0xff]
        %v631 = vld [vmem:[%s5 + $0x8] sm:$0xff]
        %v632 = vld [vmem:[%s5 + $0x10] sm:$0xff]
        %v633 = vld [vmem:[%s5 + $0x18] sm:$0xff]
        %v634 = vld [vmem:[%s5 + $0x20] sm:$0xff]
        %v635 = vld [vmem:[%s5 + $0x28] sm:$0xff]
        %v636 = vld [vmem:[%s5 + $0x30] sm:$0xff]
        %v637 = vld [vmem:[%s5 + $0x38] sm:$0xff]
        %v638 = vld [vmem:[%s5 + $0x40] sm:$0xff]
        %v639 = vld [vmem:[%s5 + $0x48] sm:$0xff]
        %v640 = vld [vmem:[%s5 + $0x50] sm:$0xff]
        %v641 = vld [vmem:[%s5 + $0x58] sm:$0xff]
        %v642 = vld [vmem:[%s5 + $0x60] sm:$0xff]
        %v643 = vld [vmem:[%s5 + $0x68] sm:$0xff]
        %v644 = vld [vmem:[%s5 + $0x70] sm:$0xff]
        %v645 = vld [vmem:[%s5 + $0x78] sm:$0xff]
        %vm646 = vcmask 523264
        %v648 = vsel %vm646, %v626, 0
        %v651 = vsel %vm646, %v627, 0
        %v654 = vsel %vm646, %v628, 0
        %v657 = vsel %vm646, %v629, 0
        %659 = vmatprep.subr.mxu0 %v631
        %660 = vmatpush1.msra.mxu0 %v630
        %661 = vmatprep.subr.mxu0 %v633
        %662 = vmatpush1.msra.mxu0 %v632
        %663 = vmatprep.subr.mxu0 %v635
        %664 = vmatpush1.msra.mxu0 %v634
        %665 = vmatprep.subr.mxu0 %v637
        %666 = vmatpush1.msra.mxu0 %v636
        %667 = vmatprep.subr.mxu0 %v639
        %668 = vmatpush1.msra.mxu0 %v638
        %669 = vmatprep.subr.mxu0 %v641
        %670 = vmatpush1.msra.mxu0 %v640
        %671 = vmatprep.subr.mxu0 %v643
        %672 = vmatpush1.msra.mxu0 %v642
        %673 = vmatprep.subr.mxu0 %v645
        %674 = vmatpush1.msra.mxu0 %v644
        %675 = vmatprep.subr.mxu0 0.0
        %676 = vmatpush1.msra.mxu0 0.0
        %677 = vmatprep.subr.mxu0 0.0
        %678 = vmatpush1.msra.mxu0 0.0
        %679 = vmatprep.subr.mxu0 0.0
        %680 = vmatpush1.msra.mxu0 0.0
        %681 = vmatprep.subr.mxu0 0.0
        %682 = vmatpush1.msra.mxu0 0.0
        %683 = vmatprep.subr.mxu0 0.0
        %684 = vmatpush1.msra.mxu0 0.0
        %685 = vmatprep.subr.mxu0 0.0
        %686 = vmatpush1.msra.mxu0 0.0
        %687 = vmatprep.subr.mxu0 0.0
        %688 = vmatpush1.msra.mxu0 0.0
        %689 = vmatprep.subr.mxu0 0.0
        %690 = vmatpush1.msra.mxu0 0.0
        %691 = vmatprep.subr.mxu0 0.0
        %692 = vmatpush1.msra.mxu0 0.0
        %693 = vmatprep.subr.mxu0 0.0
        %694 = vmatpush1.msra.mxu0 0.0
        %695 = vmatprep.subr.mxu0 0.0
        %696 = vmatpush1.msra.mxu0 0.0
        %697 = vmatprep.subr.mxu0 0.0
        %698 = vmatpush1.msra.mxu0 0.0
        %699 = vmatprep.subr.mxu0 0.0
        %700 = vmatpush1.msra.mxu0 0.0
        %701 = vmatprep.subr.mxu0 0.0
        %702 = vmatpush1.msra.mxu0 0.0
        %703 = vmatprep.subr.mxu0 0.0
        %704 = vmatpush1.msra.mxu0 0.0
        %705 = vmatprep.subr.mxu0 0.0
        %706 = vmatpush1.msra.mxu0 0.0
        %707 = vmatprep.subr.mxu0 0.0
        %708 = vmatpush1.msra.mxu0 0.0
        %709 = vmatprep.subr.mxu0 0.0
        %710 = vmatpush1.msra.mxu0 0.0
        %711 = vmatprep.subr.mxu0 0.0
        %712 = vmatpush1.msra.mxu0 0.0
        %713 = vmatprep.subr.mxu0 0.0
        %714 = vmatpush1.msra.mxu0 0.0
        %715 = vmatprep.subr.mxu0 0.0
        %716 = vmatpush1.msra.mxu0 0.0
        %717 = vmatprep.subr.mxu0 0.0
        %718 = vmatpush1.msra.mxu0 0.0
        %719 = vmatprep.subr.mxu0 0.0
        %720 = vmatpush1.msra.mxu0 0.0
        %721 = vmatprep.subr.mxu0 0.0
        %722 = vmatpush1.msra.mxu0 0.0
        %723 = vmatprep.mubr.f32.mxu0 0.0
        %724 = vmatmul.mubr.f32.gmra.mrb[0].mxu0 %v648
        %v725 = vpop.f32.mrb[0].mxu0
        %v726 = vadd.f32 0.0, %v725
        %v727 = vpop.f32.mrb[0].mxu0
        %v728 = vadd.f32 0.0, %v727
        %729 = vmatprep.mubr.f32.mxu0 0.0
        %730 = vmatmul.mubr.f32.gmra.mrb[0].mxu0 %v651
        %v731 = vpop.f32.mrb[0].mxu0
        %v732 = vadd.f32 0.0, %v731
        %v733 = vpop.f32.mrb[0].mxu0
        %v734 = vadd.f32 0.0, %v733
        %735 = vmatprep.mubr.f32.mxu0 0.0
        %736 = vmatmul.mubr.f32.gmra.mrb[0].mxu0 %v654
        %v737 = vpop.f32.mrb[0].mxu0
        %v738 = vadd.f32 0.0, %v737
        %v739 = vpop.f32.mrb[0].mxu0
        %v740 = vadd.f32 0.0, %v739
        %741 = vmatprep.mubr.f32.mxu0 0.0
        %742 = vmatmul.mubr.f32.gmra.mrb[0].mxu0 %v657
        %v743 = vpop.f32.mrb[0].mxu0
        %v744 = vadd.f32 0.0, %v743
        %v745 = vpop.f32.mrb[0].mxu0
        %v746 = vadd.f32 0.0, %v745
        %747 = vdwg.mxu0
        %v749 = vsel %vm646, %v606, 0
        %v752 = vsel %vm646, %v607, 0
        %v755 = vsel %vm646, %v608, 0
        %v758 = vsel %vm646, %v609, 0
        %760 = vmatprep.subr.mxu0 %v611
        %761 = vmatpush1.msra.mxu0 %v610
        %762 = vmatprep.subr.mxu0 %v613
        %763 = vmatpush1.msra.mxu0 %v612
        %764 = vmatprep.subr.mxu0 %v615
        %765 = vmatpush1.msra.mxu0 %v614
        %766 = vmatprep.subr.mxu0 %v617
        %767 = vmatpush1.msra.mxu0 %v616
        %768 = vmatprep.subr.mxu0 %v619
        %769 = vmatpush1.msra.mxu0 %v618
        %770 = vmatprep.subr.mxu0 %v621
        %771 = vmatpush1.msra.mxu0 %v620
        %772 = vmatprep.subr.mxu0 %v623
        %773 = vmatpush1.msra.mxu0 %v622
        %774 = vmatprep.subr.mxu0 %v625
        %775 = vmatpush1.msra.mxu0 %v624
        %776 = vmatprep.subr.mxu0 0.0
        %777 = vmatpush1.msra.mxu0 0.0
        %778 = vmatprep.subr.mxu0 0.0
        %779 = vmatpush1.msra.mxu0 0.0
        %780 = vmatprep.subr.mxu0 0.0
        %781 = vmatpush1.msra.mxu0 0.0
        %782 = vmatprep.subr.mxu0 0.0
        %783 = vmatpush1.msra.mxu0 0.0
        %784 = vmatprep.subr.mxu0 0.0
        %785 = vmatpush1.msra.mxu0 0.0
        %786 = vmatprep.subr.mxu0 0.0
        %787 = vmatpush1.msra.mxu0 0.0
        %788 = vmatprep.subr.mxu0 0.0
        %789 = vmatpush1.msra.mxu0 0.0
        %790 = vmatprep.subr.mxu0 0.0
        %791 = vmatpush1.msra.mxu0 0.0
        %792 = vmatprep.subr.mxu0 0.0
        %793 = vmatpush1.msra.mxu0 0.0
        %794 = vmatprep.subr.mxu0 0.0
        %795 = vmatpush1.msra.mxu0 0.0
        %796 = vmatprep.subr.mxu0 0.0
        %797 = vmatpush1.msra.mxu0 0.0
        %798 = vmatprep.subr.mxu0 0.0
        %799 = vmatpush1.msra.mxu0 0.0
        %800 = vmatprep.subr.mxu0 0.0
        %801 = vmatpush1.msra.mxu0 0.0
        %802 = vmatprep.subr.mxu0 0.0
        %803 = vmatpush1.msra.mxu0 0.0
        %804 = vmatprep.subr.mxu0 0.0
        %805 = vmatpush1.msra.mxu0 0.0
        %806 = vmatprep.subr.mxu0 0.0
        %807 = vmatpush1.msra.mxu0 0.0
        %808 = vmatprep.subr.mxu0 0.0
        %809 = vmatpush1.msra.mxu0 0.0
        %810 = vmatprep.subr.mxu0 0.0
        %811 = vmatpush1.msra.mxu0 0.0
        %812 = vmatprep.subr.mxu0 0.0
        %813 = vmatpush1.msra.mxu0 0.0
        %814 = vmatprep.subr.mxu0 0.0
        %815 = vmatpush1.msra.mxu0 0.0
        %816 = vmatprep.subr.mxu0 0.0
        %817 = vmatpush1.msra.mxu0 0.0
        %818 = vmatprep.subr.mxu0 0.0
        %819 = vmatpush1.msra.mxu0 0.0
        %820 = vmatprep.subr.mxu0 0.0
        %821 = vmatpush1.msra.mxu0 0.0
        %822 = vmatprep.subr.mxu0 0.0
        %823 = vmatpush1.msra.mxu0 0.0
        %824 = vmatprep.mubr.f32.mxu0 0.0
        %825 = vmatmul.mubr.f32.gmra.mrb[0].mxu0 %v749
        %v826 = vpop.f32.mrb[0].mxu0
        %v827 = vadd.f32 %v726, %v826
        %v828 = vpop.f32.mrb[0].mxu0
        %v829 = vadd.f32 %v728, %v828
        %830 = vmatprep.mubr.f32.mxu0 0.0
        %831 = vmatmul.mubr.f32.gmra.mrb[0].mxu0 %v752
        %v832 = vpop.f32.mrb[0].mxu0
        %v833 = vadd.f32 %v732, %v832
        %v834 = vpop.f32.mrb[0].mxu0
        %v835 = vadd.f32 %v734, %v834
        %836 = vmatprep.mubr.f32.mxu0 0.0
        %837 = vmatmul.mubr.f32.gmra.mrb[0].mxu0 %v755
        %v838 = vpop.f32.mrb[0].mxu0
        %v839 = vadd.f32 %v738, %v838
        %v840 = vpop.f32.mrb[0].mxu0
        %v841 = vadd.f32 %v740, %v840
        %842 = vmatprep.mubr.f32.mxu0 0.0
        %843 = vmatmul.mubr.f32.gmra.mrb[0].mxu0 %v758
        %v844 = vpop.f32.mrb[0].mxu0
        %v845 = vadd.f32 %v744, %v844
        %v846 = vpop.f32.mrb[0].mxu0
        %v847 = vadd.f32 %v746, %v846
        %848 = vdwg.mxu0
        %v849 = vld [vmem:[%s593] sm:$0xff]
        %v850 = vld [vmem:[%s593 + $0x8] sm:$0xff]
        %v851 = vld [vmem:[%s593 + $0x10] sm:$0xff]
        %v852 = vld [vmem:[%s593 + $0x18] sm:$0xff]
        %v853 = vld [vmem:[%s6] sm:$0xff]
        %v854 = vld [vmem:[%s6 + $0x8] sm:$0xff]
        %v855 = vld [vmem:[%s6 + $0x10] sm:$0xff]
        %v856 = vld [vmem:[%s6 + $0x18] sm:$0xff]
        %v857 = vld [vmem:[%s6 + $0x20] sm:$0xff]
        %v858 = vld [vmem:[%s6 + $0x28] sm:$0xff]
        %v859 = vld [vmem:[%s6 + $0x30] sm:$0xff]
        %v860 = vld [vmem:[%s6 + $0x38] sm:$0xff]
        %v861 = vld [vmem:[%s6 + $0x40] sm:$0xff]
        %v862 = vld [vmem:[%s6 + $0x48] sm:$0xff]
        %v863 = vld [vmem:[%s6 + $0x50] sm:$0xff]
        %v864 = vld [vmem:[%s6 + $0x58] sm:$0xff]
        %v865 = vld [vmem:[%s6 + $0x60] sm:$0xff]
        %v866 = vld [vmem:[%s6 + $0x68] sm:$0xff]
        %v867 = vld [vmem:[%s6 + $0x70] sm:$0xff]
        %v868 = vld [vmem:[%s6 + $0x78] sm:$0xff]
        %v869 = vld [vmem:[%s6 + $0x80] sm:$0xff]
        %v870 = vld [vmem:[%s6 + $0x88] sm:$0xff]
        %v871 = vld [vmem:[%s6 + $0x90] sm:$0xff]
        %v872 = vld [vmem:[%s6 + $0x98] sm:$0xff]
        %v873 = vld [vmem:[%s6 + $0xa0] sm:$0xff]
        %v874 = vld [vmem:[%s6 + $0xa8] sm:$0xff]
        %v875 = vld [vmem:[%s6 + $0xb0] sm:$0xff]
        %v876 = vld [vmem:[%s6 + $0xb8] sm:$0xff]
        %v877 = vld [vmem:[%s6 + $0xc0] sm:$0xff]
        %v878 = vld [vmem:[%s6 + $0xc8] sm:$0xff]
        %v879 = vld [vmem:[%s6 + $0xd0] sm:$0xff]
        %v880 = vld [vmem:[%s6 + $0xd8] sm:$0xff]
        %v881 = vld [vmem:[%s6 + $0xe0] sm:$0xff]
        %v882 = vld [vmem:[%s6 + $0xe8] sm:$0xff]
        %v883 = vld [vmem:[%s6 + $0xf0] sm:$0xff]
        %v884 = vld [vmem:[%s6 + $0xf8] sm:$0xff]
        %885 = vmatprep.subr.mxu0 %v854
        %886 = vmatpush1.msra.mxu0 %v853
        %887 = vmatprep.subr.mxu0 %v856
        %888 = vmatpush1.msra.mxu0 %v855
        %889 = vmatprep.subr.mxu0 %v858
        %890 = vmatpush1.msra.mxu0 %v857
        %891 = vmatprep.subr.mxu0 %v860
        %892 = vmatpush1.msra.mxu0 %v859
        %893 = vmatprep.subr.mxu0 %v862
        %894 = vmatpush1.msra.mxu0 %v861
        %895 = vmatprep.subr.mxu0 %v864
        %896 = vmatpush1.msra.mxu0 %v863
        %897 = vmatprep.subr.mxu0 %v866
        %898 = vmatpush1.msra.mxu0 %v865
        %899 = vmatprep.subr.mxu0 %v868
        %900 = vmatpush1.msra.mxu0 %v867
        %901 = vmatprep.subr.mxu0 %v870
        %902 = vmatpush1.msra.mxu0 %v869
        %903 = vmatprep.subr.mxu0 %v872
        %904 = vmatpush1.msra.mxu0 %v871
        %905 = vmatprep.subr.mxu0 %v874
        %906 = vmatpush1.msra.mxu0 %v873
        %907 = vmatprep.subr.mxu0 %v876
        %908 = vmatpush1.msra.mxu0 %v875
        %909 = vmatprep.subr.mxu0 %v878
        %910 = vmatpush1.msra.mxu0 %v877
        %911 = vmatprep.subr.mxu0 %v880
        %912 = vmatpush1.msra.mxu0 %v879
        %913 = vmatprep.subr.mxu0 %v882
        %914 = vmatpush1.msra.mxu0 %v881
        %915 = vmatprep.subr.mxu0 %v884
        %916 = vmatpush1.msra.mxu0 %v883
        %917 = vmatprep.subr.mxu0 0.0
        %918 = vmatpush1.msra.mxu0 0.0
        %919 = vmatprep.subr.mxu0 0.0
        %920 = vmatpush1.msra.mxu0 0.0
        %921 = vmatprep.subr.mxu0 0.0
        %922 = vmatpush1.msra.mxu0 0.0
        %923 = vmatprep.subr.mxu0 0.0
        %924 = vmatpush1.msra.mxu0 0.0
        %925 = vmatprep.subr.mxu0 0.0
        %926 = vmatpush1.msra.mxu0 0.0
        %927 = vmatprep.subr.mxu0 0.0
        %928 = vmatpush1.msra.mxu0 0.0
        %929 = vmatprep.subr.mxu0 0.0
        %930 = vmatpush1.msra.mxu0 0.0
        %931 = vmatprep.subr.mxu0 0.0
        %932 = vmatpush1.msra.mxu0 0.0
        %933 = vmatprep.subr.mxu0 0.0
        %934 = vmatpush1.msra.mxu0 0.0
        %935 = vmatprep.subr.mxu0 0.0
        %936 = vmatpush1.msra.mxu0 0.0
        %937 = vmatprep.subr.mxu0 0.0
        %938 = vmatpush1.msra.mxu0 0.0
        %939 = vmatprep.subr.mxu0 0.0
        %940 = vmatpush1.msra.mxu0 0.0
        %941 = vmatprep.subr.mxu0 0.0
        %942 = vmatpush1.msra.mxu0 0.0
        %943 = vmatprep.subr.mxu0 0.0
        %944 = vmatpush1.msra.mxu0 0.0
        %945 = vmatprep.subr.mxu0 0.0
        %946 = vmatpush1.msra.mxu0 0.0
        %947 = vmatprep.subr.mxu0 0.0
        %948 = vmatpush1.msra.mxu0 0.0
        %949 = vmatprep.mubr.f32.mxu0 0.0
        %950 = vmatmul.mubr.f32.gmra.mrb[0].mxu0 %v849
        %v951 = vpop.f32.mrb[0].mxu0
        %v952 = vadd.f32 0.0, %v951
        %v953 = vpop.f32.mrb[0].mxu0
        %v954 = vadd.f32 0.0, %v953
        %955 = vmatprep.mubr.f32.mxu0 0.0
        %956 = vmatmul.mubr.f32.gmra.mrb[0].mxu0 %v850
        %v957 = vpop.f32.mrb[0].mxu0
        %v958 = vadd.f32 0.0, %v957
        %v959 = vpop.f32.mrb[0].mxu0
        %v960 = vadd.f32 0.0, %v959
        %961 = vmatprep.mubr.f32.mxu0 0.0
        %962 = vmatmul.mubr.f32.gmra.mrb[0].mxu0 %v851
        %v963 = vpop.f32.mrb[0].mxu0
        %v964 = vadd.f32 0.0, %v963
        %v965 = vpop.f32.mrb[0].mxu0
        %v966 = vadd.f32 0.0, %v965
        %967 = vmatprep.mubr.f32.mxu0 0.0
        %968 = vmatmul.mubr.f32.gmra.mrb[0].mxu0 %v852
        %v969 = vpop.f32.mrb[0].mxu0
        %v970 = vadd.f32 0.0, %v969
        %v971 = vpop.f32.mrb[0].mxu0
        %v972 = vadd.f32 0.0, %v971
        %973 = vdwg.mxu0
        %v974 = vadd.f32 %v827, %v952
        %v975 = vadd.f32 %v829, %v954
        %v976 = vadd.f32 %v833, %v958
        %v977 = vadd.f32 %v835, %v960
        %v978 = vadd.f32 %v839, %v964
        %v979 = vadd.f32 %v841, %v966
        %v980 = vadd.f32 %v845, %v970
        %v981 = vadd.f32 %v847, %v972
        %v982 = vld [vmem:[%s604] sm:$0xff]
        %v983 = vld [vmem:[%s604 + $0x8] sm:$0xff]
        %v984 = vld [vmem:[%s604 + $0x10] sm:$0xff]
        %v985 = vld [vmem:[%s604 + $0x18] sm:$0xff]
        %v986 = vld [vmem:[%s604 + $0x20] sm:$0xff]
        %v987 = vld [vmem:[%s604 + $0x28] sm:$0xff]
        %v988 = vld [vmem:[%s604 + $0x30] sm:$0xff]
        %v989 = vld [vmem:[%s604 + $0x38] sm:$0xff]
        %v990 = vld [vmem:[%s7] sm:$0xff]
        %v991 = vld [vmem:[%s7 + $0x8] sm:$0xff]
        %v992 = vld [vmem:[%s7 + $0x10] sm:$0xff]
        %v993 = vld [vmem:[%s7 + $0x18] sm:$0xff]
        %v994 = vld [vmem:[%s7 + $0x20] sm:$0xff]
        %v995 = vld [vmem:[%s7 + $0x28] sm:$0xff]
        %v996 = vld [vmem:[%s7 + $0x30] sm:$0xff]
        %v997 = vld [vmem:[%s7 + $0x38] sm:$0xff]
        %v998 = vld [vmem:[%s7 + $0x40] sm:$0xff]
        %v999 = vld [vmem:[%s7 + $0x48] sm:$0xff]
        %v1000 = vld [vmem:[%s7 + $0x50] sm:$0xff]
        %v1001 = vld [vmem:[%s7 + $0x58] sm:$0xff]
        %v1002 = vld [vmem:[%s7 + $0x60] sm:$0xff]
        %v1003 = vld [vmem:[%s7 + $0x68] sm:$0xff]
        %v1004 = vld [vmem:[%s7 + $0x70] sm:$0xff]
        %v1005 = vld [vmem:[%s7 + $0x78] sm:$0xff]
        %v1006 = vld [vmem:[%s7 + $0x80] sm:$0xff]
        %v1007 = vld [vmem:[%s7 + $0x88] sm:$0xff]
        %v1008 = vld [vmem:[%s7 + $0x90] sm:$0xff]
        %v1009 = vld [vmem:[%s7 + $0x98] sm:$0xff]
        %v1010 = vld [vmem:[%s7 + $0xa0] sm:$0xff]
        %v1011 = vld [vmem:[%s7 + $0xa8] sm:$0xff]
        %v1012 = vld [vmem:[%s7 + $0xb0] sm:$0xff]
        %v1013 = vld [vmem:[%s7 + $0xb8] sm:$0xff]
        %v1014 = vld [vmem:[%s7 + $0xc0] sm:$0xff]
        %v1015 = vld [vmem:[%s7 + $0xc8] sm:$0xff]
        %v1016 = vld [vmem:[%s7 + $0xd0] sm:$0xff]
        %v1017 = vld [vmem:[%s7 + $0xd8] sm:$0xff]
        %v1018 = vld [vmem:[%s7 + $0xe0] sm:$0xff]
        %v1019 = vld [vmem:[%s7 + $0xe8] sm:$0xff]
        %v1020 = vld [vmem:[%s7 + $0xf0] sm:$0xff]
        %v1021 = vld [vmem:[%s7 + $0xf8] sm:$0xff]
        %v1022 = vld [vmem:[%s7 + $0x100] sm:$0xff]
        %v1023 = vld [vmem:[%s7 + $0x108] sm:$0xff]
        %v1024 = vld [vmem:[%s7 + $0x110] sm:$0xff]
        %v1025 = vld [vmem:[%s7 + $0x118] sm:$0xff]
        %v1026 = vld [vmem:[%s7 + $0x120] sm:$0xff]
        %v1027 = vld [vmem:[%s7 + $0x128] sm:$0xff]
        %v1028 = vld [vmem:[%s7 + $0x130] sm:$0xff]
        %v1029 = vld [vmem:[%s7 + $0x138] sm:$0xff]
        %v1030 = vld [vmem:[%s7 + $0x140] sm:$0xff]
        %v1031 = vld [vmem:[%s7 + $0x148] sm:$0xff]
        %v1032 = vld [vmem:[%s7 + $0x150] sm:$0xff]
        %v1033 = vld [vmem:[%s7 + $0x158] sm:$0xff]
        %v1034 = vld [vmem:[%s7 + $0x160] sm:$0xff]
        %v1035 = vld [vmem:[%s7 + $0x168] sm:$0xff]
        %v1036 = vld [vmem:[%s7 + $0x170] sm:$0xff]
        %v1037 = vld [vmem:[%s7 + $0x178] sm:$0xff]
        %v1038 = vld [vmem:[%s7 + $0x180] sm:$0xff]
        %v1039 = vld [vmem:[%s7 + $0x188] sm:$0xff]
        %v1040 = vld [vmem:[%s7 + $0x190] sm:$0xff]
        %v1041 = vld [vmem:[%s7 + $0x198] sm:$0xff]
        %v1042 = vld [vmem:[%s7 + $0x1a0] sm:$0xff]
        %v1043 = vld [vmem:[%s7 + $0x1a8] sm:$0xff]
        %v1044 = vld [vmem:[%s7 + $0x1b0] sm:$0xff]
        %v1045 = vld [vmem:[%s7 + $0x1b8] sm:$0xff]
        %v1046 = vld [vmem:[%s7 + $0x1c0] sm:$0xff]
        %v1047 = vld [vmem:[%s7 + $0x1c8] sm:$0xff]
        %v1048 = vld [vmem:[%s7 + $0x1d0] sm:$0xff]
        %v1049 = vld [vmem:[%s7 + $0x1d8] sm:$0xff]
        %v1050 = vld [vmem:[%s7 + $0x1e0] sm:$0xff]
        %v1051 = vld [vmem:[%s7 + $0x1e8] sm:$0xff]
        %v1052 = vld [vmem:[%s7 + $0x1f0] sm:$0xff]
        %v1053 = vld [vmem:[%s7 + $0x1f8] sm:$0xff]
        %1054 = vmatprep.subr.mxu0 %v991
        %1055 = vmatpush1.msra.mxu0 %v990
        %1056 = vmatprep.subr.mxu0 %v993
        %1057 = vmatpush1.msra.mxu0 %v992
        %1058 = vmatprep.subr.mxu0 %v995
        %1059 = vmatpush1.msra.mxu0 %v994
        %1060 = vmatprep.subr.mxu0 %v997
        %1061 = vmatpush1.msra.mxu0 %v996
        %1062 = vmatprep.subr.mxu0 %v999
        %1063 = vmatpush1.msra.mxu0 %v998
        %1064 = vmatprep.subr.mxu0 %v1001
        %1065 = vmatpush1.msra.mxu0 %v1000
        %1066 = vmatprep.subr.mxu0 %v1003
        %1067 = vmatpush1.msra.mxu0 %v1002
        %1068 = vmatprep.subr.mxu0 %v1005
        %1069 = vmatpush1.msra.mxu0 %v1004
        %1070 = vmatprep.subr.mxu0 %v1007
        %1071 = vmatpush1.msra.mxu0 %v1006
        %1072 = vmatprep.subr.mxu0 %v1009
        %1073 = vmatpush1.msra.mxu0 %v1008
        %1074 = vmatprep.subr.mxu0 %v1011
        %1075 = vmatpush1.msra.mxu0 %v1010
        %1076 = vmatprep.subr.mxu0 %v1013
        %1077 = vmatpush1.msra.mxu0 %v1012
        %1078 = vmatprep.subr.mxu0 %v1015
        %1079 = vmatpush1.msra.mxu0 %v1014
        %1080 = vmatprep.subr.mxu0 %v1017
        %1081 = vmatpush1.msra.mxu0 %v1016
        %1082 = vmatprep.subr.mxu0 %v1019
        %1083 = vmatpush1.msra.mxu0 %v1018
        %1084 = vmatprep.subr.mxu0 %v1021
        %1085 = vmatpush1.msra.mxu0 %v1020
        %1086 = vmatprep.subr.mxu0 %v1023
        %1087 = vmatpush1.msra.mxu0 %v1022
        %1088 = vmatprep.subr.mxu0 %v1025
        %1089 = vmatpush1.msra.mxu0 %v1024
        %1090 = vmatprep.subr.mxu0 %v1027
        %1091 = vmatpush1.msra.mxu0 %v1026
        %1092 = vmatprep.subr.mxu0 %v1029
        %1093 = vmatpush1.msra.mxu0 %v1028
        %1094 = vmatprep.subr.mxu0 %v1031
        %1095 = vmatpush1.msra.mxu0 %v1030
        %1096 = vmatprep.subr.mxu0 %v1033
        %1097 = vmatpush1.msra.mxu0 %v1032
        %1098 = vmatprep.subr.mxu0 %v1035
        %1099 = vmatpush1.msra.mxu0 %v1034
        %1100 = vmatprep.subr.mxu0 %v1037
        %1101 = vmatpush1.msra.mxu0 %v1036
        %1102 = vmatprep.subr.mxu0 %v1039
        %1103 = vmatpush1.msra.mxu0 %v1038
        %1104 = vmatprep.subr.mxu0 %v1041
        %1105 = vmatpush1.msra.mxu0 %v1040
        %1106 = vmatprep.subr.mxu0 %v1043
        %1107 = vmatpush1.msra.mxu0 %v1042
        %1108 = vmatprep.subr.mxu0 %v1045
        %1109 = vmatpush1.msra.mxu0 %v1044
        %1110 = vmatprep.subr.mxu0 %v1047
        %1111 = vmatpush1.msra.mxu0 %v1046
        %1112 = vmatprep.subr.mxu0 %v1049
        %1113 = vmatpush1.msra.mxu0 %v1048
        %1114 = vmatprep.subr.mxu0 %v1051
        %1115 = vmatpush1.msra.mxu0 %v1050
        %1116 = vmatprep.subr.mxu0 %v1053
        %1117 = vmatpush1.msra.mxu0 %v1052
        %1118 = vmatprep.mubr.f32.mxu0 %v983
        %1119 = vmatmul.mubr.f32.gmra.mrb[0].mxu0 %v982
        %v1120 = vpop.f32.mrb[0].mxu0
        %v1121 = vadd.f32 0.0, %v1120
        %v1122 = vpop.f32.mrb[0].mxu0
        %v1123 = vadd.f32 0.0, %v1122
        %1124 = vmatprep.mubr.f32.mxu0 %v985
        %1125 = vmatmul.mubr.f32.gmra.mrb[0].mxu0 %v984
        %v1126 = vpop.f32.mrb[0].mxu0
        %v1127 = vadd.f32 0.0, %v1126
        %v1128 = vpop.f32.mrb[0].mxu0
        %v1129 = vadd.f32 0.0, %v1128
        %1130 = vmatprep.mubr.f32.mxu0 %v987
        %1131 = vmatmul.mubr.f32.gmra.mrb[0].mxu0 %v986
        %v1132 = vpop.f32.mrb[0].mxu0
        %v1133 = vadd.f32 0.0, %v1132
        %v1134 = vpop.f32.mrb[0].mxu0
        %v1135 = vadd.f32 0.0, %v1134
        %1136 = vmatprep.mubr.f32.mxu0 %v989
        %1137 = vmatmul.mubr.f32.gmra.mrb[0].mxu0 %v988
        %v1138 = vpop.f32.mrb[0].mxu0
        %v1139 = vadd.f32 0.0, %v1138
        %v1140 = vpop.f32.mrb[0].mxu0
        %v1141 = vadd.f32 0.0, %v1140
        %1142 = vdwg.mxu0
        %v1143 = vadd.f32 %v974, %v1121
        %v1144 = vadd.f32 %v975, %v1123
        %v1145 = vadd.f32 %v976, %v1127
        %v1146 = vadd.f32 %v977, %v1129
        %v1147 = vadd.f32 %v978, %v1133
        %v1148 = vadd.f32 %v979, %v1135
        %v1149 = vadd.f32 %v980, %v1139
        %v1150 = vadd.f32 %v981, %v1141
        %v1151 = vld [vmem:[%s8] sm:$0x3]
        %v1153 = vlaneseq
        %v1154 = vshrl.u32 %v1153, 7
        %v1155 = vsub.s32 0, %v1154
        %v1156 = vrot.slane %v1151, %v1155
        %v1157 = vlaneseq
        %v1158 = vshrl.u32 %v1157, 7
        %v1159 = vsub.s32 1, %v1158
        %v1160 = vrot.slane %v1151, %v1159
        %v1163 = vmul.f32 %v1143, %v1156
        %v1164 = vmul.f32 %v1144, %v1160
        %v1165 = vmul.f32 %v1145, %v1156
        %v1166 = vmul.f32 %v1146, %v1160
        %v1167 = vmul.f32 %v1147, %v1156
        %v1168 = vmul.f32 %v1148, %v1160
        %v1169 = vmul.f32 %v1149, %v1156
        %v1170 = vmul.f32 %v1150, %v1160
        %v1171 = vld [vmem:[%s9] sm:$0x3]
        %v1173 = vlaneseq
        %v1174 = vshrl.u32 %v1173, 7
        %v1175 = vsub.s32 0, %v1174
        %v1176 = vrot.slane %v1171, %v1175
        %v1177 = vlaneseq
        %v1178 = vshrl.u32 %v1177, 7
        %v1179 = vsub.s32 1, %v1178
        %v1180 = vrot.slane %v1171, %v1179
        %v1183 = vadd.f32 %v1163, %v1176
        %v1184 = vadd.f32 %v1164, %v1180
        %v1185 = vadd.f32 %v1165, %v1176
        %v1186 = vadd.f32 %v1166, %v1180
        %v1187 = vadd.f32 %v1167, %v1176
        %v1188 = vadd.f32 %v1168, %v1180
        %v1189 = vadd.f32 %v1169, %v1176
        %v1190 = vadd.f32 %v1170, %v1180
        %vm1191 = vcmp.gt.f32.partialorder %v1183, 0.0
        %vm1192 = vcmp.gt.f32.partialorder %v1184, 0.0
        %vm1193 = vcmp.gt.f32.partialorder %v1185, 0.0
        %vm1194 = vcmp.gt.f32.partialorder %v1186, 0.0
        %vm1195 = vcmp.gt.f32.partialorder %v1187, 0.0
        %vm1196 = vcmp.gt.f32.partialorder %v1188, 0.0
        %vm1197 = vcmp.gt.f32.partialorder %v1189, 0.0
        %vm1198 = vcmp.gt.f32.partialorder %v1190, 0.0
        %v1199 = vmul.f32 %v1183, 0.2
        %v1200 = vmul.f32 %v1184, 0.2
        %v1201 = vmul.f32 %v1185, 0.2
        %v1202 = vmul.f32 %v1186, 0.2
        %v1203 = vmul.f32 %v1187, 0.2
        %v1204 = vmul.f32 %v1188, 0.2
        %v1205 = vmul.f32 %v1189, 0.2
        %v1206 = vmul.f32 %v1190, 0.2
        %v1207 = vsel %vm1191, %v1183, %v1199
        %v1208 = vsel %vm1192, %v1184, %v1200
        %v1209 = vsel %vm1193, %v1185, %v1201
        %v1210 = vsel %vm1194, %v1186, %v1202
        %v1211 = vsel %vm1195, %v1187, %v1203
        %v1212 = vsel %vm1196, %v1188, %v1204
        %v1213 = vsel %vm1197, %v1189, %v1205
        %v1214 = vsel %vm1198, %v1190, %v1206
        %v1215 = vld [vmem:[%s10] sm:$0xff]
        %v1216 = vld [vmem:[%s10 + $0x8] sm:$0xff]
        %v1217 = vld [vmem:[%s10 + $0x10] sm:$0xff]
        %v1218 = vld [vmem:[%s10 + $0x18] sm:$0xff]
        %v1219 = vld [vmem:[%s10 + $0x20] sm:$0xff]
        %v1220 = vld [vmem:[%s10 + $0x28] sm:$0xff]
        %v1221 = vld [vmem:[%s10 + $0x30] sm:$0xff]
        %v1222 = vld [vmem:[%s10 + $0x38] sm:$0xff]
        %v1223 = vld [vmem:[%s10 + $0x40] sm:$0xff]
        %v1224 = vld [vmem:[%s10 + $0x48] sm:$0xff]
        %v1225 = vld [vmem:[%s10 + $0x50] sm:$0xff]
        %v1226 = vld [vmem:[%s10 + $0x58] sm:$0xff]
        %v1227 = vld [vmem:[%s10 + $0x60] sm:$0xff]
        %v1228 = vld [vmem:[%s10 + $0x68] sm:$0xff]
        %v1229 = vld [vmem:[%s10 + $0x70] sm:$0xff]
        %v1230 = vld [vmem:[%s10 + $0x78] sm:$0xff]
        %v1231 = vld [vmem:[%s10 + $0x80] sm:$0xff]
        %v1232 = vld [vmem:[%s10 + $0x88] sm:$0xff]
        %v1233 = vld [vmem:[%s10 + $0x90] sm:$0xff]
        %v1234 = vld [vmem:[%s10 + $0x98] sm:$0xff]
        %v1235 = vld [vmem:[%s10 + $0xa0] sm:$0xff]
        %v1236 = vld [vmem:[%s10 + $0xa8] sm:$0xff]
        %v1237 = vld [vmem:[%s10 + $0xb0] sm:$0xff]
        %v1238 = vld [vmem:[%s10 + $0xb8] sm:$0xff]
        %v1239 = vld [vmem:[%s10 + $0xc0] sm:$0xff]
        %v1240 = vld [vmem:[%s10 + $0xc8] sm:$0xff]
        %v1241 = vld [vmem:[%s10 + $0xd0] sm:$0xff]
        %v1242 = vld [vmem:[%s10 + $0xd8] sm:$0xff]
        %v1243 = vld [vmem:[%s10 + $0xe0] sm:$0xff]
        %v1244 = vld [vmem:[%s10 + $0xe8] sm:$0xff]
        %v1245 = vld [vmem:[%s10 + $0xf0] sm:$0xff]
        %v1246 = vld [vmem:[%s10 + $0xf8] sm:$0xff]
        %1247 = vmatprep.subr.mxu0 0.0
        %1248 = vmatpush1.msra.mxu0 %v1215
        %1249 = vmatprep.subr.mxu0 0.0
        %1250 = vmatpush1.msra.mxu0 %v1216
        %1251 = vmatprep.subr.mxu0 0.0
        %1252 = vmatpush1.msra.mxu0 %v1217
        %1253 = vmatprep.subr.mxu0 0.0
        %1254 = vmatpush1.msra.mxu0 %v1218
        %1255 = vmatprep.subr.mxu0 0.0
        %1256 = vmatpush1.msra.mxu0 %v1219
        %1257 = vmatprep.subr.mxu0 0.0
        %1258 = vmatpush1.msra.mxu0 %v1220
        %1259 = vmatprep.subr.mxu0 0.0
        %1260 = vmatpush1.msra.mxu0 %v1221
        %1261 = vmatprep.subr.mxu0 0.0
        %1262 = vmatpush1.msra.mxu0 %v1222
        %1263 = vmatprep.subr.mxu0 0.0
        %1264 = vmatpush1.msra.mxu0 %v1223
        %1265 = vmatprep.subr.mxu0 0.0
        %1266 = vmatpush1.msra.mxu0 %v1224
        %1267 = vmatprep.subr.mxu0 0.0
        %1268 = vmatpush1.msra.mxu0 %v1225
        %1269 = vmatprep.subr.mxu0 0.0
        %1270 = vmatpush1.msra.mxu0 %v1226
        %1271 = vmatprep.subr.mxu0 0.0
        %1272 = vmatpush1.msra.mxu0 %v1227
        %1273 = vmatprep.subr.mxu0 0.0
        %1274 = vmatpush1.msra.mxu0 %v1228
        %1275 = vmatprep.subr.mxu0 0.0
        %1276 = vmatpush1.msra.mxu0 %v1229
        %1277 = vmatprep.subr.mxu0 0.0
        %1278 = vmatpush1.msra.mxu0 %v1230
        %1279 = vmatprep.subr.mxu0 0.0
        %1280 = vmatpush1.msra.mxu0 %v1231
        %1281 = vmatprep.subr.mxu0 0.0
        %1282 = vmatpush1.msra.mxu0 %v1232
        %1283 = vmatprep.subr.mxu0 0.0
        %1284 = vmatpush1.msra.mxu0 %v1233
        %1285 = vmatprep.subr.mxu0 0.0
        %1286 = vmatpush1.msra.mxu0 %v1234
        %1287 = vmatprep.subr.mxu0 0.0
        %1288 = vmatpush1.msra.mxu0 %v1235
        %1289 = vmatprep.subr.mxu0 0.0
        %1290 = vmatpush1.msra.mxu0 %v1236
        %1291 = vmatprep.subr.mxu0 0.0
        %1292 = vmatpush1.msra.mxu0 %v1237
        %1293 = vmatprep.subr.mxu0 0.0
        %1294 = vmatpush1.msra.mxu0 %v1238
        %1295 = vmatprep.subr.mxu0 0.0
        %1296 = vmatpush1.msra.mxu0 %v1239
        %1297 = vmatprep.subr.mxu0 0.0
        %1298 = vmatpush1.msra.mxu0 %v1240
        %1299 = vmatprep.subr.mxu0 0.0
        %1300 = vmatpush1.msra.mxu0 %v1241
        %1301 = vmatprep.subr.mxu0 0.0
        %1302 = vmatpush1.msra.mxu0 %v1242
        %1303 = vmatprep.subr.mxu0 0.0
        %1304 = vmatpush1.msra.mxu0 %v1243
        %1305 = vmatprep.subr.mxu0 0.0
        %1306 = vmatpush1.msra.mxu0 %v1244
        %1307 = vmatprep.subr.mxu0 0.0
        %1308 = vmatpush1.msra.mxu0 %v1245
        %1309 = vmatprep.subr.mxu0 0.0
        %1310 = vmatpush1.msra.mxu0 %v1246
        %1311 = vmatprep.mubr.f32.mxu0 %v1208
        %1312 = vmatmul.mubr.f32.gmra.mrb[0].mxu0 %v1207
        %v1313 = vpop.f32.mrb[0].mxu0
        %v1314 = vadd.f32 0.0, %v1313
        %v1315 = vpop.f32.mrb[0].mxu0
        %1316 = vmatprep.mubr.f32.mxu0 %v1210
        %1317 = vmatmul.mubr.f32.gmra.mrb[0].mxu0 %v1209
        %v1318 = vpop.f32.mrb[0].mxu0
        %v1319 = vadd.f32 0.0, %v1318
        %v1320 = vpop.f32.mrb[0].mxu0
        %1321 = vmatprep.mubr.f32.mxu0 %v1212
        %1322 = vmatmul.mubr.f32.gmra.mrb[0].mxu0 %v1211
        %v1323 = vpop.f32.mrb[0].mxu0
        %v1324 = vadd.f32 0.0, %v1323
        %v1325 = vpop.f32.mrb[0].mxu0
        %1326 = vmatprep.mubr.f32.mxu0 %v1214
        %1327 = vmatmul.mubr.f32.gmra.mrb[0].mxu0 %v1213
        %v1328 = vpop.f32.mrb[0].mxu0
        %v1329 = vadd.f32 0.0, %v1328
        %v1330 = vpop.f32.mrb[0].mxu0
        %1331 = vdwg.mxu0
        %v1332 = vld [vmem:[%s11] sm:$0x1]
        %v1334 = vlaneseq
        %v1335 = vshrl.u32 %v1334, 7
        %v1336 = vsub.s32 0, %v1335
        %v1337 = vrot.slane %v1332, %v1336
        %v1339 = vmul.f32 %v1314, %v1337
        %v1340 = vmul.f32 %v1319, %v1337
        %v1341 = vmul.f32 %v1324, %v1337
        %v1342 = vmul.f32 %v1329, %v1337
        %v1343 = vld [vmem:[%s12] sm:$0x1]
        %v1345 = vlaneseq
        %v1346 = vshrl.u32 %v1345, 7
        %v1347 = vsub.s32 0, %v1346
        %v1348 = vrot.slane %v1343, %v1347
        %v1350 = vadd.f32 %v1339, %v1348
        %v1351 = vadd.f32 %v1340, %v1348
        %v1352 = vadd.f32 %v1341, %v1348
        %v1353 = vadd.f32 %v1342, %v1348
        %vm1354 = vcmp.gt.f32.partialorder %v1350, 0.0
        %vm1355 = vcmp.gt.f32.partialorder %v1351, 0.0
        %vm1356 = vcmp.gt.f32.partialorder %v1352, 0.0
        %vm1357 = vcmp.gt.f32.partialorder %v1353, 0.0
        %v1358 = vmul.f32 %v1350, 0.2
        %v1359 = vmul.f32 %v1351, 0.2
        %v1360 = vmul.f32 %v1352, 0.2
        %v1361 = vmul.f32 %v1353, 0.2
        %v1362 = vsel %vm1354, %v1350, %v1358
        %v1363 = vsel %vm1355, %v1351, %v1359
        %v1364 = vsel %vm1356, %v1352, %v1360
        %v1365 = vsel %vm1357, %v1353, %v1361
        %v1366 = vld [vmem:[%s13] sm:$0x1]
        %1367 = vmatprep.subr.mxu0 0.0
        %1368 = vmatpush1.xpose.msra.mxu0 %v1362
        %1369 = vmatprep.subr.mxu0 0.0
        %1370 = vmatpush1.xpose.msra.mxu0 %v1363
        %1371 = vmatprep.subr.mxu0 0.0
        %1372 = vmatpush1.xpose.msra.mxu0 %v1364
        %1373 = vmatprep.subr.mxu0 0.0
        %1374 = vmatpush1.xpose.msra.mxu0 %v1365
        %1375 = vmatprep.subr.mxu0 0.0
        %1376 = vmatpush1.xpose.msra.mxu0 0.0
        %1377 = vmatprep.subr.mxu0 0.0
        %1378 = vmatpush1.xpose.msra.mxu0 0.0
        %1379 = vmatprep.subr.mxu0 0.0
        %1380 = vmatpush1.xpose.msra.mxu0 0.0
        %1381 = vmatprep.subr.mxu0 0.0
        %1382 = vmatpush1.xpose.msra.mxu0 0.0
        %1383 = vmatprep.subr.mxu0 0.0
        %1384 = vmatpush1.xpose.msra.mxu0 0.0
        %1385 = vmatprep.subr.mxu0 0.0
        %1386 = vmatpush1.xpose.msra.mxu0 0.0
        %1387 = vmatprep.subr.mxu0 0.0
        %1388 = vmatpush1.xpose.msra.mxu0 0.0
        %1389 = vmatprep.subr.mxu0 0.0
        %1390 = vmatpush1.xpose.msra.mxu0 0.0
        %1391 = vmatprep.subr.mxu0 0.0
        %1392 = vmatpush1.xpose.msra.mxu0 0.0
        %1393 = vmatprep.subr.mxu0 0.0
        %1394 = vmatpush1.xpose.msra.mxu0 0.0
        %1395 = vmatprep.subr.mxu0 0.0
        %1396 = vmatpush1.xpose.msra.mxu0 0.0
        %1397 = vmatprep.subr.mxu0 0.0
        %1398 = vmatpush1.xpose.msra.mxu0 0.0
        %1399 = vmatprep.subr.mxu0 0.0
        %1400 = vmatpush1.xpose.msra.mxu0 0.0
        %1401 = vmatprep.subr.mxu0 0.0
        %1402 = vmatpush1.xpose.msra.mxu0 0.0
        %1403 = vmatprep.subr.mxu0 0.0
        %1404 = vmatpush1.xpose.msra.mxu0 0.0
        %1405 = vmatprep.subr.mxu0 0.0
        %1406 = vmatpush1.xpose.msra.mxu0 0.0
        %1407 = vmatprep.subr.mxu0 0.0
        %1408 = vmatpush1.xpose.msra.mxu0 0.0
        %1409 = vmatprep.subr.mxu0 0.0
        %1410 = vmatpush1.xpose.msra.mxu0 0.0
        %1411 = vmatprep.subr.mxu0 0.0
        %1412 = vmatpush1.xpose.msra.mxu0 0.0
        %1413 = vmatprep.subr.mxu0 0.0
        %1414 = vmatpush1.xpose.msra.mxu0 0.0
        %1415 = vmatprep.subr.mxu0 0.0
        %1416 = vmatpush1.xpose.msra.mxu0 0.0
        %1417 = vmatprep.subr.mxu0 0.0
        %1418 = vmatpush1.xpose.msra.mxu0 0.0
        %1419 = vmatprep.subr.mxu0 0.0
        %1420 = vmatpush1.xpose.msra.mxu0 0.0
        %1421 = vmatprep.subr.mxu0 0.0
        %1422 = vmatpush1.xpose.msra.mxu0 0.0
        %1423 = vmatprep.subr.mxu0 0.0
        %1424 = vmatpush1.xpose.msra.mxu0 0.0
        %1425 = vmatprep.subr.mxu0 0.0
        %1426 = vmatpush1.xpose.msra.mxu0 0.0
        %1427 = vmatprep.subr.mxu0 0.0
        %1428 = vmatpush1.xpose.msra.mxu0 0.0
        %1429 = vmatprep.subr.mxu0 0.0
        %1430 = vmatpush1.xpose.msra.mxu0 0.0
        %1431 = vmatprep.mubr.f32.mxu0 0.0
        %1432 = vmatmul.mubr.f32.gmra.mrb[0].mxu0 %v1366
        %v1433 = vpop.f32.mrb[0].mxu0
        %v1434 = vadd.f32 0.0, %v1433
        %v1435 = vpop.f32.mrb[0].mxu0
        %1436 = vdwg.mxu0
        %vm1437 = vcmp.gt.f32.partialorder %v1434, 0.0
        %v1438 = vmul.f32 %v1434, 0.2
        %v1439 = vsel %vm1437, %v1434, %v1438
        %vm1440 = vcmask 253952
        %1441 = vst.msk [vmem:[%s564] sm:$0x1] %vm1440, %v1439
        %s1442 = sand.u32 %s372, 1
        %s1443 = scalar_lea.sflag [#allocation3], %s1442
        %s1444 = sand.u32 %s372, 1
        %s1445 = scalar_lea.vmem [#allocation2], %s1444
        // Predicated region
        $region77: #{_lambda_.9} parent=75 // pred_check
          %p1446 = pneg %p382
        $region78: #{_lambda_.9} parent=75 // pred_check_branch
          %1448 = sbr.rel (%p1446) target = $region80
        $region79: #{_lambda_.9} parent=75 // pred_region
          %s1450 = ssub.s32 16, 16
          %1451 = vsyncadd %s1443, %s1450
          %s1452 = sadd.s32 %s33, %s32
          %s1453 = smul.addr %s1452, 16
          %s1454 = scalar_lea.hbm %s14, %s1453
          %s1456 = sshll.u32 %s1445, 4
          %s1457 = int_to_ptr.vmem [resolvable:$true] %s1456
          %1459 = dma.vmem_to_hbm [thread:$0]  %s1457, 16, %s1454, %s1443
        $region80: #{_lambda_.9} parent=75 // pred_fallthru
          _
      $region76: #{_lambda_.9} parent=5 // pred_fallthru
        _
      %p1460 = scmp.le.s32.totalorder 2, %s23
      // Predicated region
      $region81: #{_lambda_.9} parent=5 // pred_check
        %p1461 = pneg %p1460
      $region82: #{_lambda_.9} parent=5 // pred_check_branch
        %1463 = sbr.rel (%p1461) target = $region84
      $region83: #{_lambda_.9} parent=5 // pred_region
        %s1464 = ssub.s32 %s23, 2
        // Predicated region
        $region85: #{_lambda_.9} parent=83 // pred_check
          %p1465 = pneg %p388
        $region86: #{_lambda_.9} parent=83 // pred_check_branch
          %1467 = sbr.rel (%p1465) target = $region88
        $region87: #{_lambda_.9} parent=83 // pred_region
          %s1468 = sand.u32 %s373, 1
          %s1469 = scalar_lea.sflag [#allocation3], %s1468
          %s1470 = sand.u32 %s373, 1
          %s1471 = scalar_lea.vmem [#allocation2], %s1470
          %1472 = dma.done %s1469, 16
        $region88: #{_lambda_.9} parent=83 // pred_fallthru
          _
      $region84: #{_lambda_.9} parent=5 // pred_fallthru
        _
    $region6: #{_lambda_.9} parent=1 // loop_footer
      %s27 = sadd.s32 1, %s23
    $region7: #{_lambda_.9} parent=1 // loop_footer_branch
      %22 = sbr.rel target = $region3
    $region8: #{_lambda_.9} parent=1 // loop_exit
      _
    %1473 = vsyncpa [#allocation3], 1
    %s1474 = scalar_lea.sflag [#allocation3], 1
    %1475 = vsyncpa %s1474, 1

</llo_original>
